<compile_context>
chip_gen: v5e
topology: v5e:2x2
jax: 0.10.0
libtpu: 0.0.40
codegen_flags: <defaults>
</compile_context>

<pallas_src>
import math
from functools import partial

import jax
import jax.numpy as jnp
import numpy as np
from jax.experimental import pallas as pl
from jax.experimental.pallas import tpu as pltpu


# ----------------------------------------------------------------------------
# Pallas kernel: one grid step == one batch element, everything fused.
# ----------------------------------------------------------------------------
def _block_kernel(x_ref, wqkv_ref, wo_ref, w13_ref, w2_ref,
                  attn_nw_ref, ffn_nw_ref, cs_ref, sn_ref,
                  out_ref, keys_ref, vals_ref,
                  attn_ref, *, eps, n_heads):
    S = x_ref.shape[1]
    D = x_ref.shape[2]
    head_dim = D // n_heads
    hd2 = head_dim // 2
    hidden = w2_ref.shape[0]
    bf16 = jnp.bfloat16
    neg_inf = jnp.float32(-1e30)

    x = x_ref[0].astype(jnp.float32)                        # (S, D) f32

    # ---- attention RMSNorm (f32 VPU math) ----
    var = jnp.mean(x * x, axis=-1, keepdims=True)
    xn = x * jax.lax.rsqrt(var + eps) * attn_nw_ref[...]    # (S, D)

    # ---- fused QKV projection: bf16 operands, f32 accumulation (MXU) ----
    qkv = jnp.dot(xn.astype(bf16), wqkv_ref[...],
                  preferred_element_type=jnp.float32)       # (S, 3D)

    # ---- RoPE for q AND k of ALL heads in one full-width shot ----
    # Columns of wq/wk are de-interleaved per head at pack time, so each head
    # block is [real half | imag half].  cs_ref/sn_ref are (S, 2D) tables with
    # per-head blocks [cos|cos] and [-sin|sin]; the q half of the tables also
    # carries the 1/sqrt(head_dim) score scale.
    qk = qkv[:, :2 * D]                                     # (S, 2D) f32
    parts = []
    for hh in range(2 * n_heads):
        lo = hh * head_dim
        parts.append(qk[:, lo + hd2: lo + head_dim])        # imag half
        parts.append(qk[:, lo: lo + hd2])                   # real half
    qk_sw = jnp.concatenate(parts, axis=-1)                 # per-head half swap
    qk_rot = qk * cs_ref[...] + qk_sw * sn_ref[...]         # (S, 2D) f32

    xq = qk_rot[:, :D]                                      # pre-scaled q
    xk = qk_rot[:, D:]                                      # rotated k (unscaled)
    xv = qkv[:, 2 * D:]

    # present_key_value: lane-dense (S, D) slabs; torch (B,H,S,hd) layout and
    # the head_dim de-interleave are undone with a reshape/transpose outside.
    keys_ref[0] = xk.astype(keys_ref.dtype)
    vals_ref[0] = xv.astype(vals_ref.dtype)

    q_bf = xq.astype(bf16)
    k_bf = xk.astype(bf16)
    v_bf = xv.astype(bf16)

    # ---- causal mask built in-kernel (no SxS HBM input), shared by heads ----
    rows = jax.lax.broadcasted_iota(jnp.int32, (S, S), 0)
    cols = jax.lax.broadcasted_iota(jnp.int32, (S, S), 1)
    causal = cols <= rows

    # Per-head attention (static unroll; n_heads is small).  Head slices are
    # contiguous; q.k dot products are unchanged by the per-head column
    # permutation since q and k use the same permutation.
    for hh in range(n_heads):
        lo = hh * head_dim
        s = jax.lax.dot_general(
            q_bf[:, lo:lo + head_dim], k_bf[:, lo:lo + head_dim],
            (((1,), (1,)), ((), ())),
            preferred_element_type=jnp.float32)             # (S, S) f32
        s = jnp.where(causal, s, neg_inf)

        m = jnp.max(s, axis=-1, keepdims=True)
        p = jnp.exp(s - m)                                  # unnormalized, f32
        l = jnp.sum(p, axis=-1, keepdims=True)
        o = jnp.dot(p.astype(bf16), v_bf[:, lo:lo + head_dim],
                    preferred_element_type=jnp.float32)     # (S, hd)
        # deferred 1/l on the (S, hd) output; approx -> EUP slot
        attn_ref[:, lo:lo + head_dim] = o * pl.reciprocal(l, approx=True)

    # ---- output projection + residual ----
    h = x + jnp.dot(attn_ref[...].astype(bf16), wo_ref[...],
                    preferred_element_type=jnp.float32)

    # ---- FFN RMSNorm (f32) ----
    var2 = jnp.mean(h * h, axis=-1, keepdims=True)
    hn = h * jax.lax.rsqrt(var2 + eps) * ffn_nw_ref[...]

    # ---- SwiGLU feed-forward: fused w1|w3, bf16 operands, f32 accumulation ----
    gu = jnp.dot(hn.astype(bf16), w13_ref[...],
                 preferred_element_type=jnp.float32)        # (S, 2*hidden)
    g, u = gu[:, :hidden], gu[:, hidden:]
    act = (g * jax.nn.sigmoid(g)) * u                       # SiLU(g) * u, f32
    ff = jnp.dot(act.astype(bf16), w2_ref[...],
                 preferred_element_type=jnp.float32)

    out_ref[0] = (h + ff).astype(out_ref.dtype)


# ----------------------------------------------------------------------------
# Load-time parameter packing (run once, NOT on the per-token path):
#   * de-interleave wq/wk columns per head (RoPE rotate-half layout),
#   * fuse QKV and W1|W3, cast all matmul weights to bf16.
# ----------------------------------------------------------------------------
def pack_block_params(params, *, n_heads):
    D = params["wq"].shape[0]
    head_dim = D // n_heads
    deint = np.concatenate([np.arange(0, head_dim, 2),
                            np.arange(1, head_dim, 2)])
    col_perm = (np.arange(n_heads)[:, None] * head_dim
                + deint[None, :]).reshape(-1)

    wqkv = jnp.concatenate(
        [jnp.asarray(params["wq"])[:, col_perm],
         jnp.asarray(params["wk"])[:, col_perm],
         jnp.asarray(params["wv"])], axis=1).astype(jnp.bfloat16)
    w13 = jnp.concatenate([params["w1"], params["w3"]],
                          axis=1).astype(jnp.bfloat16)

    attn_nw = jnp.asarray(params["attn_norm_w"]).reshape(1, D).astype(jnp.float32)
    ffn_nw = jnp.asarray(params["ffn_norm_w"]).reshape(1, D).astype(jnp.float32)

    return {
        "n_heads": n_heads,
        "wqkv": wqkv,                                        # (D, 3D) bf16
        "wo": jnp.asarray(params["wo"]).astype(jnp.bfloat16),
        "w13": w13,                                          # (D, 2*hidden) bf16
        "w2": jnp.asarray(params["w2"]).astype(jnp.bfloat16),
        "attn_norm_w": attn_nw,
        "ffn_norm_w": ffn_nw,
        "inv_head_perm": np.argsort(deint),                  # static
    }


# ----------------------------------------------------------------------------
# Wrapper: BlockSpecs, grid, call.  Prefill path (start_pos baked into
# cos/sin by the caller; causal mask generated in-kernel).
# ----------------------------------------------------------------------------
def transformer_block(x, packed, cos, sin, *, eps=1e-5, start_pos=0,
                      past_key_value=None):
    del start_pos  # caller bakes it into cos/sin, exactly like freqs_cis slicing
    if past_key_value is not None:
        # TODO(synk): decode-time KV-cache append path not implemented.
        raise NotImplementedError("past_key_value append not implemented")

    B, S, D = x.shape
    n_heads = packed["n_heads"]
    head_dim = D // n_heads
    hd2 = head_dim // 2
    hidden = packed["w2"].shape[0]
    assert cos.shape == (S, hd2) and sin.shape == (S, hd2)

    # (S, 2D) RoPE tables matching the de-interleaved per-head layout:
    # per-head blocks [cos|cos] and [-sin|sin]; the q half also absorbs the
    # 1/sqrt(head_dim) attention-score scale (so the kernel never scales).
    scale = 1.0 / math.sqrt(head_dim)
    cs_head = jnp.concatenate([cos, cos], axis=-1)           # (S, head_dim)
    sn_head = jnp.concatenate([-sin, sin], axis=-1)          # (S, head_dim)
    cs_tab = jnp.concatenate([jnp.tile(cs_head * scale, (1, n_heads)),
                              jnp.tile(cs_head, (1, n_heads))],
                             axis=-1).astype(jnp.float32)    # (S, 2D)
    sn_tab = jnp.concatenate([jnp.tile(sn_head * scale, (1, n_heads)),
                              jnp.tile(sn_head, (1, n_heads))],
                             axis=-1).astype(jnp.float32)    # (S, 2D)

    def full_spec(shape):
        rank = len(shape)
        return pl.BlockSpec(shape, lambda b, _r=rank: (0,) * _r)

    grid_spec = pltpu.PrefetchScalarGridSpec(
        num_scalar_prefetch=0,
        grid=(B,),
        in_specs=[
            pl.BlockSpec((1, S, D), lambda b: (b, 0, 0)),        # x
            full_spec((D, 3 * D)),                               # wqkv (bf16)
            full_spec((D, D)),                                   # wo   (bf16)
            full_spec((D, 2 * hidden)),                          # w1|w3 (bf16)
            full_spec((hidden, D)),                              # w2   (bf16)
            full_spec((1, D)), full_spec((1, D)),                # norm weights
            full_spec((S, 2 * D)), full_spec((S, 2 * D)),        # cos/sin tables
        ],
        out_specs=[
            pl.BlockSpec((1, S, D), lambda b: (b, 0, 0)),        # out
            pl.BlockSpec((1, S, D), lambda b: (b, 0, 0)),        # keys  (lane-dense)
            pl.BlockSpec((1, S, D), lambda b: (b, 0, 0)),        # values(lane-dense)
        ],
        scratch_shapes=[pltpu.VMEM((S, D), jnp.float32)],        # attn slab
    )

    out_shapes = (
        jax.ShapeDtypeStruct((B, S, D), x.dtype),
        jax.ShapeDtypeStruct((B, S, D), x.dtype),
        jax.ShapeDtypeStruct((B, S, D), x.dtype),
    )

    out, keys_flat, vals_flat = pl.pallas_call(
        partial(_block_kernel, eps=eps, n_heads=n_heads),
        out_shape=out_shapes,
        grid_spec=grid_spec,
        compiler_params=pltpu.CompilerParams(
            dimension_semantics=("parallel",)),
    )(x, packed["wqkv"], packed["wo"], packed["w13"], packed["w2"],
      packed["attn_norm_w"], packed["ffn_norm_w"], cs_tab, sn_tab)

    # Wrapper-side layout plumbing: restore torch's (B, n_heads, S, head_dim)
    # layout and the interleaved head_dim order for present keys.
    inv = packed["inv_head_perm"]
    keys = jnp.transpose(
        keys_flat.reshape(B, S, n_heads, head_dim)[..., inv], (0, 2, 1, 3))
    values = jnp.transpose(
        vals_flat.reshape(B, S, n_heads, head_dim), (0, 2, 1, 3))
    return out, (keys, values)


# ----------------------------------------------------------------------------
# Pure-JAX reference: mirrors the torch module, with the same bf16-operand /
# f32-accumulation matmul policy as the kernel (elementwise math stays f32).
# ----------------------------------------------------------------------------
def ref_transformer_block(x, params, freqs_cis, mask, *, n_heads, eps=1e-5):
    B, S, D = x.shape
    hd = D // n_heads
    bf16 = jnp.bfloat16

    def mm(a, w):
        return jnp.dot(a.astype(bf16), w.astype(bf16),
                       preferred_element_type=jnp.float32)

    def rmsnorm(v, w):
        return v * jax.lax.rsqrt(jnp.mean(v * v, axis=-1, keepdims=True) + eps) * w

    xn = rmsnorm(x, params["attn_norm_w"])
    xq = mm(xn, params["wq"]).reshape(B, S, n_heads, hd)
    xk = mm(xn, params["wk"]).reshape(B, S, n_heads, hd)
    xv = mm(xn, params["wv"]).reshape(B, S, n_heads, hd)

    def rope(t):
        tc = jax.lax.complex(t[..., 0::2], t[..., 1::2])
        tc = tc * freqs_cis[None, :, None, :]
        return jnp.stack([jnp.real(tc), jnp.imag(tc)], axis=-1).reshape(t.shape)

    xq, xk = rope(xq), rope(xk)
    scores = jnp.einsum("bqhd,bkhd->bhqk", xq.astype(bf16), xk.astype(bf16),
                        preferred_element_type=jnp.float32) / math.sqrt(hd)
    scores = scores + mask[None, None]
    p = jax.nn.softmax(scores, axis=-1)
    attn = jnp.einsum("bhqk,bkhd->bqhd", p.astype(bf16), xv.astype(bf16),
                      preferred_element_type=jnp.float32).reshape(B, S, D)
    h = x + mm(attn, params["wo"])
    hn = rmsnorm(h, params["ffn_norm_w"])
    ff = mm(jax.nn.silu(mm(hn, params["w1"])) * mm(hn, params["w3"]),
            params["w2"])
    out = h + ff
    keys = jnp.transpose(xk, (0, 2, 1, 3))
    values = jnp.transpose(xv, (0, 2, 1, 3))
    return out, (keys, values)


# ----------------------------------------------------------------------------
if __name__ == "__main__":
    # Small but lane-friendly config: dim=128, n_heads=4 (head_dim=32), seq=64.
    B, S, D, NH = 2, 64, 128, 4
    HD = D // NH
    EPS = 1e-5
    # FeedForward hidden dim: 4*D -> 2/3 -> round up to multiple_of(64) -> 384
    multiple_of = 64
    hidden = 4 * D
    hidden = int(2 * hidden / 3)
    hidden = multiple_of * ((hidden + multiple_of - 1) // multiple_of)

    key = jax.random.PRNGKey(0)
    ks = jax.random.split(key, 10)

    def init(k, shape):
        return jax.random.normal(k, shape, dtype=jnp.float32) / math.sqrt(shape[0])

    params = {
        "wq": init(ks[0], (D, D)),
        "wk": init(ks[1], (D, D)),
        "wv": init(ks[2], (D, D)),
        "wo": init(ks[3], (D, D)),
        "w1": init(ks[4], (D, hidden)),
        "w2": init(ks[5], (hidden, D)),
        "w3": init(ks[6], (D, hidden)),
        "attn_norm_w": 1.0 + 0.1 * jax.random.normal(ks[7], (D,), dtype=jnp.float32),
        "ffn_norm_w": 1.0 + 0.1 * jax.random.normal(ks[8], (D,), dtype=jnp.float32),
    }

    x = jax.random.normal(ks[9], (B, S, D), dtype=jnp.float32)

    # RoPE tables (precompute_freqs_cis, theta=10000, start_pos=0).
    inv_freq = 1.0 / (10000.0 ** (jnp.arange(0, HD, 2, dtype=jnp.float32) / HD))
    t = jnp.arange(S, dtype=jnp.float32)
    ang = jnp.outer(t, inv_freq)                  # (S, HD//2)
    cos, sin = jnp.cos(ang), jnp.sin(ang)
    freqs_cis = cos + 1j * sin                    # complex64, for the reference

    # One-time weight packing (load-time step).
    packed = pack_block_params(params, n_heads=NH)

    out, (keys, values) = transformer_block(x, packed, cos, sin, eps=EPS)
    jax.block_until_ready((out, keys, values))

    # Reference (additive causal mask; very negative instead of -inf).
    mask = jnp.triu(jnp.full((S, S), -1e30, dtype=jnp.float32), k=1)
    ref_out, (ref_k, ref_v) = ref_transformer_block(
        x, params, freqs_cis, mask, n_heads=NH, eps=EPS)

    np.testing.assert_allclose(np.asarray(out), np.asarray(ref_out),
                               rtol=2e-2, atol=2e-2)
    np.testing.assert_allclose(np.asarray(keys), np.asarray(ref_k),
                               rtol=5e-3, atol=5e-3)
    np.testing.assert_allclose(np.asarray(values), np.asarray(ref_v),
                               rtol=5e-3, atol=5e-3)

    print("KERNEL_OK")
</pallas_src>

<mosaic_0001>
module attributes {stable_mosaic.version = 11 : i64} {
  func.func @_block_kernel(%arg0: i32, %arg1: memref<1x64x128xf32, #tpu.memory_space<vmem>>, %arg2: memref<128x384xbf16, #tpu.memory_space<vmem>>, %arg3: memref<128x128xbf16, #tpu.memory_space<vmem>>, %arg4: memref<128x768xbf16, #tpu.memory_space<vmem>>, %arg5: memref<384x128xbf16, #tpu.memory_space<vmem>>, %arg6: memref<1x128xf32, #tpu.memory_space<vmem>>, %arg7: memref<1x128xf32, #tpu.memory_space<vmem>>, %arg8: memref<64x256xf32, #tpu.memory_space<vmem>>, %arg9: memref<64x256xf32, #tpu.memory_space<vmem>>, %arg10: memref<1x64x128xf32, #tpu.memory_space<vmem>>, %arg11: memref<1x64x128xf32, #tpu.memory_space<vmem>>, %arg12: memref<1x64x128xf32, #tpu.memory_space<vmem>>, %arg13: memref<64x128xf32, #tpu.memory_space<vmem>>) attributes {dimension_semantics = [#tpu.dimension_semantics<parallel>], iteration_bounds = array<i64: 2>, scalar_prefetch = 0 : i64, scratch_operands = 1 : i64, tpu.core_type = #tpu.core_type<tc>, window_params = [{transform_indices = @transform_0, window_bounds = array<i64: 1, 64, 128>}, {pipeline_mode = #tpu.pipeline_mode<synchronous>, transform_indices = @transform_1, window_bounds = array<i64: 128, 384>}, {pipeline_mode = #tpu.pipeline_mode<synchronous>, transform_indices = @transform_2, window_bounds = array<i64: 128, 128>}, {pipeline_mode = #tpu.pipeline_mode<synchronous>, transform_indices = @transform_3, window_bounds = array<i64: 128, 768>}, {pipeline_mode = #tpu.pipeline_mode<synchronous>, transform_indices = @transform_4, window_bounds = array<i64: 384, 128>}, {pipeline_mode = #tpu.pipeline_mode<synchronous>, transform_indices = @transform_5, window_bounds = array<i64: 1, 128>}, {pipeline_mode = #tpu.pipeline_mode<synchronous>, transform_indices = @transform_6, window_bounds = array<i64: 1, 128>}, {pipeline_mode = #tpu.pipeline_mode<synchronous>, transform_indices = @transform_7, window_bounds = array<i64: 64, 256>}, {pipeline_mode = #tpu.pipeline_mode<synchronous>, transform_indices = @transform_8, window_bounds = array<i64: 64, 256>}, {transform_indices = @transform_9, window_bounds = array<i64: 1, 64, 128>}, {transform_indices = @transform_10, window_bounds = array<i64: 1, 64, 128>}, {transform_indices = @transform_11, window_bounds = array<i64: 1, 64, 128>}]} {
    %c0 = arith.constant 0 : index
    %c0_0 = arith.constant 0 : index
    %c0_1 = arith.constant 0 : index
    %0 = vector.load %arg1[%c0, %c0_0, %c0_1] : memref<1x64x128xf32, #tpu.memory_space<vmem>>, vector<1x64x128xf32>
    %1 = vector.shape_cast %0 : vector<1x64x128xf32> to vector<64x128xf32>
    %2 = arith.mulf %1, %1 : vector<64x128xf32>
    %cst = arith.constant dense<0.000000e+00> : vector<64xf32>
    %3 = vector.multi_reduction <add>, %2, %cst [1] : vector<64x128xf32> to vector<64xf32>
    %4 = vector.shape_cast %3 : vector<64xf32> to vector<64x1xf32>
    %cst_2 = arith.constant 1.280000e+02 : f32
    %5 = vector.broadcast %cst_2 : f32 to vector<64x1xf32>
    %6 = arith.divf %4, %5 : vector<64x1xf32>
    %cst_3 = arith.constant 9.99999974E-6 : f32
    %7 = vector.broadcast %cst_3 : f32 to vector<64x1xf32>
    %8 = arith.addf %6, %7 : vector<64x1xf32>
    %9 = math.rsqrt %8 : vector<64x1xf32>
    %10 = vector.broadcast %9 : vector<64x1xf32> to vector<64x128xf32>
    %11 = arith.mulf %1, %10 : vector<64x128xf32>
    %c0_4 = arith.constant 0 : index
    %c0_5 = arith.constant 0 : index
    %12 = vector.load %arg6[%c0_4, %c0_5] : memref<1x128xf32, #tpu.memory_space<vmem>>, vector<1x128xf32>
    %13 = vector.broadcast %12 : vector<1x128xf32> to vector<64x128xf32>
    %14 = arith.mulf %11, %13 : vector<64x128xf32>
    %15 = arith.truncf %14 : vector<64x128xf32> to vector<64x128xbf16>
    %c0_6 = arith.constant 0 : index
    %c0_7 = arith.constant 0 : index
    %16 = vector.load %arg2[%c0_6, %c0_7] : memref<128x384xbf16, #tpu.memory_space<vmem>>, vector<128x384xbf16>
    %cst_8 = arith.constant dense<0.000000e+00> : vector<64x384xf32>
    %17 = tpu.matmul %15, %16, %cst_8 {dimension_numbers = #tpu.dot_dimension_numbers<[1], [0], [0], [1], [0, 0, 1, 1], [], []>} : vector<64x128xbf16>, vector<128x384xbf16>, vector<64x384xf32> -> vector<64x384xf32>
    %18 = vector.extract_strided_slice %17 {offsets = [0, 0], sizes = [64, 256], strides = [1, 1]} : vector<64x384xf32> to vector<64x256xf32>
    %19 = vector.extract_strided_slice %18 {offsets = [0, 16], sizes = [64, 16], strides = [1, 1]} : vector<64x256xf32> to vector<64x16xf32>
    %20 = vector.extract_strided_slice %18 {offsets = [0, 0], sizes = [64, 16], strides = [1, 1]} : vector<64x256xf32> to vector<64x16xf32>
    %21 = vector.extract_strided_slice %18 {offsets = [0, 48], sizes = [64, 16], strides = [1, 1]} : vector<64x256xf32> to vector<64x16xf32>
    %22 = vector.extract_strided_slice %18 {offsets = [0, 32], sizes = [64, 16], strides = [1, 1]} : vector<64x256xf32> to vector<64x16xf32>
    %23 = vector.extract_strided_slice %18 {offsets = [0, 80], sizes = [64, 16], strides = [1, 1]} : vector<64x256xf32> to vector<64x16xf32>
    %24 = vector.extract_strided_slice %18 {offsets = [0, 64], sizes = [64, 16], strides = [1, 1]} : vector<64x256xf32> to vector<64x16xf32>
    %25 = vector.extract_strided_slice %18 {offsets = [0, 112], sizes = [64, 16], strides = [1, 1]} : vector<64x256xf32> to vector<64x16xf32>
    %26 = vector.extract_strided_slice %18 {offsets = [0, 96], sizes = [64, 16], strides = [1, 1]} : vector<64x256xf32> to vector<64x16xf32>
    %27 = vector.extract_strided_slice %18 {offsets = [0, 144], sizes = [64, 16], strides = [1, 1]} : vector<64x256xf32> to vector<64x16xf32>
    %28 = vector.extract_strided_slice %18 {offsets = [0, 128], sizes = [64, 16], strides = [1, 1]} : vector<64x256xf32> to vector<64x16xf32>
    %29 = vector.extract_strided_slice %18 {offsets = [0, 176], sizes = [64, 16], strides = [1, 1]} : vector<64x256xf32> to vector<64x16xf32>
    %30 = vector.extract_strided_slice %18 {offsets = [0, 160], sizes = [64, 16], strides = [1, 1]} : vector<64x256xf32> to vector<64x16xf32>
    %31 = vector.extract_strided_slice %18 {offsets = [0, 208], sizes = [64, 16], strides = [1, 1]} : vector<64x256xf32> to vector<64x16xf32>
    %32 = vector.extract_strided_slice %18 {offsets = [0, 192], sizes = [64, 16], strides = [1, 1]} : vector<64x256xf32> to vector<64x16xf32>
    %33 = vector.extract_strided_slice %18 {offsets = [0, 240], sizes = [64, 16], strides = [1, 1]} : vector<64x256xf32> to vector<64x16xf32>
    %34 = vector.extract_strided_slice %18 {offsets = [0, 224], sizes = [64, 16], strides = [1, 1]} : vector<64x256xf32> to vector<64x16xf32>
    %35 = tpu.concatenate %19, %20, %21, %22, %23, %24, %25, %26, %27, %28, %29, %30, %31, %32, %33, %34 in 1 : vector<64x16xf32>, vector<64x16xf32>, vector<64x16xf32>, vector<64x16xf32>, vector<64x16xf32>, vector<64x16xf32>, vector<64x16xf32>, vector<64x16xf32>, vector<64x16xf32>, vector<64x16xf32>, vector<64x16xf32>, vector<64x16xf32>, vector<64x16xf32>, vector<64x16xf32>, vector<64x16xf32>, vector<64x16xf32> -> vector<64x256xf32>
    %c0_9 = arith.constant 0 : index
    %c0_10 = arith.constant 0 : index
    %36 = vector.load %arg8[%c0_9, %c0_10] : memref<64x256xf32, #tpu.memory_space<vmem>>, vector<64x256xf32>
    %37 = arith.mulf %18, %36 : vector<64x256xf32>
    %c0_11 = arith.constant 0 : index
    %c0_12 = arith.constant 0 : index
    %38 = vector.load %arg9[%c0_11, %c0_12] : memref<64x256xf32, #tpu.memory_space<vmem>>, vector<64x256xf32>
    %39 = arith.mulf %35, %38 : vector<64x256xf32>
    %40 = arith.addf %37, %39 : vector<64x256xf32>
    %41 = vector.extract_strided_slice %40 {offsets = [0, 0], sizes = [64, 128], strides = [1, 1]} : vector<64x256xf32> to vector<64x128xf32>
    %42 = vector.extract_strided_slice %40 {offsets = [0, 128], sizes = [64, 128], strides = [1, 1]} : vector<64x256xf32> to vector<64x128xf32>
    %43 = vector.extract_strided_slice %17 {offsets = [0, 256], sizes = [64, 128], strides = [1, 1]} : vector<64x384xf32> to vector<64x128xf32>
    %c0_13 = arith.constant 0 : index
    %c0_14 = arith.constant 0 : index
    %c0_15 = arith.constant 0 : index
    %44 = vector.load %arg11[%c0_13, %c0_14, %c0_15] : memref<1x64x128xf32, #tpu.memory_space<vmem>>, vector<1x64x128xf32>
    %45 = vector.shape_cast %44 : vector<1x64x128xf32> to vector<64x128xf32>
    %46 = vector.shape_cast %42 : vector<64x128xf32> to vector<1x64x128xf32>
    tpu.vector_store %arg11[%c0_13, %c0_14, %c0_15], %46 {strides = array<i32>} : memref<1x64x128xf32, #tpu.memory_space<vmem>>, vector<1x64x128xf32>,
    %c0_16 = arith.constant 0 : index
    %c0_17 = arith.constant 0 : index
    %c0_18 = arith.constant 0 : index
    %47 = vector.load %arg12[%c0_16, %c0_17, %c0_18] : memref<1x64x128xf32, #tpu.memory_space<vmem>>, vector<1x64x128xf32>
    %48 = vector.shape_cast %47 : vector<1x64x128xf32> to vector<64x128xf32>
    %49 = vector.shape_cast %43 : vector<64x128xf32> to vector<1x64x128xf32>
    tpu.vector_store %arg12[%c0_16, %c0_17, %c0_18], %49 {strides = array<i32>} : memref<1x64x128xf32, #tpu.memory_space<vmem>>, vector<1x64x128xf32>,
    %50 = arith.truncf %41 : vector<64x128xf32> to vector<64x128xbf16>
    %51 = arith.truncf %42 : vector<64x128xf32> to vector<64x128xbf16>
    %52 = arith.truncf %43 : vector<64x128xf32> to vector<64x128xbf16>
    %53 = tpu.iota {dimensions = array<i32: 0>} : vector<64x64xi32>
    %54 = tpu.iota {dimensions = array<i32: 1>} : vector<64x64xi32>
    %55 = arith.cmpi sle, %54, %53 : vector<64x64xi32>
    %56 = vector.extract_strided_slice %50 {offsets = [0, 0], sizes = [64, 32], strides = [1, 1]} : vector<64x128xbf16> to vector<64x32xbf16>
    %57 = vector.extract_strided_slice %51 {offsets = [0, 0], sizes = [64, 32], strides = [1, 1]} : vector<64x128xbf16> to vector<64x32xbf16>
    %cst_19 = arith.constant dense<0.000000e+00> : vector<64x64xf32>
    %58 = tpu.matmul %56, %57, %cst_19 {dimension_numbers = #tpu.dot_dimension_numbers<[1], [1], [0], [0], [0, 0, 1, 0], [], []>} : vector<64x32xbf16>, vector<64x32xbf16>, vector<64x64xf32> -> vector<64x64xf32>
    %cst_20 = arith.constant -1.000000e+30 : f32
    %59 = vector.broadcast %cst_20 : f32 to vector<64x64xf32>
    %60 = arith.select %55, %58, %59 : vector<64x64xi1>, vector<64x64xf32>
    %cst_21 = arith.constant dense<0xFF800000> : vector<64xf32>
    %61 = vector.multi_reduction <maximumf>, %60, %cst_21 [1] : vector<64x64xf32> to vector<64xf32>
    %62 = vector.shape_cast %61 : vector<64xf32> to vector<64x1xf32>
    %63 = vector.broadcast %62 : vector<64x1xf32> to vector<64x64xf32>
    %64 = arith.subf %60, %63 : vector<64x64xf32>
    %65 = math.exp %64 : vector<64x64xf32>
    %cst_22 = arith.constant dense<0.000000e+00> : vector<64xf32>
    %66 = vector.multi_reduction <add>, %65, %cst_22 [1] : vector<64x64xf32> to vector<64xf32>
    %67 = vector.shape_cast %66 : vector<64xf32> to vector<64x1xf32>
    %68 = arith.truncf %65 : vector<64x64xf32> to vector<64x64xbf16>
    %69 = vector.extract_strided_slice %52 {offsets = [0, 0], sizes = [64, 32], strides = [1, 1]} : vector<64x128xbf16> to vector<64x32xbf16>
    %cst_23 = arith.constant dense<0.000000e+00> : vector<64x32xf32>
    %70 = tpu.matmul %68, %69, %cst_23 {dimension_numbers = #tpu.dot_dimension_numbers<[1], [0], [0], [1], [0, 0, 1, 1], [], []>} : vector<64x64xbf16>, vector<64x32xbf16>, vector<64x32xf32> -> vector<64x32xf32>
    %71 = tpu.reciprocal %67 {approx = true} : vector<64x1xf32> -> vector<64x1xf32>
    %72 = vector.broadcast %71 : vector<64x1xf32> to vector<64x32xf32>
    %73 = arith.mulf %70, %72 : vector<64x32xf32>
    %c0_24 = arith.constant 0 : index
    %c0_25 = arith.constant 0 : index
    %74 = vector.load %arg13[%c0_24, %c0_25] : memref<64x128xf32, #tpu.memory_space<vmem>>, vector<64x32xf32>
    tpu.vector_store %arg13[%c0_24, %c0_25], %73 {strides = array<i32>} : memref<64x128xf32, #tpu.memory_space<vmem>>, vector<64x32xf32>,
    %75 = vector.extract_strided_slice %50 {offsets = [0, 32], sizes = [64, 32], strides = [1, 1]} : vector<64x128xbf16> to vector<64x32xbf16>
    %76 = vector.extract_strided_slice %51 {offsets = [0, 32], sizes = [64, 32], strides = [1, 1]} : vector<64x128xbf16> to vector<64x32xbf16>
    %cst_26 = arith.constant dense<0.000000e+00> : vector<64x64xf32>
    %77 = tpu.matmul %75, %76, %cst_26 {dimension_numbers = #tpu.dot_dimension_numbers<[1], [1], [0], [0], [0, 0, 1, 0], [], []>} : vector<64x32xbf16>, vector<64x32xbf16>, vector<64x64xf32> -> vector<64x64xf32>
    %cst_27 = arith.constant -1.000000e+30 : f32
    %78 = vector.broadcast %cst_27 : f32 to vector<64x64xf32>
    %79 = arith.select %55, %77, %78 : vector<64x64xi1>, vector<64x64xf32>
    %cst_28 = arith.constant dense<0xFF800000> : vector<64xf32>
    %80 = vector.multi_reduction <maximumf>, %79, %cst_28 [1] : vector<64x64xf32> to vector<64xf32>
    %81 = vector.shape_cast %80 : vector<64xf32> to vector<64x1xf32>
    %82 = vector.broadcast %81 : vector<64x1xf32> to vector<64x64xf32>
    %83 = arith.subf %79, %82 : vector<64x64xf32>
    %84 = math.exp %83 : vector<64x64xf32>
    %cst_29 = arith.constant dense<0.000000e+00> : vector<64xf32>
    %85 = vector.multi_reduction <add>, %84, %cst_29 [1] : vector<64x64xf32> to vector<64xf32>
    %86 = vector.shape_cast %85 : vector<64xf32> to vector<64x1xf32>
    %87 = arith.truncf %84 : vector<64x64xf32> to vector<64x64xbf16>
    %88 = vector.extract_strided_slice %52 {offsets = [0, 32], sizes = [64, 32], strides = [1, 1]} : vector<64x128xbf16> to vector<64x32xbf16>
    %cst_30 = arith.constant dense<0.000000e+00> : vector<64x32xf32>
    %89 = tpu.matmul %87, %88, %cst_30 {dimension_numbers = #tpu.dot_dimension_numbers<[1], [0], [0], [1], [0, 0, 1, 1], [], []>} : vector<64x64xbf16>, vector<64x32xbf16>, vector<64x32xf32> -> vector<64x32xf32>
    %90 = tpu.reciprocal %86 {approx = true} : vector<64x1xf32> -> vector<64x1xf32>
    %91 = vector.broadcast %90 : vector<64x1xf32> to vector<64x32xf32>
    %92 = arith.mulf %89, %91 : vector<64x32xf32>
    %c0_31 = arith.constant 0 : index
    %c32 = arith.constant 32 : index
    %93 = vector.load %arg13[%c0_31, %c32] : memref<64x128xf32, #tpu.memory_space<vmem>>, vector<64x32xf32>
    tpu.vector_store %arg13[%c0_31, %c32], %92 {strides = array<i32>} : memref<64x128xf32, #tpu.memory_space<vmem>>, vector<64x32xf32>,
    %94 = vector.extract_strided_slice %50 {offsets = [0, 64], sizes = [64, 32], strides = [1, 1]} : vector<64x128xbf16> to vector<64x32xbf16>
    %95 = vector.extract_strided_slice %51 {offsets = [0, 64], sizes = [64, 32], strides = [1, 1]} : vector<64x128xbf16> to vector<64x32xbf16>
    %cst_32 = arith.constant dense<0.000000e+00> : vector<64x64xf32>
    %96 = tpu.matmul %94, %95, %cst_32 {dimension_numbers = #tpu.dot_dimension_numbers<[1], [1], [0], [0], [0, 0, 1, 0], [], []>} : vector<64x32xbf16>, vector<64x32xbf16>, vector<64x64xf32> -> vector<64x64xf32>
    %cst_33 = arith.constant -1.000000e+30 : f32
    %97 = vector.broadcast %cst_33 : f32 to vector<64x64xf32>
    %98 = arith.select %55, %96, %97 : vector<64x64xi1>, vector<64x64xf32>
    %cst_34 = arith.constant dense<0xFF800000> : vector<64xf32>
    %99 = vector.multi_reduction <maximumf>, %98, %cst_34 [1] : vector<64x64xf32> to vector<64xf32>
    %100 = vector.shape_cast %99 : vector<64xf32> to vector<64x1xf32>
    %101 = vector.broadcast %100 : vector<64x1xf32> to vector<64x64xf32>
    %102 = arith.subf %98, %101 : vector<64x64xf32>
    %103 = math.exp %102 : vector<64x64xf32>
    %cst_35 = arith.constant dense<0.000000e+00> : vector<64xf32>
    %104 = vector.multi_reduction <add>, %103, %cst_35 [1] : vector<64x64xf32> to vector<64xf32>
    %105 = vector.shape_cast %104 : vector<64xf32> to vector<64x1xf32>
    %106 = arith.truncf %103 : vector<64x64xf32> to vector<64x64xbf16>
    %107 = vector.extract_strided_slice %52 {offsets = [0, 64], sizes = [64, 32], strides = [1, 1]} : vector<64x128xbf16> to vector<64x32xbf16>
    %cst_36 = arith.constant dense<0.000000e+00> : vector<64x32xf32>
    %108 = tpu.matmul %106, %107, %cst_36 {dimension_numbers = #tpu.dot_dimension_numbers<[1], [0], [0], [1], [0, 0, 1, 1], [], []>} : vector<64x64xbf16>, vector<64x32xbf16>, vector<64x32xf32> -> vector<64x32xf32>
    %109 = tpu.reciprocal %105 {approx = true} : vector<64x1xf32> -> vector<64x1xf32>
    %110 = vector.broadcast %109 : vector<64x1xf32> to vector<64x32xf32>
    %111 = arith.mulf %108, %110 : vector<64x32xf32>
    %c0_37 = arith.constant 0 : index
    %c64 = arith.constant 64 : index
    %112 = vector.load %arg13[%c0_37, %c64] : memref<64x128xf32, #tpu.memory_space<vmem>>, vector<64x32xf32>
    tpu.vector_store %arg13[%c0_37, %c64], %111 {strides = array<i32>} : memref<64x128xf32, #tpu.memory_space<vmem>>, vector<64x32xf32>,
    %113 = vector.extract_strided_slice %50 {offsets = [0, 96], sizes = [64, 32], strides = [1, 1]} : vector<64x128xbf16> to vector<64x32xbf16>
    %114 = vector.extract_strided_slice %51 {offsets = [0, 96], sizes = [64, 32], strides = [1, 1]} : vector<64x128xbf16> to vector<64x32xbf16>
    %cst_38 = arith.constant dense<0.000000e+00> : vector<64x64xf32>
    %115 = tpu.matmul %113, %114, %cst_38 {dimension_numbers = #tpu.dot_dimension_numbers<[1], [1], [0], [0], [0, 0, 1, 0], [], []>} : vector<64x32xbf16>, vector<64x32xbf16>, vector<64x64xf32> -> vector<64x64xf32>
    %cst_39 = arith.constant -1.000000e+30 : f32
    %116 = vector.broadcast %cst_39 : f32 to vector<64x64xf32>
    %117 = arith.select %55, %115, %116 : vector<64x64xi1>, vector<64x64xf32>
    %cst_40 = arith.constant dense<0xFF800000> : vector<64xf32>
    %118 = vector.multi_reduction <maximumf>, %117, %cst_40 [1] : vector<64x64xf32> to vector<64xf32>
    %119 = vector.shape_cast %118 : vector<64xf32> to vector<64x1xf32>
    %120 = vector.broadcast %119 : vector<64x1xf32> to vector<64x64xf32>
    %121 = arith.subf %117, %120 : vector<64x64xf32>
    %122 = math.exp %121 : vector<64x64xf32>
    %cst_41 = arith.constant dense<0.000000e+00> : vector<64xf32>
    %123 = vector.multi_reduction <add>, %122, %cst_41 [1] : vector<64x64xf32> to vector<64xf32>
    %124 = vector.shape_cast %123 : vector<64xf32> to vector<64x1xf32>
    %125 = arith.truncf %122 : vector<64x64xf32> to vector<64x64xbf16>
    %126 = vector.extract_strided_slice %52 {offsets = [0, 96], sizes = [64, 32], strides = [1, 1]} : vector<64x128xbf16> to vector<64x32xbf16>
    %cst_42 = arith.constant dense<0.000000e+00> : vector<64x32xf32>
    %127 = tpu.matmul %125, %126, %cst_42 {dimension_numbers = #tpu.dot_dimension_numbers<[1], [0], [0], [1], [0, 0, 1, 1], [], []>} : vector<64x64xbf16>, vector<64x32xbf16>, vector<64x32xf32> -> vector<64x32xf32>
    %128 = tpu.reciprocal %124 {approx = true} : vector<64x1xf32> -> vector<64x1xf32>
    %129 = vector.broadcast %128 : vector<64x1xf32> to vector<64x32xf32>
    %130 = arith.mulf %127, %129 : vector<64x32xf32>
    %c0_43 = arith.constant 0 : index
    %c96 = arith.constant 96 : index
    %131 = vector.load %arg13[%c0_43, %c96] : memref<64x128xf32, #tpu.memory_space<vmem>>, vector<64x32xf32>
    tpu.vector_store %arg13[%c0_43, %c96], %130 {strides = array<i32>} : memref<64x128xf32, #tpu.memory_space<vmem>>, vector<64x32xf32>,
    %c0_44 = arith.constant 0 : index
    %c0_45 = arith.constant 0 : index
    %132 = vector.load %arg13[%c0_44, %c0_45] : memref<64x128xf32, #tpu.memory_space<vmem>>, vector<64x128xf32>
    %133 = arith.truncf %132 : vector<64x128xf32> to vector<64x128xbf16>
    %c0_46 = arith.constant 0 : index
    %c0_47 = arith.constant 0 : index
    %134 = vector.load %arg3[%c0_46, %c0_47] : memref<128x128xbf16, #tpu.memory_space<vmem>>, vector<128x128xbf16>
    %cst_48 = arith.constant dense<0.000000e+00> : vector<64x128xf32>
    %135 = tpu.matmul %133, %134, %cst_48 {dimension_numbers = #tpu.dot_dimension_numbers<[1], [0], [0], [1], [0, 0, 1, 1], [], []>} : vector<64x128xbf16>, vector<128x128xbf16>, vector<64x128xf32> -> vector<64x128xf32>
    %136 = arith.addf %1, %135 : vector<64x128xf32>
    %137 = arith.mulf %136, %136 : vector<64x128xf32>
    %cst_49 = arith.constant dense<0.000000e+00> : vector<64xf32>
    %138 = vector.multi_reduction <add>, %137, %cst_49 [1] : vector<64x128xf32> to vector<64xf32>
    %139 = vector.shape_cast %138 : vector<64xf32> to vector<64x1xf32>
    %cst_50 = arith.constant 1.280000e+02 : f32
    %140 = vector.broadcast %cst_50 : f32 to vector<64x1xf32>
    %141 = arith.divf %139, %140 : vector<64x1xf32>
    %cst_51 = arith.constant 9.99999974E-6 : f32
    %142 = vector.broadcast %cst_51 : f32 to vector<64x1xf32>
    %143 = arith.addf %141, %142 : vector<64x1xf32>
    %144 = math.rsqrt %143 : vector<64x1xf32>
    %145 = vector.broadcast %144 : vector<64x1xf32> to vector<64x128xf32>
    %146 = arith.mulf %136, %145 : vector<64x128xf32>
    %c0_52 = arith.constant 0 : index
    %c0_53 = arith.constant 0 : index
    %147 = vector.load %arg7[%c0_52, %c0_53] : memref<1x128xf32, #tpu.memory_space<vmem>>, vector<1x128xf32>
    %148 = vector.broadcast %147 : vector<1x128xf32> to vector<64x128xf32>
    %149 = arith.mulf %146, %148 : vector<64x128xf32>
    %150 = arith.truncf %149 : vector<64x128xf32> to vector<64x128xbf16>
    %c0_54 = arith.constant 0 : index
    %c0_55 = arith.constant 0 : index
    %151 = vector.load %arg4[%c0_54, %c0_55] : memref<128x768xbf16, #tpu.memory_space<vmem>>, vector<128x768xbf16>
    %cst_56 = arith.constant dense<0.000000e+00> : vector<64x768xf32>
    %152 = tpu.matmul %150, %151, %cst_56 {dimension_numbers = #tpu.dot_dimension_numbers<[1], [0], [0], [1], [0, 0, 1, 1], [], []>} : vector<64x128xbf16>, vector<128x768xbf16>, vector<64x768xf32> -> vector<64x768xf32>
    %153 = vector.extract_strided_slice %152 {offsets = [0, 0], sizes = [64, 384], strides = [1, 1]} : vector<64x768xf32> to vector<64x384xf32>
    %154 = vector.extract_strided_slice %152 {offsets = [0, 384], sizes = [64, 384], strides = [1, 1]} : vector<64x768xf32> to vector<64x384xf32>
    %155 = arith.negf %153 : vector<64x384xf32>
    %156 = math.exp %155 : vector<64x384xf32>
    %cst_57 = arith.constant 1.000000e+00 : f32
    %157 = vector.broadcast %cst_57 : f32 to vector<64x384xf32>
    %158 = arith.addf %157, %156 : vector<64x384xf32>
    %159 = arith.divf %157, %158 : vector<64x384xf32>
    %160 = arith.mulf %153, %159 : vector<64x384xf32>
    %161 = arith.mulf %160, %154 : vector<64x384xf32>
    %162 = arith.truncf %161 : vector<64x384xf32> to vector<64x384xbf16>
    %c0_58 = arith.constant 0 : index
    %c0_59 = arith.constant 0 : index
    %163 = vector.load %arg5[%c0_58, %c0_59] : memref<384x128xbf16, #tpu.memory_space<vmem>>, vector<384x128xbf16>
    %cst_60 = arith.constant dense<0.000000e+00> : vector<64x128xf32>
    %164 = tpu.matmul %162, %163, %cst_60 {dimension_numbers = #tpu.dot_dimension_numbers<[1], [0], [0], [1], [0, 0, 1, 1], [], []>} : vector<64x384xbf16>, vector<384x128xbf16>, vector<64x128xf32> -> vector<64x128xf32>
    %165 = arith.addf %136, %164 : vector<64x128xf32>
    %c0_61 = arith.constant 0 : index
    %c0_62 = arith.constant 0 : index
    %c0_63 = arith.constant 0 : index
    %166 = vector.load %arg10[%c0_61, %c0_62, %c0_63] : memref<1x64x128xf32, #tpu.memory_space<vmem>>, vector<1x64x128xf32>
    %167 = vector.shape_cast %166 : vector<1x64x128xf32> to vector<64x128xf32>
    %168 = vector.shape_cast %165 : vector<64x128xf32> to vector<1x64x128xf32>
    tpu.vector_store %arg10[%c0_61, %c0_62, %c0_63], %168 {strides = array<i32>} : memref<1x64x128xf32, #tpu.memory_space<vmem>>, vector<1x64x128xf32>,
    return
  }
  func.func @transform_0(%arg0: i32) -> (i32, i32, i32) {
    %c0_i32 = arith.constant 0 : i32
    %c0_i32_0 = arith.constant 0 : i32
    %c0_i32_1 = arith.constant 0 : i32
    return %arg0, %c0_i32, %c0_i32_0 : i32, i32, i32
  }
  func.func @transform_1(%arg0: i32) -> (i32, i32) {
    %c0_i32 = arith.constant 0 : i32
    %c0_i32_0 = arith.constant 0 : i32
    %c0_i32_1 = arith.constant 0 : i32
    return %c0_i32, %c0_i32_0 : i32, i32
  }
  func.func @transform_2(%arg0: i32) -> (i32, i32) {
    %c0_i32 = arith.constant 0 : i32
    %c0_i32_0 = arith.constant 0 : i32
    %c0_i32_1 = arith.constant 0 : i32
    return %c0_i32, %c0_i32_0 : i32, i32
  }
  func.func @transform_3(%arg0: i32) -> (i32, i32) {
    %c0_i32 = arith.constant 0 : i32
    %c0_i32_0 = arith.constant 0 : i32
    %c0_i32_1 = arith.constant 0 : i32
    return %c0_i32, %c0_i32_0 : i32, i32
  }
  func.func @transform_4(%arg0: i32) -> (i32, i32) {
    %c0_i32 = arith.constant 0 : i32
    %c0_i32_0 = arith.constant 0 : i32
    %c0_i32_1 = arith.constant 0 : i32
    return %c0_i32, %c0_i32_0 : i32, i32
  }
  func.func @transform_5(%arg0: i32) -> (i32, i32) {
    %c0_i32 = arith.constant 0 : i32
    %c0_i32_0 = arith.constant 0 : i32
    %c0_i32_1 = arith.constant 0 : i32
    return %c0_i32, %c0_i32_0 : i32, i32
  }
  func.func @transform_6(%arg0: i32) -> (i32, i32) {
    %c0_i32 = arith.constant 0 : i32
    %c0_i32_0 = arith.constant 0 : i32
    %c0_i32_1 = arith.constant 0 : i32
    return %c0_i32, %c0_i32_0 : i32, i32
  }
  func.func @transform_7(%arg0: i32) -> (i32, i32) {
    %c0_i32 = arith.constant 0 : i32
    %c0_i32_0 = arith.constant 0 : i32
    %c0_i32_1 = arith.constant 0 : i32
    return %c0_i32, %c0_i32_0 : i32, i32
  }
  func.func @transform_8(%arg0: i32) -> (i32, i32) {
    %c0_i32 = arith.constant 0 : i32
    %c0_i32_0 = arith.constant 0 : i32
    %c0_i32_1 = arith.constant 0 : i32
    return %c0_i32, %c0_i32_0 : i32, i32
  }
  func.func @transform_9(%arg0: i32) -> (i32, i32, i32) {
    %c0_i32 = arith.constant 0 : i32
    %c0_i32_0 = arith.constant 0 : i32
    %c0_i32_1 = arith.constant 0 : i32
    return %arg0, %c0_i32, %c0_i32_0 : i32, i32, i32
  }
  func.func @transform_10(%arg0: i32) -> (i32, i32, i32) {
    %c0_i32 = arith.constant 0 : i32
    %c0_i32_0 = arith.constant 0 : i32
    %c0_i32_1 = arith.constant 0 : i32
    return %arg0, %c0_i32, %c0_i32_0 : i32, i32, i32
  }
  func.func @transform_11(%arg0: i32) -> (i32, i32, i32) {
    %c0_i32 = arith.constant 0 : i32
    %c0_i32_0 = arith.constant 0 : i32
    %c0_i32_1 = arith.constant 0 : i32
    return %arg0, %c0_i32, %c0_i32_0 : i32, i32, i32
  }
}

</mosaic_0001>

<llo_original>
// kernel: tpu_custom_call.1
$region0: #{tpu_custom_call.1}
  #allocation0 [shape = 'u32[]', space=smem, size = 0x4, offset = 0x4, fixed_abs, tag = 'smem constant byte address 0x4 - core index']
  #allocation1 [shape = 'u32[72,128]{1,0:T(1,128)}', space=vmem, size = 0x9000, scoped, tag = 'internal scratch']
  #allocation2 [shape = 'f32[64,128]{1,0:T(8,128)}', space=vmem, size = 0x8000, scoped, tag = 'scratch operand']
  %s0 = inlined_call_operand.hbm [shape: f32[2,64,128], index: 0, kind: input, shape index: {}]
  %s1 = inlined_call_operand.hbm [shape: bf16[128,384], index: 1, kind: input, shape index: {}]
  %s2 = inlined_call_operand.hbm [shape: bf16[128,128], index: 2, kind: input, shape index: {}]
  %s3 = inlined_call_operand.hbm [shape: bf16[128,768], index: 3, kind: input, shape index: {}]
  %s4 = inlined_call_operand.hbm [shape: bf16[384,128], index: 4, kind: input, shape index: {}]
  %s5 = inlined_call_operand.vmem [shape: f32[1,128], index: 5, kind: input, shape index: {}]
  %s6 = inlined_call_operand.vmem [shape: f32[1,128], index: 6, kind: input, shape index: {}]
  %s7 = inlined_call_operand.hbm [shape: f32[64,256], index: 7, kind: input, shape index: {}]
  %s8 = inlined_call_operand.hbm [shape: f32[64,256], index: 8, kind: input, shape index: {}]
  %s9 = inlined_call_operand.hbm [shape: f32[2,64,128], index: 9, kind: output, shape index: {0}]
  %s10 = inlined_call_operand.hbm [shape: f32[2,64,128], index: 10, kind: output, shape index: {1}]
  %s11 = inlined_call_operand.hbm [shape: f32[2,64,128], index: 11, kind: output, shape index: {2}]
  %12 = xla_tuple %s9, %s10, %s11
  %s13 = sld [smem:[#allocation0]]
  $region113: #{tpu_custom_call.1} parent=0
    _
  %s15 = ssub.s32 1, %s13
  %s16 = scalar_select 0, %s15, %s13
  $region1: #{tpu_custom_call.1} parent=0
    #allocation3 [shape = 'u8[65536]{0}', space=vmem, size = 0x10000, scoped, tag = 'input window, operand 0']
    #allocation4 [shape = 's32[2]{0}', space=sflag, size = 0x8, scoped, tag = 'scoped memory for tpu_custom_call.1']
    #allocation5 [shape = 's32[2]{0}', space=sflag, size = 0x8, scoped, tag = 'scoped memory for tpu_custom_call.1']
    #allocation6 [shape = 'u8[98304]{0}', space=vmem, size = 0x18000, scoped, tag = 'input window, operand 1, single buffered']
    #allocation7 [shape = 's32[1]{0}', space=sflag, size = 0x4, scoped, tag = 'scoped memory for tpu_custom_call.1']
    #allocation8 [shape = 'u8[32768]{0}', space=vmem, size = 0x8000, scoped, tag = 'input window, operand 2, single buffered']
    #allocation9 [shape = 'u8[196608]{0}', space=vmem, size = 0x30000, scoped, tag = 'input window, operand 3, single buffered']
    #allocation10 [shape = 's32[1]{0}', space=sflag, size = 0x4, scoped, tag = 'scoped memory for tpu_custom_call.1']
    #allocation11 [shape = 'u8[98304]{0}', space=vmem, size = 0x18000, scoped, tag = 'input window, operand 4, single buffered']
    #allocation12 [shape = 'u8[65536]{0}', space=vmem, size = 0x10000, scoped, tag = 'input window, operand 7, single buffered']
    #allocation13 [shape = 's32[1]{0}', space=sflag, size = 0x4, scoped, tag = 'scoped memory for tpu_custom_call.1']
    #allocation14 [shape = 'u8[65536]{0}', space=vmem, size = 0x10000, scoped, tag = 'input window, operand 8, single buffered']
    #allocation15 [shape = 'u8[65536]{0}', space=vmem, size = 0x10000, scoped, tag = 'output window, operand 0']
    #allocation16 [shape = 'u8[65536]{0}', space=vmem, size = 0x10000, scoped, tag = 'output window, operand 1']
    #allocation17 [shape = 's32[2]{0}', space=sflag, size = 0x8, scoped, tag = 'scoped memory for tpu_custom_call.1']
    #allocation18 [shape = 'u8[65536]{0}', space=vmem, size = 0x10000, scoped, tag = 'output window, operand 2']
    %17 = vsyncpa [#allocation4], 0
    %s18 = scalar_lea.sflag [#allocation4], 1
    %19 = vsyncpa %s18, 0
    %20 = vsyncpa [#allocation7], 0
    %21 = vsyncpa [#allocation10], 0
    %22 = vsyncpa [#allocation13], 0
    %23 = vsyncpa [#allocation5], 0
    %s24 = scalar_lea.sflag [#allocation5], 1
    %25 = vsyncpa %s24, 0
    %26 = vsyncpa [#allocation17], 0
    %s27 = scalar_lea.sflag [#allocation17], 1
    %28 = vsyncpa %s27, 0
    loop: start=0, step=1, limit=4
    $region2: #{tpu_custom_call.1} parent=1 // loop_pre_header
      _
    $region3: #{tpu_custom_call.1} parent=1 // loop_header
      %s30 = sphi 0, %s34
      %p31 = scmp.ge.s32.totalorder %s30, 4
      %s40 = sphi 0, %s42
      %s43 = sphi 0, %s40
      %s44 = sphi 0, %s43
      %s60 = sphi 0, %s44
      %s64 = sphi 0, %s64
      %s66 = sphi 0, %s64
      %s67 = sphi 0, %s66
      %s81 = sphi 0, %s67
      %s85 = sphi 0, %s85
      %s87 = sphi 0, %s85
      %s88 = sphi 0, %s87
      %s102 = sphi 0, %s88
      %s106 = sphi 0, %s106
      %s108 = sphi 0, %s106
      %s109 = sphi 0, %s108
      %s123 = sphi 0, %s109
      %s127 = sphi 0, %s127
      %s129 = sphi 0, %s127
      %s130 = sphi 0, %s129
      %s144 = sphi 0, %s130
      %s148 = sphi 0, %s148
      %s150 = sphi 0, %s148
      %s151 = sphi 0, %s150
      %s165 = sphi 0, %s151
      %s169 = sphi 0, %s169
      %s171 = sphi 0, %s169
      %s172 = sphi 0, %s171
      %s186 = sphi 0, %s172
      %s190 = sphi 0, %s190
      %s192 = sphi 0, %s190
      %s193 = sphi 0, %s192
      %s207 = sphi 0, %s193
      %s211 = sphi 0, %s211
      %s213 = sphi 0, %s211
      %s214 = sphi 0, %s213
      %s228 = sphi 0, %s214
      %s234 = sphi 0, %s236
      %s237 = sphi 0, %s234
      %s238 = sphi 0, %s237
      %s254 = sphi 0, %s238
      %s260 = sphi 0, %s262
      %s263 = sphi 0, %s260
      %s264 = sphi 0, %s263
      %s280 = sphi 0, %s264
      %s286 = sphi 0, %s288
      %s289 = sphi 0, %s286
      %s290 = sphi 0, %s289
      %s306 = sphi 0, %s290
    $region4: #{tpu_custom_call.1} parent=1 // loop_header_branch
      %33 = sbr.rel (%p31) target = $region8
    $region5: #{tpu_custom_call.1} parent=1 // loop_body
      %s35 = ssub.s32 %s30, 1
      %s36 = ssub.s32 %s30, 2
      %s37 = sadd.s32 %s30, 1
      %s38 = ssub.s32 %s30, %s37
      %p39 = scmp.eq.s32.totalorder %s38, 0
      %s41 = sadd.s32 %s40, 1
      %s42 = scalar_select %p39, %s40, %s41
      %p45 = pneg %p39
      %p46 = scmp.eq.s32.totalorder %s30, 1
      %p47 = por %p45, %p46
      %p48 = scmp.ne.s32.totalorder %s40, %s43
      %p49 = scmp.eq.s32.totalorder %s30, 0
      %p50 = por %p48, %p49
      %p51 = scmp.ne.s32.totalorder %s40, %s43
      %p52 = scmp.eq.s32.totalorder %s35, 1
      %p53 = por %p51, %p52
      %p54 = scmp.ne.s32.totalorder %s43, %s44
      %p55 = scmp.eq.s32.totalorder %s35, 0
      %p56 = por %p54, %p55
      %p57 = scmp.ne.s32.totalorder %s43, %s44
      %p58 = scmp.eq.s32.totalorder %s36, 1
      %p59 = por %p57, %p58
      %p61 = scmp.ne.s32.totalorder %s44, %s60
      %p62 = scmp.eq.s32.totalorder %s36, 0
      %p63 = por %p61, %p62
      %s65 = sadd.s32 %s64, 1
      %p68 = scmp.eq.s32.totalorder %s30, 1
      %p69 = scmp.ne.s32.totalorder %s64, %s66
      %p70 = scmp.eq.s32.totalorder %s30, 0
      %p71 = por %p69, %p70
      %p72 = scmp.ne.s32.totalorder %s64, %s66
      %p73 = scmp.eq.s32.totalorder %s35, 1
      %p74 = por %p72, %p73
      %p75 = scmp.ne.s32.totalorder %s66, %s67
      %p76 = scmp.eq.s32.totalorder %s35, 0
      %p77 = por %p75, %p76
      %p78 = scmp.ne.s32.totalorder %s66, %s67
      %p79 = scmp.eq.s32.totalorder %s36, 1
      %p80 = por %p78, %p79
      %p82 = scmp.ne.s32.totalorder %s67, %s81
      %p83 = scmp.eq.s32.totalorder %s36, 0
      %p84 = por %p82, %p83
      %s86 = sadd.s32 %s85, 1
      %p89 = scmp.eq.s32.totalorder %s30, 1
      %p90 = scmp.ne.s32.totalorder %s85, %s87
      %p91 = scmp.eq.s32.totalorder %s30, 0
      %p92 = por %p90, %p91
      %p93 = scmp.ne.s32.totalorder %s85, %s87
      %p94 = scmp.eq.s32.totalorder %s35, 1
      %p95 = por %p93, %p94
      %p96 = scmp.ne.s32.totalorder %s87, %s88
      %p97 = scmp.eq.s32.totalorder %s35, 0
      %p98 = por %p96, %p97
      %p99 = scmp.ne.s32.totalorder %s87, %s88
      %p100 = scmp.eq.s32.totalorder %s36, 1
      %p101 = por %p99, %p100
      %p103 = scmp.ne.s32.totalorder %s88, %s102
      %p104 = scmp.eq.s32.totalorder %s36, 0
      %p105 = por %p103, %p104
      %s107 = sadd.s32 %s106, 1
      %p110 = scmp.eq.s32.totalorder %s30, 1
      %p111 = scmp.ne.s32.totalorder %s106, %s108
      %p112 = scmp.eq.s32.totalorder %s30, 0
      %p113 = por %p111, %p112
      %p114 = scmp.ne.s32.totalorder %s106, %s108
      %p115 = scmp.eq.s32.totalorder %s35, 1
      %p116 = por %p114, %p115
      %p117 = scmp.ne.s32.totalorder %s108, %s109
      %p118 = scmp.eq.s32.totalorder %s35, 0
      %p119 = por %p117, %p118
      %p120 = scmp.ne.s32.totalorder %s108, %s109
      %p121 = scmp.eq.s32.totalorder %s36, 1
      %p122 = por %p120, %p121
      %p124 = scmp.ne.s32.totalorder %s109, %s123
      %p125 = scmp.eq.s32.totalorder %s36, 0
      %p126 = por %p124, %p125
      %s128 = sadd.s32 %s127, 1
      %p131 = scmp.eq.s32.totalorder %s30, 1
      %p132 = scmp.ne.s32.totalorder %s127, %s129
      %p133 = scmp.eq.s32.totalorder %s30, 0
      %p134 = por %p132, %p133
      %p135 = scmp.ne.s32.totalorder %s127, %s129
      %p136 = scmp.eq.s32.totalorder %s35, 1
      %p137 = por %p135, %p136
      %p138 = scmp.ne.s32.totalorder %s129, %s130
      %p139 = scmp.eq.s32.totalorder %s35, 0
      %p140 = por %p138, %p139
      %p141 = scmp.ne.s32.totalorder %s129, %s130
      %p142 = scmp.eq.s32.totalorder %s36, 1
      %p143 = por %p141, %p142
      %p145 = scmp.ne.s32.totalorder %s130, %s144
      %p146 = scmp.eq.s32.totalorder %s36, 0
      %p147 = por %p145, %p146
      %s149 = sadd.s32 %s148, 1
      %p152 = scmp.eq.s32.totalorder %s30, 1
      %p153 = scmp.ne.s32.totalorder %s148, %s150
      %p154 = scmp.eq.s32.totalorder %s30, 0
      %p155 = por %p153, %p154
      %p156 = scmp.ne.s32.totalorder %s148, %s150
      %p157 = scmp.eq.s32.totalorder %s35, 1
      %p158 = por %p156, %p157
      %p159 = scmp.ne.s32.totalorder %s150, %s151
      %p160 = scmp.eq.s32.totalorder %s35, 0
      %p161 = por %p159, %p160
      %p162 = scmp.ne.s32.totalorder %s150, %s151
      %p163 = scmp.eq.s32.totalorder %s36, 1
      %p164 = por %p162, %p163
      %p166 = scmp.ne.s32.totalorder %s151, %s165
      %p167 = scmp.eq.s32.totalorder %s36, 0
      %p168 = por %p166, %p167
      %s170 = sadd.s32 %s169, 1
      %p173 = scmp.eq.s32.totalorder %s30, 1
      %p174 = scmp.ne.s32.totalorder %s169, %s171
      %p175 = scmp.eq.s32.totalorder %s30, 0
      %p176 = por %p174, %p175
      %p177 = scmp.ne.s32.totalorder %s169, %s171
      %p178 = scmp.eq.s32.totalorder %s35, 1
      %p179 = por %p177, %p178
      %p180 = scmp.ne.s32.totalorder %s171, %s172
      %p181 = scmp.eq.s32.totalorder %s35, 0
      %p182 = por %p180, %p181
      %p183 = scmp.ne.s32.totalorder %s171, %s172
      %p184 = scmp.eq.s32.totalorder %s36, 1
      %p185 = por %p183, %p184
      %p187 = scmp.ne.s32.totalorder %s172, %s186
      %p188 = scmp.eq.s32.totalorder %s36, 0
      %p189 = por %p187, %p188
      %s191 = sadd.s32 %s190, 1
      %p194 = scmp.eq.s32.totalorder %s30, 1
      %p195 = scmp.ne.s32.totalorder %s190, %s192
      %p196 = scmp.eq.s32.totalorder %s30, 0
      %p197 = por %p195, %p196
      %p198 = scmp.ne.s32.totalorder %s190, %s192
      %p199 = scmp.eq.s32.totalorder %s35, 1
      %p200 = por %p198, %p199
      %p201 = scmp.ne.s32.totalorder %s192, %s193
      %p202 = scmp.eq.s32.totalorder %s35, 0
      %p203 = por %p201, %p202
      %p204 = scmp.ne.s32.totalorder %s192, %s193
      %p205 = scmp.eq.s32.totalorder %s36, 1
      %p206 = por %p204, %p205
      %p208 = scmp.ne.s32.totalorder %s193, %s207
      %p209 = scmp.eq.s32.totalorder %s36, 0
      %p210 = por %p208, %p209
      %s212 = sadd.s32 %s211, 1
      %p215 = scmp.eq.s32.totalorder %s30, 1
      %p216 = scmp.ne.s32.totalorder %s211, %s213
      %p217 = scmp.eq.s32.totalorder %s30, 0
      %p218 = por %p216, %p217
      %p219 = scmp.ne.s32.totalorder %s211, %s213
      %p220 = scmp.eq.s32.totalorder %s35, 1
      %p221 = por %p219, %p220
      %p222 = scmp.ne.s32.totalorder %s213, %s214
      %p223 = scmp.eq.s32.totalorder %s35, 0
      %p224 = por %p222, %p223
      %p225 = scmp.ne.s32.totalorder %s213, %s214
      %p226 = scmp.eq.s32.totalorder %s36, 1
      %p227 = por %p225, %p226
      %p229 = scmp.ne.s32.totalorder %s214, %s228
      %p230 = scmp.eq.s32.totalorder %s36, 0
      %p231 = por %p229, %p230
      %s232 = ssub.s32 %s30, %s37
      %p233 = scmp.eq.s32.totalorder %s232, 0
      %s235 = sadd.s32 %s234, 1
      %s236 = scalar_select %p233, %s234, %s235
      %p239 = pneg %p233
      %p240 = scmp.eq.s32.totalorder %s30, 1
      %p241 = por %p239, %p240
      %p242 = scmp.ne.s32.totalorder %s234, %s237
      %p243 = scmp.eq.s32.totalorder %s30, 0
      %p244 = por %p242, %p243
      %p245 = scmp.ne.s32.totalorder %s234, %s237
      %p246 = scmp.eq.s32.totalorder %s35, 1
      %p247 = por %p245, %p246
      %p248 = scmp.ne.s32.totalorder %s237, %s238
      %p249 = scmp.eq.s32.totalorder %s35, 0
      %p250 = por %p248, %p249
      %p251 = scmp.ne.s32.totalorder %s237, %s238
      %p252 = scmp.eq.s32.totalorder %s36, 1
      %p253 = por %p251, %p252
      %p255 = scmp.ne.s32.totalorder %s238, %s254
      %p256 = scmp.eq.s32.totalorder %s36, 0
      %p257 = por %p255, %p256
      %s258 = ssub.s32 %s30, %s37
      %p259 = scmp.eq.s32.totalorder %s258, 0
      %s261 = sadd.s32 %s260, 1
      %s262 = scalar_select %p259, %s260, %s261
      %p265 = pneg %p259
      %p266 = scmp.eq.s32.totalorder %s30, 1
      %p267 = por %p265, %p266
      %p268 = scmp.ne.s32.totalorder %s260, %s263
      %p269 = scmp.eq.s32.totalorder %s30, 0
      %p270 = por %p268, %p269
      %p271 = scmp.ne.s32.totalorder %s260, %s263
      %p272 = scmp.eq.s32.totalorder %s35, 1
      %p273 = por %p271, %p272
      %p274 = scmp.ne.s32.totalorder %s263, %s264
      %p275 = scmp.eq.s32.totalorder %s35, 0
      %p276 = por %p274, %p275
      %p277 = scmp.ne.s32.totalorder %s263, %s264
      %p278 = scmp.eq.s32.totalorder %s36, 1
      %p279 = por %p277, %p278
      %p281 = scmp.ne.s32.totalorder %s264, %s280
      %p282 = scmp.eq.s32.totalorder %s36, 0
      %p283 = por %p281, %p282
      %s284 = ssub.s32 %s30, %s37
      %p285 = scmp.eq.s32.totalorder %s284, 0
      %s287 = sadd.s32 %s286, 1
      %s288 = scalar_select %p285, %s286, %s287
      %p291 = pneg %p285
      %p292 = scmp.eq.s32.totalorder %s30, 1
      %p293 = por %p291, %p292
      %p294 = scmp.ne.s32.totalorder %s286, %s289
      %p295 = scmp.eq.s32.totalorder %s30, 0
      %p296 = por %p294, %p295
      %p297 = scmp.ne.s32.totalorder %s286, %s289
      %p298 = scmp.eq.s32.totalorder %s35, 1
      %p299 = por %p297, %p298
      %p300 = scmp.ne.s32.totalorder %s289, %s290
      %p301 = scmp.eq.s32.totalorder %s35, 0
      %p302 = por %p300, %p301
      %p303 = scmp.ne.s32.totalorder %s289, %s290
      %p304 = scmp.eq.s32.totalorder %s36, 1
      %p305 = por %p303, %p304
      %p307 = scmp.ne.s32.totalorder %s290, %s306
      %p308 = scmp.eq.s32.totalorder %s36, 0
      %p309 = por %p307, %p308
      %p310 = scmp.le.s32.totalorder 1, %s30
      %p311 = scmp.lt.s32.totalorder %s30, 3
      %p312 = pnand %p310, %p311
      %p313 = pneg %p312
      // Predicated region
      $region9: #{tpu_custom_call.1} parent=5 // pred_check
        _
      $region10: #{tpu_custom_call.1} parent=5 // pred_check_branch
        %315 = sbr.rel (%p312) target = $region12
      $region11: #{tpu_custom_call.1} parent=5 // pred_region
        %s316 = ssub.s32 %s30, 1
        // Predicated region
        $region13: #{tpu_custom_call.1} parent=11 // pred_check
          %p317 = pneg %p77
        $region14: #{tpu_custom_call.1} parent=11 // pred_check_branch
          %319 = sbr.rel (%p317) target = $region16
        $region15: #{tpu_custom_call.1} parent=11 // pred_region
          %321 = vsyncadd [#allocation7], 0
          %s322 = sshll.u32 %s1, 4
          %s323 = int_to_ptr.hbm [resolvable:$true] %s322
          %s324 = sshll.u32 [#allocation6], 4
          %s325 = int_to_ptr.vmem [resolvable:$true] %s324
          %330 = dma.hbm_to_vmem [thread:$0]  %s323, 3072, %s325, [#allocation7], 192, 192, 12
        $region16: #{tpu_custom_call.1} parent=11 // pred_fallthru
          _
        // Predicated region
        $region17: #{tpu_custom_call.1} parent=11 // pred_check
          %p331 = pneg %p98
        $region18: #{tpu_custom_call.1} parent=11 // pred_check_branch
          %333 = sbr.rel (%p331) target = $region20
        $region19: #{tpu_custom_call.1} parent=11 // pred_region
          %335 = vsyncadd [#allocation7], 0
          %s336 = sshll.u32 %s2, 4
          %s337 = int_to_ptr.hbm [resolvable:$true] %s336
          %s338 = sshll.u32 [#allocation8], 4
          %s339 = int_to_ptr.vmem [resolvable:$true] %s338
          %344 = dma.hbm_to_vmem [thread:$0]  %s337, 1024, %s339, [#allocation7], 64, 64, 4
        $region20: #{tpu_custom_call.1} parent=11 // pred_fallthru
          _
        // Predicated region
        $region21: #{tpu_custom_call.1} parent=11 // pred_check
          %p345 = pneg %p119
        $region22: #{tpu_custom_call.1} parent=11 // pred_check_branch
          %347 = sbr.rel (%p345) target = $region24
        $region23: #{tpu_custom_call.1} parent=11 // pred_region
          %349 = vsyncadd [#allocation10], 0
          %s350 = sshll.u32 %s3, 4
          %s351 = int_to_ptr.hbm [resolvable:$true] %s350
          %s352 = sshll.u32 [#allocation9], 4
          %s353 = int_to_ptr.vmem [resolvable:$true] %s352
          %358 = dma.hbm_to_vmem [thread:$0]  %s351, 6144, %s353, [#allocation10], 384, 384, 24
        $region24: #{tpu_custom_call.1} parent=11 // pred_fallthru
          _
        // Predicated region
        $region25: #{tpu_custom_call.1} parent=11 // pred_check
          %p359 = pneg %p140
        $region26: #{tpu_custom_call.1} parent=11 // pred_check_branch
          %361 = sbr.rel (%p359) target = $region28
        $region27: #{tpu_custom_call.1} parent=11 // pred_region
          %363 = vsyncadd [#allocation10], 0
          %s364 = sshll.u32 %s4, 4
          %s365 = int_to_ptr.hbm [resolvable:$true] %s364
          %s366 = sshll.u32 [#allocation11], 4
          %s367 = int_to_ptr.vmem [resolvable:$true] %s366
          %372 = dma.hbm_to_vmem [thread:$0]  %s365, 3072, %s367, [#allocation10], 64, 64, 4
        $region28: #{tpu_custom_call.1} parent=11 // pred_fallthru
          _
        // Predicated region
        $region29: #{tpu_custom_call.1} parent=11 // pred_check
          %p373 = pneg %p161
        $region30: #{tpu_custom_call.1} parent=11 // pred_check_branch
          %375 = sbr.rel (%p373) target = $region32
        $region31: #{tpu_custom_call.1} parent=11 // pred_region
          _
        $region32: #{tpu_custom_call.1} parent=11 // pred_fallthru
          _
        // Predicated region
        $region33: #{tpu_custom_call.1} parent=11 // pred_check
          %p376 = pneg %p182
        $region34: #{tpu_custom_call.1} parent=11 // pred_check_branch
          %378 = sbr.rel (%p376) target = $region36
        $region35: #{tpu_custom_call.1} parent=11 // pred_region
          _
        $region36: #{tpu_custom_call.1} parent=11 // pred_fallthru
          _
        // Predicated region
        $region37: #{tpu_custom_call.1} parent=11 // pred_check
          %p379 = pneg %p203
        $region38: #{tpu_custom_call.1} parent=11 // pred_check_branch
          %381 = sbr.rel (%p379) target = $region40
        $region39: #{tpu_custom_call.1} parent=11 // pred_region
          %383 = vsyncadd [#allocation13], 0
          %s384 = sshll.u32 %s7, 4
          %s385 = int_to_ptr.hbm [resolvable:$true] %s384
          %s386 = sshll.u32 [#allocation12], 4
          %s387 = int_to_ptr.vmem [resolvable:$true] %s386
          %392 = dma.hbm_to_vmem [thread:$0]  %s385, 2048, %s387, [#allocation13], 256, 256, 16
        $region40: #{tpu_custom_call.1} parent=11 // pred_fallthru
          _
        // Predicated region
        $region41: #{tpu_custom_call.1} parent=11 // pred_check
          %p393 = pneg %p224
        $region42: #{tpu_custom_call.1} parent=11 // pred_check_branch
          %395 = sbr.rel (%p393) target = $region44
        $region43: #{tpu_custom_call.1} parent=11 // pred_region
          %397 = vsyncadd [#allocation13], 0
          %s398 = sshll.u32 %s8, 4
          %s399 = int_to_ptr.hbm [resolvable:$true] %s398
          %s400 = sshll.u32 [#allocation14], 4
          %s401 = int_to_ptr.vmem [resolvable:$true] %s400
          %406 = dma.hbm_to_vmem [thread:$0]  %s399, 2048, %s401, [#allocation13], 256, 256, 16
        $region44: #{tpu_custom_call.1} parent=11 // pred_fallthru
          _
      $region12: #{tpu_custom_call.1} parent=5 // pred_fallthru
        _
      %p407 = scmp.lt.s32.totalorder %s30, 2
      // Predicated region
      $region45: #{tpu_custom_call.1} parent=5 // pred_check
        %p408 = pneg %p407
      $region46: #{tpu_custom_call.1} parent=5 // pred_check_branch
        %410 = sbr.rel (%p408) target = $region48
      $region47: #{tpu_custom_call.1} parent=5 // pred_region
        // Predicated region
        $region49: #{tpu_custom_call.1} parent=47 // pred_check
          %p411 = pneg %p50
        $region50: #{tpu_custom_call.1} parent=47 // pred_check_branch
          %413 = sbr.rel (%p411) target = $region52
        $region51: #{tpu_custom_call.1} parent=47 // pred_region
          %s414 = sand.u32 %s40, 1
          %s415 = scalar_lea.sflag [#allocation4], %s414
          %s416 = sand.u32 %s40, 1
          %s417 = smul.addr %s416, 64
          %s418 = scalar_lea.vmem [#allocation3], %s417
          %420 = vsyncadd %s415, 0
          %s421 = smul.addr %s30, 8
          %s422 = smul.addr %s421, 8
          %s423 = scalar_lea.hbm %s0, %s422
          %s424 = sshll.u32 %s423, 4
          %s425 = int_to_ptr.hbm [resolvable:$true] %s424
          %s426 = sshll.u32 %s418, 4
          %s427 = int_to_ptr.vmem [resolvable:$true] %s426
          %432 = dma.hbm_to_vmem [thread:$0]  %s425, 1024, %s427, %s415, 128, 128, 8
        $region52: #{tpu_custom_call.1} parent=47 // pred_fallthru
          _
      $region48: #{tpu_custom_call.1} parent=5 // pred_fallthru
        _
      %p433 = scmp.le.s32.totalorder 1, %s30
      %p434 = scmp.lt.s32.totalorder %s30, 3
      %p435 = pnand %p433, %p434
      %p436 = pneg %p435
      // Predicated region
      $region53: #{tpu_custom_call.1} parent=5 // pred_check
        _
      $region54: #{tpu_custom_call.1} parent=5 // pred_check_branch
        %438 = sbr.rel (%p435) target = $region56
      $region55: #{tpu_custom_call.1} parent=5 // pred_region
        %s439 = ssub.s32 %s30, 1
        %s440 = sand.u32 %s43, 1
        %s441 = scalar_lea.sflag [#allocation4], %s440
        %s442 = sand.u32 %s43, 1
        %s443 = smul.addr %s442, 64
        %s444 = scalar_lea.vmem [#allocation3], %s443
        // Predicated region
        $region57: #{tpu_custom_call.1} parent=55 // pred_check
          %p445 = pneg %p56
        $region58: #{tpu_custom_call.1} parent=55 // pred_check_branch
          %447 = sbr.rel (%p445) target = $region60
        $region59: #{tpu_custom_call.1} parent=55 // pred_region
          %449 = dma.done %s441, 1024
        $region60: #{tpu_custom_call.1} parent=55 // pred_fallthru
          _
        // Predicated region
        $region61: #{tpu_custom_call.1} parent=55 // pred_check
          %p450 = pneg %p77
        $region62: #{tpu_custom_call.1} parent=55 // pred_check_branch
          %452 = sbr.rel (%p450) target = $region64
        $region63: #{tpu_custom_call.1} parent=55 // pred_region
          %454 = dma.done [#allocation7], 3072
        $region64: #{tpu_custom_call.1} parent=55 // pred_fallthru
          _
        // Predicated region
        $region65: #{tpu_custom_call.1} parent=55 // pred_check
          %p455 = pneg %p98
        $region66: #{tpu_custom_call.1} parent=55 // pred_check_branch
          %457 = sbr.rel (%p455) target = $region68
        $region67: #{tpu_custom_call.1} parent=55 // pred_region
          %459 = dma.done [#allocation7], 1024
        $region68: #{tpu_custom_call.1} parent=55 // pred_fallthru
          _
        // Predicated region
        $region69: #{tpu_custom_call.1} parent=55 // pred_check
          %p460 = pneg %p119
        $region70: #{tpu_custom_call.1} parent=55 // pred_check_branch
          %462 = sbr.rel (%p460) target = $region72
        $region71: #{tpu_custom_call.1} parent=55 // pred_region
          %464 = dma.done [#allocation10], 6144
        $region72: #{tpu_custom_call.1} parent=55 // pred_fallthru
          _
        // Predicated region
        $region73: #{tpu_custom_call.1} parent=55 // pred_check
          %p465 = pneg %p140
        $region74: #{tpu_custom_call.1} parent=55 // pred_check_branch
          %467 = sbr.rel (%p465) target = $region76
        $region75: #{tpu_custom_call.1} parent=55 // pred_region
          %469 = dma.done [#allocation10], 3072
        $region76: #{tpu_custom_call.1} parent=55 // pred_fallthru
          _
        // Predicated region
        $region77: #{tpu_custom_call.1} parent=55 // pred_check
          %p470 = pneg %p203
        $region78: #{tpu_custom_call.1} parent=55 // pred_check_branch
          %472 = sbr.rel (%p470) target = $region80
        $region79: #{tpu_custom_call.1} parent=55 // pred_region
          %474 = dma.done [#allocation13], 2048
        $region80: #{tpu_custom_call.1} parent=55 // pred_fallthru
          _
        // Predicated region
        $region81: #{tpu_custom_call.1} parent=55 // pred_check
          %p475 = pneg %p224
        $region82: #{tpu_custom_call.1} parent=55 // pred_check_branch
          %477 = sbr.rel (%p475) target = $region84
        $region83: #{tpu_custom_call.1} parent=55 // pred_region
          %479 = dma.done [#allocation13], 2048
        $region84: #{tpu_custom_call.1} parent=55 // pred_fallthru
          _
        %s480 = sand.u32 %s43, 1
        %s481 = scalar_lea.sflag [#allocation4], %s480
        %s482 = sand.u32 %s43, 1
        %s483 = smul.addr %s482, 64
        %s484 = scalar_lea.vmem [#allocation3], %s483
        %p485 = pneg %p56
        %p486 = pneg %p53
        %p487 = pneg %p77
        %p488 = pneg %p74
        %p489 = pneg %p98
        %p490 = pneg %p95
        %p491 = pneg %p119
        %p492 = pneg %p116
        %p493 = pneg %p140
        %p494 = pneg %p137
        %p495 = pneg %p161
        %p496 = pneg %p158
        %p497 = pneg %p182
        %p498 = pneg %p179
        %p499 = pneg %p203
        %p500 = pneg %p200
        %p501 = pneg %p224
        %p502 = pneg %p221
        %p503 = pneg %p250
        %p504 = pneg %p247
        %s505 = sand.u32 %s237, 1
        %s506 = scalar_lea.sflag [#allocation5], %s505
        %s507 = sand.u32 %s237, 1
        %s508 = smul.addr %s507, 64
        %s509 = scalar_lea.vmem [#allocation15], %s508
        %p510 = pneg %p276
        %p511 = pneg %p273
        %s512 = sand.u32 %s35, 1
        %s513 = scalar_lea.sflag [#allocation17], %s512
        %s514 = sand.u32 %s263, 1
        %s515 = smul.addr %s514, 64
        %s516 = scalar_lea.vmem [#allocation16], %s515
        %p517 = pneg %p302
        %p518 = pneg %p299
        %s519 = sand.u32 %s35, 1
        %s520 = scalar_lea.sflag [#allocation17], %s519
        %s521 = sand.u32 %s289, 1
        %s522 = smul.addr %s521, 64
        %s523 = scalar_lea.vmem [#allocation18], %s522
        %v525 = vld [vmem:[%s444] sm:$0xff]
        %v526 = vld [vmem:[%s444 + $0x8] sm:$0xff]
        %v527 = vld [vmem:[%s444 + $0x10] sm:$0xff]
        %v528 = vld [vmem:[%s444 + $0x18] sm:$0xff]
        %v529 = vld [vmem:[%s444 + $0x20] sm:$0xff]
        %v530 = vld [vmem:[%s444 + $0x28] sm:$0xff]
        %v531 = vld [vmem:[%s444 + $0x30] sm:$0xff]
        %v532 = vld [vmem:[%s444 + $0x38] sm:$0xff]
        %v533 = vmul.f32 %v525, %v525
        %v534 = vmul.f32 %v526, %v526
        %v535 = vmul.f32 %v527, %v527
        %v536 = vmul.f32 %v528, %v528
        %v537 = vmul.f32 %v529, %v529
        %v538 = vmul.f32 %v530, %v530
        %v539 = vmul.f32 %v531, %v531
        %v540 = vmul.f32 %v532, %v532
        %541 = vadd.xlane.f32.xlu0 %v533
        %v542 = vpop.xlane.xlu0 %541
        %543 = vadd.xlane.f32.xlu0 %v534
        %v544 = vpop.xlane.xlu0 %543
        %545 = vadd.xlane.f32.xlu0 %v535
        %v546 = vpop.xlane.xlu0 %545
        %547 = vadd.xlane.f32.xlu0 %v536
        %v548 = vpop.xlane.xlu0 %547
        %549 = vadd.xlane.f32.xlu0 %v537
        %v550 = vpop.xlane.xlu0 %549
        %551 = vadd.xlane.f32.xlu0 %v538
        %v552 = vpop.xlane.xlu0 %551
        %553 = vadd.xlane.f32.xlu0 %v539
        %v554 = vpop.xlane.xlu0 %553
        %555 = vadd.xlane.f32.xlu0 %v540
        %v556 = vpop.xlane.xlu0 %555
        %v557 = vrcp.pop 128.0
        %v558 = vmul.f32 128.0, %v557
        %v559 = vsub.f32 1.0, %v558
        %v560 = vmul.f32 %v557, %v559
        %v561 = vadd.f32 %v557, %v560
        %vm562 = vweird.f32 %v557
        %v563 = vsel %vm562, %v557, %v561
        %v564 = vmul.f32 %v542, %v563
        %v565 = vmul.f32 %v544, %v563
        %v566 = vmul.f32 %v546, %v563
        %v567 = vmul.f32 %v548, %v563
        %v568 = vmul.f32 %v550, %v563
        %v569 = vmul.f32 %v552, %v563
        %v570 = vmul.f32 %v554, %v563
        %v571 = vmul.f32 %v556, %v563
        %v572 = vadd.f32 %v564, 1e-05
        %v573 = vadd.f32 %v565, 1e-05
        %v574 = vadd.f32 %v566, 1e-05
        %v575 = vadd.f32 %v567, 1e-05
        %v576 = vadd.f32 %v568, 1e-05
        %v577 = vadd.f32 %v569, 1e-05
        %v578 = vadd.f32 %v570, 1e-05
        %v579 = vadd.f32 %v571, 1e-05
        %v580 = vrsqrt.pop %v572
        %v581 = vmul.f32 %v580, %v572
        %v582 = vmul.f32 %v581, %v580
        %v583 = vmul.f32 0.5, %v582
        %v584 = vsub.f32 1.5, %v583
        %v585 = vmul.f32 %v580, %v584
        %vm586 = vweird.f32 %v572
        %vm587 = vweird.f32 %v580
        %vm588 = vmor %vm586, %vm587
        %v589 = vsel %vm588, %v580, %v585
        %v590 = vrsqrt.pop %v573
        %v591 = vmul.f32 %v590, %v573
        %v592 = vmul.f32 %v591, %v590
        %v593 = vmul.f32 0.5, %v592
        %v594 = vsub.f32 1.5, %v593
        %v595 = vmul.f32 %v590, %v594
        %vm596 = vweird.f32 %v573
        %vm597 = vweird.f32 %v590
        %vm598 = vmor %vm596, %vm597
        %v599 = vsel %vm598, %v590, %v595
        %v600 = vrsqrt.pop %v574
        %v601 = vmul.f32 %v600, %v574
        %v602 = vmul.f32 %v601, %v600
        %v603 = vmul.f32 0.5, %v602
        %v604 = vsub.f32 1.5, %v603
        %v605 = vmul.f32 %v600, %v604
        %vm606 = vweird.f32 %v574
        %vm607 = vweird.f32 %v600
        %vm608 = vmor %vm606, %vm607
        %v609 = vsel %vm608, %v600, %v605
        %v610 = vrsqrt.pop %v575
        %v611 = vmul.f32 %v610, %v575
        %v612 = vmul.f32 %v611, %v610
        %v613 = vmul.f32 0.5, %v612
        %v614 = vsub.f32 1.5, %v613
        %v615 = vmul.f32 %v610, %v614
        %vm616 = vweird.f32 %v575
        %vm617 = vweird.f32 %v610
        %vm618 = vmor %vm616, %vm617
        %v619 = vsel %vm618, %v610, %v615
        %v620 = vrsqrt.pop %v576
        %v621 = vmul.f32 %v620, %v576
        %v622 = vmul.f32 %v621, %v620
        %v623 = vmul.f32 0.5, %v622
        %v624 = vsub.f32 1.5, %v623
        %v625 = vmul.f32 %v620, %v624
        %vm626 = vweird.f32 %v576
        %vm627 = vweird.f32 %v620
        %vm628 = vmor %vm626, %vm627
        %v629 = vsel %vm628, %v620, %v625
        %v630 = vrsqrt.pop %v577
        %v631 = vmul.f32 %v630, %v577
        %v632 = vmul.f32 %v631, %v630
        %v633 = vmul.f32 0.5, %v632
        %v634 = vsub.f32 1.5, %v633
        %v635 = vmul.f32 %v630, %v634
        %vm636 = vweird.f32 %v577
        %vm637 = vweird.f32 %v630
        %vm638 = vmor %vm636, %vm637
        %v639 = vsel %vm638, %v630, %v635
        %v640 = vrsqrt.pop %v578
        %v641 = vmul.f32 %v640, %v578
        %v642 = vmul.f32 %v641, %v640
        %v643 = vmul.f32 0.5, %v642
        %v644 = vsub.f32 1.5, %v643
        %v645 = vmul.f32 %v640, %v644
        %vm646 = vweird.f32 %v578
        %vm647 = vweird.f32 %v640
        %vm648 = vmor %vm646, %vm647
        %v649 = vsel %vm648, %v640, %v645
        %v650 = vrsqrt.pop %v579
        %v651 = vmul.f32 %v650, %v579
        %v652 = vmul.f32 %v651, %v650
        %v653 = vmul.f32 0.5, %v652
        %v654 = vsub.f32 1.5, %v653
        %v655 = vmul.f32 %v650, %v654
        %vm656 = vweird.f32 %v579
        %vm657 = vweird.f32 %v650
        %vm658 = vmor %vm656, %vm657
        %v659 = vsel %vm658, %v650, %v655
        %v660 = vmul.f32 %v525, %v589
        %v661 = vmul.f32 %v526, %v599
        %v662 = vmul.f32 %v527, %v609
        %v663 = vmul.f32 %v528, %v619
        %v664 = vmul.f32 %v529, %v629
        %v665 = vmul.f32 %v530, %v639
        %v666 = vmul.f32 %v531, %v649
        %v667 = vmul.f32 %v532, %v659
        %v668 = vld [vmem:[%s5] sm:$0x1]
        %v670 = vperm.slane %v668, 0
        %v672 = vmul.f32 %v660, %v670
        %v673 = vmul.f32 %v661, %v670
        %v674 = vmul.f32 %v662, %v670
        %v675 = vmul.f32 %v663, %v670
        %v676 = vmul.f32 %v664, %v670
        %v677 = vmul.f32 %v665, %v670
        %v678 = vmul.f32 %v666, %v670
        %v679 = vmul.f32 %v667, %v670
        %v680 = vpack.c.bf16 %v673, %v672
        %v681 = vpack.c.bf16 %v675, %v674
        %v682 = vpack.c.bf16 %v677, %v676
        %v683 = vpack.c.bf16 %v679, %v678
        %v684 = vld [vmem:[#allocation6] sm:$0xff]
        %v685 = vld [vmem:[#allocation6 + $0x8] sm:$0xf]
        %v686 = vld [vmem:[#allocation6 + $0xc] sm:$0xff]
        %v687 = vld [vmem:[#allocation6 + $0x14] sm:$0xf]
        %v688 = vld [vmem:[#allocation6 + $0x18] sm:$0xff]
        %v689 = vld [vmem:[#allocation6 + $0x20] sm:$0xf]
        %v690 = vld [vmem:[#allocation6 + $0x24] sm:$0xff]
        %v691 = vld [vmem:[#allocation6 + $0x2c] sm:$0xf]
        %v692 = vld [vmem:[#allocation6 + $0x30] sm:$0xff]
        %v693 = vld [vmem:[#allocation6 + $0x38] sm:$0xf]
        %v694 = vld [vmem:[#allocation6 + $0x3c] sm:$0xff]
        %v695 = vld [vmem:[#allocation6 + $0x44] sm:$0xf]
        %v696 = vld [vmem:[#allocation6 + $0x48] sm:$0xff]
        %v697 = vld [vmem:[#allocation6 + $0x50] sm:$0xf]
        %v698 = vld [vmem:[#allocation6 + $0x54] sm:$0xff]
        %v699 = vld [vmem:[#allocation6 + $0x5c] sm:$0xf]
        %v700 = vld [vmem:[#allocation6 + $0x60] sm:$0xff]
        %v701 = vld [vmem:[#allocation6 + $0x68] sm:$0xf]
        %v702 = vld [vmem:[#allocation6 + $0x6c] sm:$0xff]
        %v703 = vld [vmem:[#allocation6 + $0x74] sm:$0xf]
        %v704 = vld [vmem:[#allocation6 + $0x78] sm:$0xff]
        %v705 = vld [vmem:[#allocation6 + $0x80] sm:$0xf]
        %v706 = vld [vmem:[#allocation6 + $0x84] sm:$0xff]
        %v707 = vld [vmem:[#allocation6 + $0x8c] sm:$0xf]
        %v708 = vld [vmem:[#allocation6 + $0x90] sm:$0xff]
        %v709 = vld [vmem:[#allocation6 + $0x98] sm:$0xf]
        %v710 = vld [vmem:[#allocation6 + $0x9c] sm:$0xff]
        %v711 = vld [vmem:[#allocation6 + $0xa4] sm:$0xf]
        %v712 = vld [vmem:[#allocation6 + $0xa8] sm:$0xff]
        %v713 = vld [vmem:[#allocation6 + $0xb0] sm:$0xf]
        %v714 = vld [vmem:[#allocation6 + $0xb4] sm:$0xff]
        %v715 = vld [vmem:[#allocation6 + $0xbc] sm:$0xf]
        %v748 = vunpack.c.l.b16 %v684
        %v749 = vunpack.c.h.b16 %v684
        %v750 = vunpack.c.l.b16 %v685
        %v751 = vunpack.c.l.b16 %v686
        %v752 = vunpack.c.h.b16 %v686
        %v753 = vunpack.c.l.b16 %v687
        %v754 = vunpack.c.l.b16 %v688
        %v755 = vunpack.c.h.b16 %v688
        %v756 = vunpack.c.l.b16 %v689
        %v757 = vunpack.c.l.b16 %v690
        %v758 = vunpack.c.h.b16 %v690
        %v759 = vunpack.c.l.b16 %v691
        %v760 = vunpack.c.l.b16 %v692
        %v761 = vunpack.c.h.b16 %v692
        %v762 = vunpack.c.l.b16 %v693
        %v763 = vunpack.c.l.b16 %v694
        %v764 = vunpack.c.h.b16 %v694
        %v765 = vunpack.c.l.b16 %v695
        %v766 = vunpack.c.l.b16 %v696
        %v767 = vunpack.c.h.b16 %v696
        %v768 = vunpack.c.l.b16 %v697
        %v769 = vunpack.c.l.b16 %v698
        %v770 = vunpack.c.h.b16 %v698
        %v771 = vunpack.c.l.b16 %v699
        %v772 = vunpack.c.l.b16 %v700
        %v773 = vunpack.c.h.b16 %v700
        %v774 = vunpack.c.l.b16 %v701
        %v775 = vunpack.c.l.b16 %v702
        %v776 = vunpack.c.h.b16 %v702
        %v777 = vunpack.c.l.b16 %v703
        %v778 = vunpack.c.l.b16 %v704
        %v779 = vunpack.c.h.b16 %v704
        %v780 = vunpack.c.l.b16 %v705
        %v781 = vunpack.c.l.b16 %v706
        %v782 = vunpack.c.h.b16 %v706
        %v783 = vunpack.c.l.b16 %v707
        %v784 = vunpack.c.l.b16 %v708
        %v785 = vunpack.c.h.b16 %v708
        %v786 = vunpack.c.l.b16 %v709
        %v787 = vunpack.c.l.b16 %v710
        %v788 = vunpack.c.h.b16 %v710
        %v789 = vunpack.c.l.b16 %v711
        %v790 = vunpack.c.l.b16 %v712
        %v791 = vunpack.c.h.b16 %v712
        %v792 = vunpack.c.l.b16 %v713
        %v793 = vunpack.c.l.b16 %v714
        %v794 = vunpack.c.h.b16 %v714
        %v795 = vunpack.c.l.b16 %v715
        %v796 = vpack.c.b16 %v751, %v748
        %v797 = vpack.c.b16 %v752, %v749
        %v798 = vpack.c.b16 %v753, %v750
        %v799 = vpack.c.b16 %v757, %v754
        %v800 = vpack.c.b16 %v758, %v755
        %v801 = vpack.c.b16 %v759, %v756
        %v802 = vpack.c.b16 %v763, %v760
        %v803 = vpack.c.b16 %v764, %v761
        %v804 = vpack.c.b16 %v765, %v762
        %v805 = vpack.c.b16 %v769, %v766
        %v806 = vpack.c.b16 %v770, %v767
        %v807 = vpack.c.b16 %v771, %v768
        %v808 = vpack.c.b16 %v775, %v772
        %v809 = vpack.c.b16 %v776, %v773
        %v810 = vpack.c.b16 %v777, %v774
        %v811 = vpack.c.b16 %v781, %v778
        %v812 = vpack.c.b16 %v782, %v779
        %v813 = vpack.c.b16 %v783, %v780
        %v814 = vpack.c.b16 %v787, %v784
        %v815 = vpack.c.b16 %v788, %v785
        %v816 = vpack.c.b16 %v789, %v786
        %v817 = vpack.c.b16 %v793, %v790
        %v818 = vpack.c.b16 %v794, %v791
        %v819 = vpack.c.b16 %v795, %v792
        %844 = vmatpush.bf16.msra.mxu0 %v817
        %845 = vmatpush.bf16.msra.mxu0 %v814
        %846 = vmatpush.bf16.msra.mxu0 %v811
        %847 = vmatpush.bf16.msra.mxu0 %v808
        %848 = vmatpush.bf16.msra.mxu0 %v805
        %849 = vmatpush.bf16.msra.mxu0 %v802
        %850 = vmatpush.bf16.msra.mxu0 %v799
        %851 = vmatpush.bf16.msra.mxu0 %v796
        %852 = vmatmul.bf16.gmra.mxu0 %v680
        %v853 = vpop.f32.mrf.mxu0
        %v854 = vadd.f32 0.0, %v853
        %v855 = vpop.f32.mrf.mxu0
        %v856 = vadd.f32 0.0, %v855
        %857 = vmatmul.bf16.gmra.mxu0 %v681
        %v858 = vpop.f32.mrf.mxu0
        %v859 = vadd.f32 0.0, %v858
        %v860 = vpop.f32.mrf.mxu0
        %v861 = vadd.f32 0.0, %v860
        %862 = vmatmul.bf16.gmra.mxu0 %v682
        %v863 = vpop.f32.mrf.mxu0
        %v864 = vadd.f32 0.0, %v863
        %v865 = vpop.f32.mrf.mxu0
        %v866 = vadd.f32 0.0, %v865
        %867 = vmatmul.bf16.gmra.mxu0 %v683
        %v868 = vpop.f32.mrf.mxu0
        %v869 = vadd.f32 0.0, %v868
        %v870 = vpop.f32.mrf.mxu0
        %v871 = vadd.f32 0.0, %v870
        %872 = vdwg.mxu0
        %873 = vmatpush.bf16.msra.mxu0 %v818
        %874 = vmatpush.bf16.msra.mxu0 %v815
        %875 = vmatpush.bf16.msra.mxu0 %v812
        %876 = vmatpush.bf16.msra.mxu0 %v809
        %877 = vmatpush.bf16.msra.mxu0 %v806
        %878 = vmatpush.bf16.msra.mxu0 %v803
        %879 = vmatpush.bf16.msra.mxu0 %v800
        %880 = vmatpush.bf16.msra.mxu0 %v797
        %881 = vmatmul.bf16.gmra.mxu0 %v680
        %v882 = vpop.f32.mrf.mxu0
        %v883 = vadd.f32 0.0, %v882
        %v884 = vpop.f32.mrf.mxu0
        %v885 = vadd.f32 0.0, %v884
        %886 = vmatmul.bf16.gmra.mxu0 %v681
        %v887 = vpop.f32.mrf.mxu0
        %v888 = vadd.f32 0.0, %v887
        %v889 = vpop.f32.mrf.mxu0
        %v890 = vadd.f32 0.0, %v889
        %891 = vmatmul.bf16.gmra.mxu0 %v682
        %v892 = vpop.f32.mrf.mxu0
        %v893 = vadd.f32 0.0, %v892
        %v894 = vpop.f32.mrf.mxu0
        %v895 = vadd.f32 0.0, %v894
        %896 = vmatmul.bf16.gmra.mxu0 %v683
        %v897 = vpop.f32.mrf.mxu0
        %v898 = vadd.f32 0.0, %v897
        %v899 = vpop.f32.mrf.mxu0
        %v900 = vadd.f32 0.0, %v899
        %901 = vdwg.mxu0
        %902 = vmatpush.bf16.msra.mxu0 %v819
        %903 = vmatpush.bf16.msra.mxu0 %v816
        %904 = vmatpush.bf16.msra.mxu0 %v813
        %905 = vmatpush.bf16.msra.mxu0 %v810
        %906 = vmatpush.bf16.msra.mxu0 %v807
        %907 = vmatpush.bf16.msra.mxu0 %v804
        %908 = vmatpush.bf16.msra.mxu0 %v801
        %909 = vmatpush.bf16.msra.mxu0 %v798
        %910 = vmatmul.bf16.gmra.mxu0 %v680
        %v911 = vpop.f32.mrf.mxu0
        %v912 = vadd.f32 0.0, %v911
        %v913 = vpop.f32.mrf.mxu0
        %v914 = vadd.f32 0.0, %v913
        %915 = vmatmul.bf16.gmra.mxu0 %v681
        %v916 = vpop.f32.mrf.mxu0
        %v917 = vadd.f32 0.0, %v916
        %v918 = vpop.f32.mrf.mxu0
        %v919 = vadd.f32 0.0, %v918
        %920 = vmatmul.bf16.gmra.mxu0 %v682
        %v921 = vpop.f32.mrf.mxu0
        %v922 = vadd.f32 0.0, %v921
        %v923 = vpop.f32.mrf.mxu0
        %v924 = vadd.f32 0.0, %v923
        %925 = vmatmul.bf16.gmra.mxu0 %v683
        %v926 = vpop.f32.mrf.mxu0
        %v927 = vadd.f32 0.0, %v926
        %v928 = vpop.f32.mrf.mxu0
        %v929 = vadd.f32 0.0, %v928
        %930 = vdwg.mxu0
        %939 = vrot.lane.b32.xlu0 %v854, 112
        %v940 = vpop.permute.xlu0 %939
        %941 = vrot.lane.b32.xlu0 %v856, 112
        %v942 = vpop.permute.xlu0 %941
        %943 = vrot.lane.b32.xlu0 %v859, 112
        %v944 = vpop.permute.xlu0 %943
        %945 = vrot.lane.b32.xlu0 %v861, 112
        %v946 = vpop.permute.xlu0 %945
        %947 = vrot.lane.b32.xlu0 %v864, 112
        %v948 = vpop.permute.xlu0 %947
        %949 = vrot.lane.b32.xlu0 %v866, 112
        %v950 = vpop.permute.xlu0 %949
        %951 = vrot.lane.b32.xlu0 %v869, 112
        %v952 = vpop.permute.xlu0 %951
        %953 = vrot.lane.b32.xlu0 %v871, 112
        %v954 = vpop.permute.xlu0 %953
        %963 = vrot.lane.b32.xlu0 %v854, 16
        %v964 = vpop.permute.xlu0 %963
        %965 = vrot.lane.b32.xlu0 %v856, 16
        %v966 = vpop.permute.xlu0 %965
        %967 = vrot.lane.b32.xlu0 %v859, 16
        %v968 = vpop.permute.xlu0 %967
        %969 = vrot.lane.b32.xlu0 %v861, 16
        %v970 = vpop.permute.xlu0 %969
        %971 = vrot.lane.b32.xlu0 %v864, 16
        %v972 = vpop.permute.xlu0 %971
        %973 = vrot.lane.b32.xlu0 %v866, 16
        %v974 = vpop.permute.xlu0 %973
        %975 = vrot.lane.b32.xlu0 %v869, 16
        %v976 = vpop.permute.xlu0 %975
        %977 = vrot.lane.b32.xlu0 %v871, 16
        %v978 = vpop.permute.xlu0 %977
        %995 = vrot.lane.b32.xlu0 %v883, 112
        %v996 = vpop.permute.xlu0 %995
        %997 = vrot.lane.b32.xlu0 %v885, 112
        %v998 = vpop.permute.xlu0 %997
        %999 = vrot.lane.b32.xlu0 %v888, 112
        %v1000 = vpop.permute.xlu0 %999
        %1001 = vrot.lane.b32.xlu0 %v890, 112
        %v1002 = vpop.permute.xlu0 %1001
        %1003 = vrot.lane.b32.xlu0 %v893, 112
        %v1004 = vpop.permute.xlu0 %1003
        %1005 = vrot.lane.b32.xlu0 %v895, 112
        %v1006 = vpop.permute.xlu0 %1005
        %1007 = vrot.lane.b32.xlu0 %v898, 112
        %v1008 = vpop.permute.xlu0 %1007
        %1009 = vrot.lane.b32.xlu0 %v900, 112
        %v1010 = vpop.permute.xlu0 %1009
        %1019 = vrot.lane.b32.xlu0 %v883, 16
        %v1020 = vpop.permute.xlu0 %1019
        %1021 = vrot.lane.b32.xlu0 %v885, 16
        %v1022 = vpop.permute.xlu0 %1021
        %1023 = vrot.lane.b32.xlu0 %v888, 16
        %v1024 = vpop.permute.xlu0 %1023
        %1025 = vrot.lane.b32.xlu0 %v890, 16
        %v1026 = vpop.permute.xlu0 %1025
        %1027 = vrot.lane.b32.xlu0 %v893, 16
        %v1028 = vpop.permute.xlu0 %1027
        %1029 = vrot.lane.b32.xlu0 %v895, 16
        %v1030 = vpop.permute.xlu0 %1029
        %1031 = vrot.lane.b32.xlu0 %v898, 16
        %v1032 = vpop.permute.xlu0 %1031
        %1033 = vrot.lane.b32.xlu0 %v900, 16
        %v1034 = vpop.permute.xlu0 %1033
        %vm1043 = vcmask 130048
        %v1044 = vsel %vm1043, %v940, %v964
        %v1045 = vsel %vm1043, %v942, %v966
        %v1046 = vsel %vm1043, %v944, %v968
        %v1047 = vsel %vm1043, %v946, %v970
        %v1048 = vsel %vm1043, %v948, %v972
        %v1049 = vsel %vm1043, %v950, %v974
        %v1050 = vsel %vm1043, %v952, %v976
        %v1051 = vsel %vm1043, %v954, %v978
        %vm1052 = vcmask 261120
        %v1053 = vsel %vm1052, %v1044, %v940
        %v1054 = vsel %vm1052, %v1045, %v942
        %v1055 = vsel %vm1052, %v1046, %v944
        %v1056 = vsel %vm1052, %v1047, %v946
        %v1057 = vsel %vm1052, %v1048, %v948
        %v1058 = vsel %vm1052, %v1049, %v950
        %v1059 = vsel %vm1052, %v1050, %v952
        %v1060 = vsel %vm1052, %v1051, %v954
        %vm1061 = vcmask 392192
        %v1062 = vsel %vm1061, %v1053, %v964
        %v1063 = vsel %vm1061, %v1054, %v966
        %v1064 = vsel %vm1061, %v1055, %v968
        %v1065 = vsel %vm1061, %v1056, %v970
        %v1066 = vsel %vm1061, %v1057, %v972
        %v1067 = vsel %vm1061, %v1058, %v974
        %v1068 = vsel %vm1061, %v1059, %v976
        %v1069 = vsel %vm1061, %v1060, %v978
        %vm1070 = vcmask 523264
        %v1071 = vsel %vm1070, %v1062, %v940
        %v1072 = vsel %vm1070, %v1063, %v942
        %v1073 = vsel %vm1070, %v1064, %v944
        %v1074 = vsel %vm1070, %v1065, %v946
        %v1075 = vsel %vm1070, %v1066, %v948
        %v1076 = vsel %vm1070, %v1067, %v950
        %v1077 = vsel %vm1070, %v1068, %v952
        %v1078 = vsel %vm1070, %v1069, %v954
        %vm1079 = vcmask 654336
        %v1080 = vsel %vm1079, %v1071, %v964
        %v1081 = vsel %vm1079, %v1072, %v966
        %v1082 = vsel %vm1079, %v1073, %v968
        %v1083 = vsel %vm1079, %v1074, %v970
        %v1084 = vsel %vm1079, %v1075, %v972
        %v1085 = vsel %vm1079, %v1076, %v974
        %v1086 = vsel %vm1079, %v1077, %v976
        %v1087 = vsel %vm1079, %v1078, %v978
        %vm1088 = vcmask 785408
        %v1089 = vsel %vm1088, %v1080, %v940
        %v1090 = vsel %vm1088, %v1081, %v942
        %v1091 = vsel %vm1088, %v1082, %v944
        %v1092 = vsel %vm1088, %v1083, %v946
        %v1093 = vsel %vm1088, %v1084, %v948
        %v1094 = vsel %vm1088, %v1085, %v950
        %v1095 = vsel %vm1088, %v1086, %v952
        %v1096 = vsel %vm1088, %v1087, %v954
        %vm1097 = vcmask 916480
        %v1098 = vsel %vm1097, %v1089, %v964
        %v1099 = vsel %vm1097, %v1090, %v966
        %v1100 = vsel %vm1097, %v1091, %v968
        %v1101 = vsel %vm1097, %v1092, %v970
        %v1102 = vsel %vm1097, %v1093, %v972
        %v1103 = vsel %vm1097, %v1094, %v974
        %v1104 = vsel %vm1097, %v1095, %v976
        %v1105 = vsel %vm1097, %v1096, %v978
        %v1106 = vsel %vm1043, %v996, %v1020
        %v1107 = vsel %vm1043, %v998, %v1022
        %v1108 = vsel %vm1043, %v1000, %v1024
        %v1109 = vsel %vm1043, %v1002, %v1026
        %v1110 = vsel %vm1043, %v1004, %v1028
        %v1111 = vsel %vm1043, %v1006, %v1030
        %v1112 = vsel %vm1043, %v1008, %v1032
        %v1113 = vsel %vm1043, %v1010, %v1034
        %v1114 = vsel %vm1052, %v1106, %v996
        %v1115 = vsel %vm1052, %v1107, %v998
        %v1116 = vsel %vm1052, %v1108, %v1000
        %v1117 = vsel %vm1052, %v1109, %v1002
        %v1118 = vsel %vm1052, %v1110, %v1004
        %v1119 = vsel %vm1052, %v1111, %v1006
        %v1120 = vsel %vm1052, %v1112, %v1008
        %v1121 = vsel %vm1052, %v1113, %v1010
        %v1122 = vsel %vm1061, %v1114, %v1020
        %v1123 = vsel %vm1061, %v1115, %v1022
        %v1124 = vsel %vm1061, %v1116, %v1024
        %v1125 = vsel %vm1061, %v1117, %v1026
        %v1126 = vsel %vm1061, %v1118, %v1028
        %v1127 = vsel %vm1061, %v1119, %v1030
        %v1128 = vsel %vm1061, %v1120, %v1032
        %v1129 = vsel %vm1061, %v1121, %v1034
        %v1130 = vsel %vm1070, %v1122, %v996
        %v1131 = vsel %vm1070, %v1123, %v998
        %v1132 = vsel %vm1070, %v1124, %v1000
        %v1133 = vsel %vm1070, %v1125, %v1002
        %v1134 = vsel %vm1070, %v1126, %v1004
        %v1135 = vsel %vm1070, %v1127, %v1006
        %v1136 = vsel %vm1070, %v1128, %v1008
        %v1137 = vsel %vm1070, %v1129, %v1010
        %v1138 = vsel %vm1079, %v1130, %v1020
        %v1139 = vsel %vm1079, %v1131, %v1022
        %v1140 = vsel %vm1079, %v1132, %v1024
        %v1141 = vsel %vm1079, %v1133, %v1026
        %v1142 = vsel %vm1079, %v1134, %v1028
        %v1143 = vsel %vm1079, %v1135, %v1030
        %v1144 = vsel %vm1079, %v1136, %v1032
        %v1145 = vsel %vm1079, %v1137, %v1034
        %v1146 = vsel %vm1088, %v1138, %v996
        %v1147 = vsel %vm1088, %v1139, %v998
        %v1148 = vsel %vm1088, %v1140, %v1000
        %v1149 = vsel %vm1088, %v1141, %v1002
        %v1150 = vsel %vm1088, %v1142, %v1004
        %v1151 = vsel %vm1088, %v1143, %v1006
        %v1152 = vsel %vm1088, %v1144, %v1008
        %v1153 = vsel %vm1088, %v1145, %v1010
        %v1154 = vsel %vm1097, %v1146, %v1020
        %v1155 = vsel %vm1097, %v1147, %v1022
        %v1156 = vsel %vm1097, %v1148, %v1024
        %v1157 = vsel %vm1097, %v1149, %v1026
        %v1158 = vsel %vm1097, %v1150, %v1028
        %v1159 = vsel %vm1097, %v1151, %v1030
        %v1160 = vsel %vm1097, %v1152, %v1032
        %v1161 = vsel %vm1097, %v1153, %v1034
        %v1162 = vld [vmem:[#allocation12] sm:$0xff]
        %v1163 = vld [vmem:[#allocation12 + $0x8] sm:$0xff]
        %v1164 = vld [vmem:[#allocation12 + $0x10] sm:$0xff]
        %v1165 = vld [vmem:[#allocation12 + $0x18] sm:$0xff]
        %v1166 = vld [vmem:[#allocation12 + $0x20] sm:$0xff]
        %v1167 = vld [vmem:[#allocation12 + $0x28] sm:$0xff]
        %v1168 = vld [vmem:[#allocation12 + $0x30] sm:$0xff]
        %v1169 = vld [vmem:[#allocation12 + $0x38] sm:$0xff]
        %v1170 = vld [vmem:[#allocation12 + $0x40] sm:$0xff]
        %v1171 = vld [vmem:[#allocation12 + $0x48] sm:$0xff]
        %v1172 = vld [vmem:[#allocation12 + $0x50] sm:$0xff]
        %v1173 = vld [vmem:[#allocation12 + $0x58] sm:$0xff]
        %v1174 = vld [vmem:[#allocation12 + $0x60] sm:$0xff]
        %v1175 = vld [vmem:[#allocation12 + $0x68] sm:$0xff]
        %v1176 = vld [vmem:[#allocation12 + $0x70] sm:$0xff]
        %v1177 = vld [vmem:[#allocation12 + $0x78] sm:$0xff]
        %v1178 = vmul.f32 %v854, %v1162
        %v1179 = vmul.f32 %v883, %v1163
        %v1180 = vmul.f32 %v856, %v1164
        %v1181 = vmul.f32 %v885, %v1165
        %v1182 = vmul.f32 %v859, %v1166
        %v1183 = vmul.f32 %v888, %v1167
        %v1184 = vmul.f32 %v861, %v1168
        %v1185 = vmul.f32 %v890, %v1169
        %v1186 = vmul.f32 %v864, %v1170
        %v1187 = vmul.f32 %v893, %v1171
        %v1188 = vmul.f32 %v866, %v1172
        %v1189 = vmul.f32 %v895, %v1173
        %v1190 = vmul.f32 %v869, %v1174
        %v1191 = vmul.f32 %v898, %v1175
        %v1192 = vmul.f32 %v871, %v1176
        %v1193 = vmul.f32 %v900, %v1177
        %v1194 = vld [vmem:[#allocation14] sm:$0xff]
        %v1195 = vld [vmem:[#allocation14 + $0x8] sm:$0xff]
        %v1196 = vld [vmem:[#allocation14 + $0x10] sm:$0xff]
        %v1197 = vld [vmem:[#allocation14 + $0x18] sm:$0xff]
        %v1198 = vld [vmem:[#allocation14 + $0x20] sm:$0xff]
        %v1199 = vld [vmem:[#allocation14 + $0x28] sm:$0xff]
        %v1200 = vld [vmem:[#allocation14 + $0x30] sm:$0xff]
        %v1201 = vld [vmem:[#allocation14 + $0x38] sm:$0xff]
        %v1202 = vld [vmem:[#allocation14 + $0x40] sm:$0xff]
        %v1203 = vld [vmem:[#allocation14 + $0x48] sm:$0xff]
        %v1204 = vld [vmem:[#allocation14 + $0x50] sm:$0xff]
        %v1205 = vld [vmem:[#allocation14 + $0x58] sm:$0xff]
        %v1206 = vld [vmem:[#allocation14 + $0x60] sm:$0xff]
        %v1207 = vld [vmem:[#allocation14 + $0x68] sm:$0xff]
        %v1208 = vld [vmem:[#allocation14 + $0x70] sm:$0xff]
        %v1209 = vld [vmem:[#allocation14 + $0x78] sm:$0xff]
        %v1210 = vmul.f32 %v1098, %v1194
        %v1211 = vmul.f32 %v1154, %v1195
        %v1212 = vmul.f32 %v1099, %v1196
        %v1213 = vmul.f32 %v1155, %v1197
        %v1214 = vmul.f32 %v1100, %v1198
        %v1215 = vmul.f32 %v1156, %v1199
        %v1216 = vmul.f32 %v1101, %v1200
        %v1217 = vmul.f32 %v1157, %v1201
        %v1218 = vmul.f32 %v1102, %v1202
        %v1219 = vmul.f32 %v1158, %v1203
        %v1220 = vmul.f32 %v1103, %v1204
        %v1221 = vmul.f32 %v1159, %v1205
        %v1222 = vmul.f32 %v1104, %v1206
        %v1223 = vmul.f32 %v1160, %v1207
        %v1224 = vmul.f32 %v1105, %v1208
        %v1225 = vmul.f32 %v1161, %v1209
        %v1226 = vadd.f32 %v1178, %v1210
        %v1227 = vadd.f32 %v1179, %v1211
        %v1228 = vadd.f32 %v1180, %v1212
        %v1229 = vadd.f32 %v1181, %v1213
        %v1230 = vadd.f32 %v1182, %v1214
        %v1231 = vadd.f32 %v1183, %v1215
        %v1232 = vadd.f32 %v1184, %v1216
        %v1233 = vadd.f32 %v1185, %v1217
        %v1234 = vadd.f32 %v1186, %v1218
        %v1235 = vadd.f32 %v1187, %v1219
        %v1236 = vadd.f32 %v1188, %v1220
        %v1237 = vadd.f32 %v1189, %v1221
        %v1238 = vadd.f32 %v1190, %v1222
        %v1239 = vadd.f32 %v1191, %v1223
        %v1240 = vadd.f32 %v1192, %v1224
        %v1241 = vadd.f32 %v1193, %v1225
        %1242 = vst [vmem:[%s516] sm:$0xff] %v1227
        %1243 = vst [vmem:[%s516 + $0x8] sm:$0xff] %v1229
        %1244 = vst [vmem:[%s516 + $0x10] sm:$0xff] %v1231
        %1245 = vst [vmem:[%s516 + $0x18] sm:$0xff] %v1233
        %1246 = vst [vmem:[%s516 + $0x20] sm:$0xff] %v1235
        %1247 = vst [vmem:[%s516 + $0x28] sm:$0xff] %v1237
        %1248 = vst [vmem:[%s516 + $0x30] sm:$0xff] %v1239
        %1249 = vst [vmem:[%s516 + $0x38] sm:$0xff] %v1241
        %1250 = vst [vmem:[%s523] sm:$0xff] %v912
        %1251 = vst [vmem:[%s523 + $0x8] sm:$0xff] %v914
        %1252 = vst [vmem:[%s523 + $0x10] sm:$0xff] %v917
        %1253 = vst [vmem:[%s523 + $0x18] sm:$0xff] %v919
        %1254 = vst [vmem:[%s523 + $0x20] sm:$0xff] %v922
        %1255 = vst [vmem:[%s523 + $0x28] sm:$0xff] %v924
        %1256 = vst [vmem:[%s523 + $0x30] sm:$0xff] %v927
        %1257 = vst [vmem:[%s523 + $0x38] sm:$0xff] %v929
        %v1258 = vpack.c.bf16 %v1226, %v1226
        %v1259 = vpack.c.bf16 %v1228, %v1228
        %v1260 = vpack.c.bf16 %v1230, %v1230
        %v1261 = vpack.c.bf16 %v1232, %v1232
        %v1262 = vpack.c.bf16 %v1234, %v1234
        %v1263 = vpack.c.bf16 %v1236, %v1236
        %v1264 = vpack.c.bf16 %v1238, %v1238
        %v1265 = vpack.c.bf16 %v1240, %v1240
        %v1266 = vpack.c.bf16 %v1227, %v1227
        %v1267 = vpack.c.bf16 %v1229, %v1229
        %v1268 = vpack.c.bf16 %v1231, %v1231
        %v1269 = vpack.c.bf16 %v1233, %v1233
        %v1270 = vpack.c.bf16 %v1235, %v1235
        %v1271 = vpack.c.bf16 %v1237, %v1237
        %v1272 = vpack.c.bf16 %v1239, %v1239
        %v1273 = vpack.c.bf16 %v1241, %v1241
        %v1274 = vpack.c.bf16 %v912, %v912
        %v1275 = vpack.c.bf16 %v914, %v914
        %v1276 = vpack.c.bf16 %v917, %v917
        %v1277 = vpack.c.bf16 %v919, %v919
        %v1278 = vpack.c.bf16 %v922, %v922
        %v1279 = vpack.c.bf16 %v924, %v924
        %v1280 = vpack.c.bf16 %v927, %v927
        %v1281 = vpack.c.bf16 %v929, %v929
        %v1282 = vlaneseq
        %v1283 = vshrl.u32 %v1282, 7
        %v1284 = vadd.s32 %v1283, 8
        %v1285 = vadd.s32 %v1283, 16
        %v1286 = vadd.s32 %v1283, 24
        %v1287 = vadd.s32 %v1283, 32
        %v1288 = vadd.s32 %v1283, 40
        %v1289 = vadd.s32 %v1283, 48
        %v1290 = vadd.s32 %v1283, 56
        %v1291 = vlaneseq
        %v1292 = vand.u32 %v1291, 127
        %vm1293 = vcmp.le.s32.totalorder %v1292, %v1283
        %vm1294 = vcmp.le.s32.totalorder %v1292, %v1284
        %vm1295 = vcmp.le.s32.totalorder %v1292, %v1285
        %vm1296 = vcmp.le.s32.totalorder %v1292, %v1286
        %vm1297 = vcmp.le.s32.totalorder %v1292, %v1287
        %vm1298 = vcmp.le.s32.totalorder %v1292, %v1288
        %vm1299 = vcmp.le.s32.totalorder %v1292, %v1289
        %vm1300 = vcmp.le.s32.totalorder %v1292, %v1290
        %v1309 = vunpack.c.l.b16 %v1258
        %v1310 = vunpack.c.l.b16 %v1259
        %v1311 = vunpack.c.l.b16 %v1260
        %v1312 = vunpack.c.l.b16 %v1261
        %v1313 = vunpack.c.l.b16 %v1262
        %v1314 = vunpack.c.l.b16 %v1263
        %v1315 = vunpack.c.l.b16 %v1264
        %v1316 = vunpack.c.l.b16 %v1265
        %v1317 = vpack.c.b16 %v1310, %v1309
        %v1318 = vpack.c.b16 %v1312, %v1311
        %v1319 = vpack.c.b16 %v1314, %v1313
        %v1320 = vpack.c.b16 %v1316, %v1315
        %v1329 = vunpack.c.l.b16 %v1266
        %v1330 = vunpack.c.l.b16 %v1267
        %v1331 = vunpack.c.l.b16 %v1268
        %v1332 = vunpack.c.l.b16 %v1269
        %v1333 = vunpack.c.l.b16 %v1270
        %v1334 = vunpack.c.l.b16 %v1271
        %v1335 = vunpack.c.l.b16 %v1272
        %v1336 = vunpack.c.l.b16 %v1273
        %v1337 = vpack.c.b16 %v1330, %v1329
        %v1338 = vpack.c.b16 %v1332, %v1331
        %v1339 = vpack.c.b16 %v1334, %v1333
        %v1340 = vpack.c.b16 %v1336, %v1335
        %v1342 = vsel %vm1052, %v1317, 0
        %v1345 = vsel %vm1052, %v1318, 0
        %v1348 = vsel %vm1052, %v1319, 0
        %v1351 = vsel %vm1052, %v1320, 0
        %v1354 = vsel %vm1052, %v1337, 0
        %v1357 = vsel %vm1052, %v1338, 0
        %v1360 = vsel %vm1052, %v1339, 0
        %v1363 = vsel %vm1052, %v1340, 0
        %1365 = vmatpush.bf16.xpose.msra.mxu0 0
        %1366 = vmatpush.bf16.xpose.msra.mxu0 0
        %1367 = vmatpush.bf16.xpose.msra.mxu0 0
        %1368 = vmatpush.bf16.xpose.msra.mxu0 0
        %1369 = vmatpush.bf16.xpose.msra.mxu0 %v1363
        %1370 = vmatpush.bf16.xpose.msra.mxu0 %v1360
        %1371 = vmatpush.bf16.xpose.msra.mxu0 %v1357
        %1372 = vmatpush.bf16.xpose.msra.mxu0 %v1354
        %1373 = vmatmul.bf16.gmra.mxu0 %v1342
        %v1374 = vpop.f32.mrf.mxu0
        %v1375 = vadd.f32 0.0, %v1374
        %v1376 = vpop.f32.mrf.mxu0
        %v1377 = vadd.f32 0.0, %v1376
        %1378 = vmatmul.bf16.gmra.mxu0 %v1345
        %v1379 = vpop.f32.mrf.mxu0
        %v1380 = vadd.f32 0.0, %v1379
        %v1381 = vpop.f32.mrf.mxu0
        %v1382 = vadd.f32 0.0, %v1381
        %1383 = vmatmul.bf16.gmra.mxu0 %v1348
        %v1384 = vpop.f32.mrf.mxu0
        %v1385 = vadd.f32 0.0, %v1384
        %v1386 = vpop.f32.mrf.mxu0
        %v1387 = vadd.f32 0.0, %v1386
        %1388 = vmatmul.bf16.gmra.mxu0 %v1351
        %v1389 = vpop.f32.mrf.mxu0
        %v1390 = vadd.f32 0.0, %v1389
        %v1391 = vpop.f32.mrf.mxu0
        %v1392 = vadd.f32 0.0, %v1391
        %1393 = vdwg.mxu0
        %v1394 = vsel %vm1293, %v1375, -1e+30
        %v1395 = vsel %vm1294, %v1377, -1e+30
        %v1396 = vsel %vm1295, %v1380, -1e+30
        %v1397 = vsel %vm1296, %v1382, -1e+30
        %v1398 = vsel %vm1297, %v1385, -1e+30
        %v1399 = vsel %vm1298, %v1387, -1e+30
        %v1400 = vsel %vm1299, %v1390, -1e+30
        %v1401 = vsel %vm1300, %v1392, -1e+30
        %v1402 = vsel %vm1070, %v1394, -inf
        %1403 = vmax.xlane.f32.xlu0 %v1402
        %v1404 = vpop.xlane.xlu0 %1403
        %v1405 = vsel %vm1070, %v1395, -inf
        %1406 = vmax.xlane.f32.xlu0 %v1405
        %v1407 = vpop.xlane.xlu0 %1406
        %v1408 = vsel %vm1070, %v1396, -inf
        %1409 = vmax.xlane.f32.xlu0 %v1408
        %v1410 = vpop.xlane.xlu0 %1409
        %v1411 = vsel %vm1070, %v1397, -inf
        %1412 = vmax.xlane.f32.xlu0 %v1411
        %v1413 = vpop.xlane.xlu0 %1412
        %v1414 = vsel %vm1070, %v1398, -inf
        %1415 = vmax.xlane.f32.xlu0 %v1414
        %v1416 = vpop.xlane.xlu0 %1415
        %v1417 = vsel %vm1070, %v1399, -inf
        %1418 = vmax.xlane.f32.xlu0 %v1417
        %v1419 = vpop.xlane.xlu0 %1418
        %v1420 = vsel %vm1070, %v1400, -inf
        %1421 = vmax.xlane.f32.xlu0 %v1420
        %v1422 = vpop.xlane.xlu0 %1421
        %v1423 = vsel %vm1070, %v1401, -inf
        %1424 = vmax.xlane.f32.xlu0 %v1423
        %v1425 = vpop.xlane.xlu0 %1424
        %v1426 = vsub.f32 %v1394, %v1404
        %v1427 = vsub.f32 %v1395, %v1407
        %v1428 = vsub.f32 %v1396, %v1410
        %v1429 = vsub.f32 %v1397, %v1413
        %v1430 = vsub.f32 %v1398, %v1416
        %v1431 = vsub.f32 %v1399, %v1419
        %v1432 = vsub.f32 %v1400, %v1422
        %v1433 = vsub.f32 %v1401, %v1425
        %v1434 = vmul.f32 %v1426, 1.442695
        %v1435 = vpow.pop %v1434
        %v1436 = vmul.f32 %v1427, 1.442695
        %v1437 = vpow.pop %v1436
        %v1438 = vmul.f32 %v1428, 1.442695
        %v1439 = vpow.pop %v1438
        %v1440 = vmul.f32 %v1429, 1.442695
        %v1441 = vpow.pop %v1440
        %v1442 = vmul.f32 %v1430, 1.442695
        %v1443 = vpow.pop %v1442
        %v1444 = vmul.f32 %v1431, 1.442695
        %v1445 = vpow.pop %v1444
        %v1446 = vmul.f32 %v1432, 1.442695
        %v1447 = vpow.pop %v1446
        %v1448 = vmul.f32 %v1433, 1.442695
        %v1449 = vpow.pop %v1448
        %v1450 = vsel %vm1070, %v1435, 0.0
        %1451 = vadd.xlane.f32.xlu0 %v1450
        %v1452 = vpop.xlane.xlu0 %1451
        %v1453 = vsel %vm1070, %v1437, 0.0
        %1454 = vadd.xlane.f32.xlu0 %v1453
        %v1455 = vpop.xlane.xlu0 %1454
        %v1456 = vsel %vm1070, %v1439, 0.0
        %1457 = vadd.xlane.f32.xlu0 %v1456
        %v1458 = vpop.xlane.xlu0 %1457
        %v1459 = vsel %vm1070, %v1441, 0.0
        %1460 = vadd.xlane.f32.xlu0 %v1459
        %v1461 = vpop.xlane.xlu0 %1460
        %v1462 = vsel %vm1070, %v1443, 0.0
        %1463 = vadd.xlane.f32.xlu0 %v1462
        %v1464 = vpop.xlane.xlu0 %1463
        %v1465 = vsel %vm1070, %v1445, 0.0
        %1466 = vadd.xlane.f32.xlu0 %v1465
        %v1467 = vpop.xlane.xlu0 %1466
        %v1468 = vsel %vm1070, %v1447, 0.0
        %1469 = vadd.xlane.f32.xlu0 %v1468
        %v1470 = vpop.xlane.xlu0 %1469
        %v1471 = vsel %vm1070, %v1449, 0.0
        %1472 = vadd.xlane.f32.xlu0 %v1471
        %v1473 = vpop.xlane.xlu0 %1472
        %v1474 = vpack.c.bf16 %v1437, %v1435
        %v1475 = vpack.c.bf16 %v1441, %v1439
        %v1476 = vpack.c.bf16 %v1445, %v1443
        %v1477 = vpack.c.bf16 %v1449, %v1447
        %v1486 = vunpack.c.l.b16 %v1274
        %v1487 = vunpack.c.l.b16 %v1275
        %v1488 = vunpack.c.l.b16 %v1276
        %v1489 = vunpack.c.l.b16 %v1277
        %v1490 = vunpack.c.l.b16 %v1278
        %v1491 = vunpack.c.l.b16 %v1279
        %v1492 = vunpack.c.l.b16 %v1280
        %v1493 = vunpack.c.l.b16 %v1281
        %v1494 = vpack.c.b16 %v1487, %v1486
        %v1495 = vpack.c.b16 %v1489, %v1488
        %v1496 = vpack.c.b16 %v1491, %v1490
        %v1497 = vpack.c.b16 %v1493, %v1492
        %v1503 = vsel %vm1070, %v1474, 0
        %v1506 = vsel %vm1070, %v1475, 0
        %v1509 = vsel %vm1070, %v1476, 0
        %v1512 = vsel %vm1070, %v1477, 0
        %1514 = vmatpush.bf16.msra.mxu0 0
        %1515 = vmatpush.bf16.msra.mxu0 0
        %1516 = vmatpush.bf16.msra.mxu0 0
        %1517 = vmatpush.bf16.msra.mxu0 0
        %1518 = vmatpush.bf16.msra.mxu0 %v1497
        %1519 = vmatpush.bf16.msra.mxu0 %v1496
        %1520 = vmatpush.bf16.msra.mxu0 %v1495
        %1521 = vmatpush.bf16.msra.mxu0 %v1494
        %1522 = vmatmul.bf16.gmra.mxu0 %v1503
        %v1523 = vpop.f32.mrf.mxu0
        %v1524 = vadd.f32 0.0, %v1523
        %v1525 = vpop.f32.mrf.mxu0
        %v1526 = vadd.f32 0.0, %v1525
        %1527 = vmatmul.bf16.gmra.mxu0 %v1506
        %v1528 = vpop.f32.mrf.mxu0
        %v1529 = vadd.f32 0.0, %v1528
        %v1530 = vpop.f32.mrf.mxu0
        %v1531 = vadd.f32 0.0, %v1530
        %1532 = vmatmul.bf16.gmra.mxu0 %v1509
        %v1533 = vpop.f32.mrf.mxu0
        %v1534 = vadd.f32 0.0, %v1533
        %v1535 = vpop.f32.mrf.mxu0
        %v1536 = vadd.f32 0.0, %v1535
        %1537 = vmatmul.bf16.gmra.mxu0 %v1512
        %v1538 = vpop.f32.mrf.mxu0
        %v1539 = vadd.f32 0.0, %v1538
        %v1540 = vpop.f32.mrf.mxu0
        %v1541 = vadd.f32 0.0, %v1540
        %1542 = vdwg.mxu0
        %v1543 = vrcp.pop %v1452
        %v1544 = vrcp.pop %v1455
        %v1545 = vrcp.pop %v1458
        %v1546 = vrcp.pop %v1461
        %v1547 = vrcp.pop %v1464
        %v1548 = vrcp.pop %v1467
        %v1549 = vrcp.pop %v1470
        %v1550 = vrcp.pop %v1473
        %v1551 = vmul.f32 %v1524, %v1543
        %v1552 = vmul.f32 %v1526, %v1544
        %v1553 = vmul.f32 %v1529, %v1545
        %v1554 = vmul.f32 %v1531, %v1546
        %v1555 = vmul.f32 %v1534, %v1547
        %v1556 = vmul.f32 %v1536, %v1548
        %v1557 = vmul.f32 %v1539, %v1549
        %v1558 = vmul.f32 %v1541, %v1550
        %1559 = vst.msk [vmem:[#allocation2] sm:$0xff] %vm1052, %v1551
        %1560 = vst.msk [vmem:[#allocation2 + $0x8] sm:$0xff] %vm1052, %v1552
        %1561 = vst.msk [vmem:[#allocation2 + $0x10] sm:$0xff] %vm1052, %v1553
        %1562 = vst.msk [vmem:[#allocation2 + $0x18] sm:$0xff] %vm1052, %v1554
        %1563 = vst.msk [vmem:[#allocation2 + $0x20] sm:$0xff] %vm1052, %v1555
        %1564 = vst.msk [vmem:[#allocation2 + $0x28] sm:$0xff] %vm1052, %v1556
        %1565 = vst.msk [vmem:[#allocation2 + $0x30] sm:$0xff] %vm1052, %v1557
        %1566 = vst.msk [vmem:[#allocation2 + $0x38] sm:$0xff] %vm1052, %v1558
        %1567 = vrot.lane.b32.xlu0 %v1317, 96
        %v1568 = vpop.permute.xlu0 %1567
        %1569 = vrot.lane.b32.xlu0 %v1318, 96
        %v1570 = vpop.permute.xlu0 %1569
        %1571 = vrot.lane.b32.xlu0 %v1319, 96
        %v1572 = vpop.permute.xlu0 %1571
        %1573 = vrot.lane.b32.xlu0 %v1320, 96
        %v1574 = vpop.permute.xlu0 %1573
        %1575 = vrot.lane.b32.xlu0 %v1337, 96
        %v1576 = vpop.permute.xlu0 %1575
        %1577 = vrot.lane.b32.xlu0 %v1338, 96
        %v1578 = vpop.permute.xlu0 %1577
        %1579 = vrot.lane.b32.xlu0 %v1339, 96
        %v1580 = vpop.permute.xlu0 %1579
        %1581 = vrot.lane.b32.xlu0 %v1340, 96
        %v1582 = vpop.permute.xlu0 %1581
        %v1584 = vsel %vm1052, %v1568, 0
        %v1587 = vsel %vm1052, %v1570, 0
        %v1590 = vsel %vm1052, %v1572, 0
        %v1593 = vsel %vm1052, %v1574, 0
        %v1596 = vsel %vm1052, %v1576, 0
        %v1599 = vsel %vm1052, %v1578, 0
        %v1602 = vsel %vm1052, %v1580, 0
        %v1605 = vsel %vm1052, %v1582, 0
        %1607 = vmatpush.bf16.xpose.msra.mxu0 0
        %1608 = vmatpush.bf16.xpose.msra.mxu0 0
        %1609 = vmatpush.bf16.xpose.msra.mxu0 0
        %1610 = vmatpush.bf16.xpose.msra.mxu0 0
        %1611 = vmatpush.bf16.xpose.msra.mxu0 %v1605
        %1612 = vmatpush.bf16.xpose.msra.mxu0 %v1602
        %1613 = vmatpush.bf16.xpose.msra.mxu0 %v1599
        %1614 = vmatpush.bf16.xpose.msra.mxu0 %v1596
        %1615 = vmatmul.bf16.gmra.mxu0 %v1584
        %v1616 = vpop.f32.mrf.mxu0
        %v1617 = vadd.f32 0.0, %v1616
        %v1618 = vpop.f32.mrf.mxu0
        %v1619 = vadd.f32 0.0, %v1618
        %1620 = vmatmul.bf16.gmra.mxu0 %v1587
        %v1621 = vpop.f32.mrf.mxu0
        %v1622 = vadd.f32 0.0, %v1621
        %v1623 = vpop.f32.mrf.mxu0
        %v1624 = vadd.f32 0.0, %v1623
        %1625 = vmatmul.bf16.gmra.mxu0 %v1590
        %v1626 = vpop.f32.mrf.mxu0
        %v1627 = vadd.f32 0.0, %v1626
        %v1628 = vpop.f32.mrf.mxu0
        %v1629 = vadd.f32 0.0, %v1628
        %1630 = vmatmul.bf16.gmra.mxu0 %v1593
        %v1631 = vpop.f32.mrf.mxu0
        %v1632 = vadd.f32 0.0, %v1631
        %v1633 = vpop.f32.mrf.mxu0
        %v1634 = vadd.f32 0.0, %v1633
        %1635 = vdwg.mxu0
        %v1636 = vsel %vm1293, %v1617, -1e+30
        %v1637 = vsel %vm1294, %v1619, -1e+30
        %v1638 = vsel %vm1295, %v1622, -1e+30
        %v1639 = vsel %vm1296, %v1624, -1e+30
        %v1640 = vsel %vm1297, %v1627, -1e+30
        %v1641 = vsel %vm1298, %v1629, -1e+30
        %v1642 = vsel %vm1299, %v1632, -1e+30
        %v1643 = vsel %vm1300, %v1634, -1e+30
        %v1644 = vsel %vm1070, %v1636, -inf
        %1645 = vmax.xlane.f32.xlu0 %v1644
        %v1646 = vpop.xlane.xlu0 %1645
        %v1647 = vsel %vm1070, %v1637, -inf
        %1648 = vmax.xlane.f32.xlu0 %v1647
        %v1649 = vpop.xlane.xlu0 %1648
        %v1650 = vsel %vm1070, %v1638, -inf
        %1651 = vmax.xlane.f32.xlu0 %v1650
        %v1652 = vpop.xlane.xlu0 %1651
        %v1653 = vsel %vm1070, %v1639, -inf
        %1654 = vmax.xlane.f32.xlu0 %v1653
        %v1655 = vpop.xlane.xlu0 %1654
        %v1656 = vsel %vm1070, %v1640, -inf
        %1657 = vmax.xlane.f32.xlu0 %v1656
        %v1658 = vpop.xlane.xlu0 %1657
        %v1659 = vsel %vm1070, %v1641, -inf
        %1660 = vmax.xlane.f32.xlu0 %v1659
        %v1661 = vpop.xlane.xlu0 %1660
        %v1662 = vsel %vm1070, %v1642, -inf
        %1663 = vmax.xlane.f32.xlu0 %v1662
        %v1664 = vpop.xlane.xlu0 %1663
        %v1665 = vsel %vm1070, %v1643, -inf
        %1666 = vmax.xlane.f32.xlu0 %v1665
        %v1667 = vpop.xlane.xlu0 %1666
        %v1668 = vsub.f32 %v1636, %v1646
        %v1669 = vsub.f32 %v1637, %v1649
        %v1670 = vsub.f32 %v1638, %v1652
        %v1671 = vsub.f32 %v1639, %v1655
        %v1672 = vsub.f32 %v1640, %v1658
        %v1673 = vsub.f32 %v1641, %v1661
        %v1674 = vsub.f32 %v1642, %v1664
        %v1675 = vsub.f32 %v1643, %v1667
        %v1676 = vmul.f32 %v1668, 1.442695
        %v1677 = vpow.pop %v1676
        %v1678 = vmul.f32 %v1669, 1.442695
        %v1679 = vpow.pop %v1678
        %v1680 = vmul.f32 %v1670, 1.442695
        %v1681 = vpow.pop %v1680
        %v1682 = vmul.f32 %v1671, 1.442695
        %v1683 = vpow.pop %v1682
        %v1684 = vmul.f32 %v1672, 1.442695
        %v1685 = vpow.pop %v1684
        %v1686 = vmul.f32 %v1673, 1.442695
        %v1687 = vpow.pop %v1686
        %v1688 = vmul.f32 %v1674, 1.442695
        %v1689 = vpow.pop %v1688
        %v1690 = vmul.f32 %v1675, 1.442695
        %v1691 = vpow.pop %v1690
        %v1692 = vsel %vm1070, %v1677, 0.0
        %1693 = vadd.xlane.f32.xlu0 %v1692
        %v1694 = vpop.xlane.xlu0 %1693
        %v1695 = vsel %vm1070, %v1679, 0.0
        %1696 = vadd.xlane.f32.xlu0 %v1695
        %v1697 = vpop.xlane.xlu0 %1696
        %v1698 = vsel %vm1070, %v1681, 0.0
        %1699 = vadd.xlane.f32.xlu0 %v1698
        %v1700 = vpop.xlane.xlu0 %1699
        %v1701 = vsel %vm1070, %v1683, 0.0
        %1702 = vadd.xlane.f32.xlu0 %v1701
        %v1703 = vpop.xlane.xlu0 %1702
        %v1704 = vsel %vm1070, %v1685, 0.0
        %1705 = vadd.xlane.f32.xlu0 %v1704
        %v1706 = vpop.xlane.xlu0 %1705
        %v1707 = vsel %vm1070, %v1687, 0.0
        %1708 = vadd.xlane.f32.xlu0 %v1707
        %v1709 = vpop.xlane.xlu0 %1708
        %v1710 = vsel %vm1070, %v1689, 0.0
        %1711 = vadd.xlane.f32.xlu0 %v1710
        %v1712 = vpop.xlane.xlu0 %1711
        %v1713 = vsel %vm1070, %v1691, 0.0
        %1714 = vadd.xlane.f32.xlu0 %v1713
        %v1715 = vpop.xlane.xlu0 %1714
        %v1716 = vpack.c.bf16 %v1679, %v1677
        %v1717 = vpack.c.bf16 %v1683, %v1681
        %v1718 = vpack.c.bf16 %v1687, %v1685
        %v1719 = vpack.c.bf16 %v1691, %v1689
        %1720 = vrot.lane.b32.xlu0 %v1494, 96
        %v1721 = vpop.permute.xlu0 %1720
        %1722 = vrot.lane.b32.xlu0 %v1495, 96
        %v1723 = vpop.permute.xlu0 %1722
        %1724 = vrot.lane.b32.xlu0 %v1496, 96
        %v1725 = vpop.permute.xlu0 %1724
        %1726 = vrot.lane.b32.xlu0 %v1497, 96
        %v1727 = vpop.permute.xlu0 %1726
        %v1733 = vsel %vm1070, %v1716, 0
        %v1736 = vsel %vm1070, %v1717, 0
        %v1739 = vsel %vm1070, %v1718, 0
        %v1742 = vsel %vm1070, %v1719, 0
        %1744 = vmatpush.bf16.msra.mxu0 0
        %1745 = vmatpush.bf16.msra.mxu0 0
        %1746 = vmatpush.bf16.msra.mxu0 0
        %1747 = vmatpush.bf16.msra.mxu0 0
        %1748 = vmatpush.bf16.msra.mxu0 %v1727
        %1749 = vmatpush.bf16.msra.mxu0 %v1725
        %1750 = vmatpush.bf16.msra.mxu0 %v1723
        %1751 = vmatpush.bf16.msra.mxu0 %v1721
        %1752 = vmatmul.bf16.gmra.mxu0 %v1733
        %v1753 = vpop.f32.mrf.mxu0
        %v1754 = vadd.f32 0.0, %v1753
        %v1755 = vpop.f32.mrf.mxu0
        %v1756 = vadd.f32 0.0, %v1755
        %1757 = vmatmul.bf16.gmra.mxu0 %v1736
        %v1758 = vpop.f32.mrf.mxu0
        %v1759 = vadd.f32 0.0, %v1758
        %v1760 = vpop.f32.mrf.mxu0
        %v1761 = vadd.f32 0.0, %v1760
        %1762 = vmatmul.bf16.gmra.mxu0 %v1739
        %v1763 = vpop.f32.mrf.mxu0
        %v1764 = vadd.f32 0.0, %v1763
        %v1765 = vpop.f32.mrf.mxu0
        %v1766 = vadd.f32 0.0, %v1765
        %1767 = vmatmul.bf16.gmra.mxu0 %v1742
        %v1768 = vpop.f32.mrf.mxu0
        %v1769 = vadd.f32 0.0, %v1768
        %v1770 = vpop.f32.mrf.mxu0
        %v1771 = vadd.f32 0.0, %v1770
        %1772 = vdwg.mxu0
        %v1773 = vrcp.pop %v1694
        %v1774 = vrcp.pop %v1697
        %v1775 = vrcp.pop %v1700
        %v1776 = vrcp.pop %v1703
        %v1777 = vrcp.pop %v1706
        %v1778 = vrcp.pop %v1709
        %v1779 = vrcp.pop %v1712
        %v1780 = vrcp.pop %v1715
        %v1781 = vmul.f32 %v1754, %v1773
        %v1782 = vmul.f32 %v1756, %v1774
        %v1783 = vmul.f32 %v1759, %v1775
        %v1784 = vmul.f32 %v1761, %v1776
        %v1785 = vmul.f32 %v1764, %v1777
        %v1786 = vmul.f32 %v1766, %v1778
        %v1787 = vmul.f32 %v1769, %v1779
        %v1788 = vmul.f32 %v1771, %v1780
        %1797 = vrot.lane.b32.xlu0 %v1781, 32
        %v1798 = vpop.permute.xlu0 %1797
        %1799 = vrot.lane.b32.xlu0 %v1782, 32
        %v1800 = vpop.permute.xlu0 %1799
        %1801 = vrot.lane.b32.xlu0 %v1783, 32
        %v1802 = vpop.permute.xlu0 %1801
        %1803 = vrot.lane.b32.xlu0 %v1784, 32
        %v1804 = vpop.permute.xlu0 %1803
        %1805 = vrot.lane.b32.xlu0 %v1785, 32
        %v1806 = vpop.permute.xlu0 %1805
        %1807 = vrot.lane.b32.xlu0 %v1786, 32
        %v1808 = vpop.permute.xlu0 %1807
        %1809 = vrot.lane.b32.xlu0 %v1787, 32
        %v1810 = vpop.permute.xlu0 %1809
        %1811 = vrot.lane.b32.xlu0 %v1788, 32
        %v1812 = vpop.permute.xlu0 %1811
        %vm1821 = vcmask 523520
        %1822 = vst.msk [vmem:[#allocation2] sm:$0xff] %vm1821, %v1798
        %1823 = vst.msk [vmem:[#allocation2 + $0x8] sm:$0xff] %vm1821, %v1800
        %1824 = vst.msk [vmem:[#allocation2 + $0x10] sm:$0xff] %vm1821, %v1802
        %1825 = vst.msk [vmem:[#allocation2 + $0x18] sm:$0xff] %vm1821, %v1804
        %1826 = vst.msk [vmem:[#allocation2 + $0x20] sm:$0xff] %vm1821, %v1806
        %1827 = vst.msk [vmem:[#allocation2 + $0x28] sm:$0xff] %vm1821, %v1808
        %1828 = vst.msk [vmem:[#allocation2 + $0x30] sm:$0xff] %vm1821, %v1810
        %1829 = vst.msk [vmem:[#allocation2 + $0x38] sm:$0xff] %vm1821, %v1812
        %1830 = vrot.lane.b32.xlu0 %v1317, 64
        %v1831 = vpop.permute.xlu0 %1830
        %1832 = vrot.lane.b32.xlu0 %v1318, 64
        %v1833 = vpop.permute.xlu0 %1832
        %1834 = vrot.lane.b32.xlu0 %v1319, 64
        %v1835 = vpop.permute.xlu0 %1834
        %1836 = vrot.lane.b32.xlu0 %v1320, 64
        %v1837 = vpop.permute.xlu0 %1836
        %1838 = vrot.lane.b32.xlu0 %v1337, 64
        %v1839 = vpop.permute.xlu0 %1838
        %1840 = vrot.lane.b32.xlu0 %v1338, 64
        %v1841 = vpop.permute.xlu0 %1840
        %1842 = vrot.lane.b32.xlu0 %v1339, 64
        %v1843 = vpop.permute.xlu0 %1842
        %1844 = vrot.lane.b32.xlu0 %v1340, 64
        %v1845 = vpop.permute.xlu0 %1844
        %v1847 = vsel %vm1052, %v1831, 0
        %v1850 = vsel %vm1052, %v1833, 0
        %v1853 = vsel %vm1052, %v1835, 0
        %v1856 = vsel %vm1052, %v1837, 0
        %v1859 = vsel %vm1052, %v1839, 0
        %v1862 = vsel %vm1052, %v1841, 0
        %v1865 = vsel %vm1052, %v1843, 0
        %v1868 = vsel %vm1052, %v1845, 0
        %1870 = vmatpush.bf16.xpose.msra.mxu0 0
        %1871 = vmatpush.bf16.xpose.msra.mxu0 0
        %1872 = vmatpush.bf16.xpose.msra.mxu0 0
        %1873 = vmatpush.bf16.xpose.msra.mxu0 0
        %1874 = vmatpush.bf16.xpose.msra.mxu0 %v1868
        %1875 = vmatpush.bf16.xpose.msra.mxu0 %v1865
        %1876 = vmatpush.bf16.xpose.msra.mxu0 %v1862
        %1877 = vmatpush.bf16.xpose.msra.mxu0 %v1859
        %1878 = vmatmul.bf16.gmra.mxu0 %v1847
        %v1879 = vpop.f32.mrf.mxu0
        %v1880 = vadd.f32 0.0, %v1879
        %v1881 = vpop.f32.mrf.mxu0
        %v1882 = vadd.f32 0.0, %v1881
        %1883 = vmatmul.bf16.gmra.mxu0 %v1850
        %v1884 = vpop.f32.mrf.mxu0
        %v1885 = vadd.f32 0.0, %v1884
        %v1886 = vpop.f32.mrf.mxu0
        %v1887 = vadd.f32 0.0, %v1886
        %1888 = vmatmul.bf16.gmra.mxu0 %v1853
        %v1889 = vpop.f32.mrf.mxu0
        %v1890 = vadd.f32 0.0, %v1889
        %v1891 = vpop.f32.mrf.mxu0
        %v1892 = vadd.f32 0.0, %v1891
        %1893 = vmatmul.bf16.gmra.mxu0 %v1856
        %v1894 = vpop.f32.mrf.mxu0
        %v1895 = vadd.f32 0.0, %v1894
        %v1896 = vpop.f32.mrf.mxu0
        %v1897 = vadd.f32 0.0, %v1896
        %1898 = vdwg.mxu0
        %v1899 = vsel %vm1293, %v1880, -1e+30
        %v1900 = vsel %vm1294, %v1882, -1e+30
        %v1901 = vsel %vm1295, %v1885, -1e+30
        %v1902 = vsel %vm1296, %v1887, -1e+30
        %v1903 = vsel %vm1297, %v1890, -1e+30
        %v1904 = vsel %vm1298, %v1892, -1e+30
        %v1905 = vsel %vm1299, %v1895, -1e+30
        %v1906 = vsel %vm1300, %v1897, -1e+30
        %v1907 = vsel %vm1070, %v1899, -inf
        %1908 = vmax.xlane.f32.xlu0 %v1907
        %v1909 = vpop.xlane.xlu0 %1908
        %v1910 = vsel %vm1070, %v1900, -inf
        %1911 = vmax.xlane.f32.xlu0 %v1910
        %v1912 = vpop.xlane.xlu0 %1911
        %v1913 = vsel %vm1070, %v1901, -inf
        %1914 = vmax.xlane.f32.xlu0 %v1913
        %v1915 = vpop.xlane.xlu0 %1914
        %v1916 = vsel %vm1070, %v1902, -inf
        %1917 = vmax.xlane.f32.xlu0 %v1916
        %v1918 = vpop.xlane.xlu0 %1917
        %v1919 = vsel %vm1070, %v1903, -inf
        %1920 = vmax.xlane.f32.xlu0 %v1919
        %v1921 = vpop.xlane.xlu0 %1920
        %v1922 = vsel %vm1070, %v1904, -inf
        %1923 = vmax.xlane.f32.xlu0 %v1922
        %v1924 = vpop.xlane.xlu0 %1923
        %v1925 = vsel %vm1070, %v1905, -inf
        %1926 = vmax.xlane.f32.xlu0 %v1925
        %v1927 = vpop.xlane.xlu0 %1926
        %v1928 = vsel %vm1070, %v1906, -inf
        %1929 = vmax.xlane.f32.xlu0 %v1928
        %v1930 = vpop.xlane.xlu0 %1929
        %v1931 = vsub.f32 %v1899, %v1909
        %v1932 = vsub.f32 %v1900, %v1912
        %v1933 = vsub.f32 %v1901, %v1915
        %v1934 = vsub.f32 %v1902, %v1918
        %v1935 = vsub.f32 %v1903, %v1921
        %v1936 = vsub.f32 %v1904, %v1924
        %v1937 = vsub.f32 %v1905, %v1927
        %v1938 = vsub.f32 %v1906, %v1930
        %v1939 = vmul.f32 %v1931, 1.442695
        %v1940 = vpow.pop %v1939
        %v1941 = vmul.f32 %v1932, 1.442695
        %v1942 = vpow.pop %v1941
        %v1943 = vmul.f32 %v1933, 1.442695
        %v1944 = vpow.pop %v1943
        %v1945 = vmul.f32 %v1934, 1.442695
        %v1946 = vpow.pop %v1945
        %v1947 = vmul.f32 %v1935, 1.442695
        %v1948 = vpow.pop %v1947
        %v1949 = vmul.f32 %v1936, 1.442695
        %v1950 = vpow.pop %v1949
        %v1951 = vmul.f32 %v1937, 1.442695
        %v1952 = vpow.pop %v1951
        %v1953 = vmul.f32 %v1938, 1.442695
        %v1954 = vpow.pop %v1953
        %v1955 = vsel %vm1070, %v1940, 0.0
        %1956 = vadd.xlane.f32.xlu0 %v1955
        %v1957 = vpop.xlane.xlu0 %1956
        %v1958 = vsel %vm1070, %v1942, 0.0
        %1959 = vadd.xlane.f32.xlu0 %v1958
        %v1960 = vpop.xlane.xlu0 %1959
        %v1961 = vsel %vm1070, %v1944, 0.0
        %1962 = vadd.xlane.f32.xlu0 %v1961
        %v1963 = vpop.xlane.xlu0 %1962
        %v1964 = vsel %vm1070, %v1946, 0.0
        %1965 = vadd.xlane.f32.xlu0 %v1964
        %v1966 = vpop.xlane.xlu0 %1965
        %v1967 = vsel %vm1070, %v1948, 0.0
        %1968 = vadd.xlane.f32.xlu0 %v1967
        %v1969 = vpop.xlane.xlu0 %1968
        %v1970 = vsel %vm1070, %v1950, 0.0
        %1971 = vadd.xlane.f32.xlu0 %v1970
        %v1972 = vpop.xlane.xlu0 %1971
        %v1973 = vsel %vm1070, %v1952, 0.0
        %1974 = vadd.xlane.f32.xlu0 %v1973
        %v1975 = vpop.xlane.xlu0 %1974
        %v1976 = vsel %vm1070, %v1954, 0.0
        %1977 = vadd.xlane.f32.xlu0 %v1976
        %v1978 = vpop.xlane.xlu0 %1977
        %v1979 = vpack.c.bf16 %v1942, %v1940
        %v1980 = vpack.c.bf16 %v1946, %v1944
        %v1981 = vpack.c.bf16 %v1950, %v1948
        %v1982 = vpack.c.bf16 %v1954, %v1952
        %1983 = vrot.lane.b32.xlu0 %v1494, 64
        %v1984 = vpop.permute.xlu0 %1983
        %1985 = vrot.lane.b32.xlu0 %v1495, 64
        %v1986 = vpop.permute.xlu0 %1985
        %1987 = vrot.lane.b32.xlu0 %v1496, 64
        %v1988 = vpop.permute.xlu0 %1987
        %1989 = vrot.lane.b32.xlu0 %v1497, 64
        %v1990 = vpop.permute.xlu0 %1989
        %v1996 = vsel %vm1070, %v1979, 0
        %v1999 = vsel %vm1070, %v1980, 0
        %v2002 = vsel %vm1070, %v1981, 0
        %v2005 = vsel %vm1070, %v1982, 0
        %2007 = vmatpush.bf16.msra.mxu0 0
        %2008 = vmatpush.bf16.msra.mxu0 0
        %2009 = vmatpush.bf16.msra.mxu0 0
        %2010 = vmatpush.bf16.msra.mxu0 0
        %2011 = vmatpush.bf16.msra.mxu0 %v1990
        %2012 = vmatpush.bf16.msra.mxu0 %v1988
        %2013 = vmatpush.bf16.msra.mxu0 %v1986
        %2014 = vmatpush.bf16.msra.mxu0 %v1984
        %2015 = vmatmul.bf16.gmra.mxu0 %v1996
        %v2016 = vpop.f32.mrf.mxu0
        %v2017 = vadd.f32 0.0, %v2016
        %v2018 = vpop.f32.mrf.mxu0
        %v2019 = vadd.f32 0.0, %v2018
        %2020 = vmatmul.bf16.gmra.mxu0 %v1999
        %v2021 = vpop.f32.mrf.mxu0
        %v2022 = vadd.f32 0.0, %v2021
        %v2023 = vpop.f32.mrf.mxu0
        %v2024 = vadd.f32 0.0, %v2023
        %2025 = vmatmul.bf16.gmra.mxu0 %v2002
        %v2026 = vpop.f32.mrf.mxu0
        %v2027 = vadd.f32 0.0, %v2026
        %v2028 = vpop.f32.mrf.mxu0
        %v2029 = vadd.f32 0.0, %v2028
        %2030 = vmatmul.bf16.gmra.mxu0 %v2005
        %v2031 = vpop.f32.mrf.mxu0
        %v2032 = vadd.f32 0.0, %v2031
        %v2033 = vpop.f32.mrf.mxu0
        %v2034 = vadd.f32 0.0, %v2033
        %2035 = vdwg.mxu0
        %v2036 = vrcp.pop %v1957
        %v2037 = vrcp.pop %v1960
        %v2038 = vrcp.pop %v1963
        %v2039 = vrcp.pop %v1966
        %v2040 = vrcp.pop %v1969
        %v2041 = vrcp.pop %v1972
        %v2042 = vrcp.pop %v1975
        %v2043 = vrcp.pop %v1978
        %v2044 = vmul.f32 %v2017, %v2036
        %v2045 = vmul.f32 %v2019, %v2037
        %v2046 = vmul.f32 %v2022, %v2038
        %v2047 = vmul.f32 %v2024, %v2039
        %v2048 = vmul.f32 %v2027, %v2040
        %v2049 = vmul.f32 %v2029, %v2041
        %v2050 = vmul.f32 %v2032, %v2042
        %v2051 = vmul.f32 %v2034, %v2043
        %2060 = vrot.lane.b32.xlu0 %v2044, 64
        %v2061 = vpop.permute.xlu0 %2060
        %2062 = vrot.lane.b32.xlu0 %v2045, 64
        %v2063 = vpop.permute.xlu0 %2062
        %2064 = vrot.lane.b32.xlu0 %v2046, 64
        %v2065 = vpop.permute.xlu0 %2064
        %2066 = vrot.lane.b32.xlu0 %v2047, 64
        %v2067 = vpop.permute.xlu0 %2066
        %2068 = vrot.lane.b32.xlu0 %v2048, 64
        %v2069 = vpop.permute.xlu0 %2068
        %2070 = vrot.lane.b32.xlu0 %v2049, 64
        %v2071 = vpop.permute.xlu0 %2070
        %2072 = vrot.lane.b32.xlu0 %v2050, 64
        %v2073 = vpop.permute.xlu0 %2072
        %2074 = vrot.lane.b32.xlu0 %v2051, 64
        %v2075 = vpop.permute.xlu0 %2074
        %vm2084 = vcmask 785920
        %2085 = vst.msk [vmem:[#allocation2] sm:$0xff] %vm2084, %v2061
        %2086 = vst.msk [vmem:[#allocation2 + $0x8] sm:$0xff] %vm2084, %v2063
        %2087 = vst.msk [vmem:[#allocation2 + $0x10] sm:$0xff] %vm2084, %v2065
        %2088 = vst.msk [vmem:[#allocation2 + $0x18] sm:$0xff] %vm2084, %v2067
        %2089 = vst.msk [vmem:[#allocation2 + $0x20] sm:$0xff] %vm2084, %v2069
        %2090 = vst.msk [vmem:[#allocation2 + $0x28] sm:$0xff] %vm2084, %v2071
        %2091 = vst.msk [vmem:[#allocation2 + $0x30] sm:$0xff] %vm2084, %v2073
        %2092 = vst.msk [vmem:[#allocation2 + $0x38] sm:$0xff] %vm2084, %v2075
        %2093 = vrot.lane.b32.xlu0 %v1317, 32
        %v2094 = vpop.permute.xlu0 %2093
        %2095 = vrot.lane.b32.xlu0 %v1318, 32
        %v2096 = vpop.permute.xlu0 %2095
        %2097 = vrot.lane.b32.xlu0 %v1319, 32
        %v2098 = vpop.permute.xlu0 %2097
        %2099 = vrot.lane.b32.xlu0 %v1320, 32
        %v2100 = vpop.permute.xlu0 %2099
        %2101 = vrot.lane.b32.xlu0 %v1337, 32
        %v2102 = vpop.permute.xlu0 %2101
        %2103 = vrot.lane.b32.xlu0 %v1338, 32
        %v2104 = vpop.permute.xlu0 %2103
        %2105 = vrot.lane.b32.xlu0 %v1339, 32
        %v2106 = vpop.permute.xlu0 %2105
        %2107 = vrot.lane.b32.xlu0 %v1340, 32
        %v2108 = vpop.permute.xlu0 %2107
        %v2110 = vsel %vm1052, %v2094, 0
        %v2113 = vsel %vm1052, %v2096, 0
        %v2116 = vsel %vm1052, %v2098, 0
        %v2119 = vsel %vm1052, %v2100, 0
        %v2122 = vsel %vm1052, %v2102, 0
        %v2125 = vsel %vm1052, %v2104, 0
        %v2128 = vsel %vm1052, %v2106, 0
        %v2131 = vsel %vm1052, %v2108, 0
        %2133 = vmatpush.bf16.xpose.msra.mxu0 0
        %2134 = vmatpush.bf16.xpose.msra.mxu0 0
        %2135 = vmatpush.bf16.xpose.msra.mxu0 0
        %2136 = vmatpush.bf16.xpose.msra.mxu0 0
        %2137 = vmatpush.bf16.xpose.msra.mxu0 %v2131
        %2138 = vmatpush.bf16.xpose.msra.mxu0 %v2128
        %2139 = vmatpush.bf16.xpose.msra.mxu0 %v2125
        %2140 = vmatpush.bf16.xpose.msra.mxu0 %v2122
        %2141 = vmatmul.bf16.gmra.mxu0 %v2110
        %v2142 = vpop.f32.mrf.mxu0
        %v2143 = vadd.f32 0.0, %v2142
        %v2144 = vpop.f32.mrf.mxu0
        %v2145 = vadd.f32 0.0, %v2144
        %2146 = vmatmul.bf16.gmra.mxu0 %v2113
        %v2147 = vpop.f32.mrf.mxu0
        %v2148 = vadd.f32 0.0, %v2147
        %v2149 = vpop.f32.mrf.mxu0
        %v2150 = vadd.f32 0.0, %v2149
        %2151 = vmatmul.bf16.gmra.mxu0 %v2116
        %v2152 = vpop.f32.mrf.mxu0
        %v2153 = vadd.f32 0.0, %v2152
        %v2154 = vpop.f32.mrf.mxu0
        %v2155 = vadd.f32 0.0, %v2154
        %2156 = vmatmul.bf16.gmra.mxu0 %v2119
        %v2157 = vpop.f32.mrf.mxu0
        %v2158 = vadd.f32 0.0, %v2157
        %v2159 = vpop.f32.mrf.mxu0
        %v2160 = vadd.f32 0.0, %v2159
        %2161 = vdwg.mxu0
        %v2162 = vsel %vm1293, %v2143, -1e+30
        %v2163 = vsel %vm1294, %v2145, -1e+30
        %v2164 = vsel %vm1295, %v2148, -1e+30
        %v2165 = vsel %vm1296, %v2150, -1e+30
        %v2166 = vsel %vm1297, %v2153, -1e+30
        %v2167 = vsel %vm1298, %v2155, -1e+30
        %v2168 = vsel %vm1299, %v2158, -1e+30
        %v2169 = vsel %vm1300, %v2160, -1e+30
        %v2170 = vsel %vm1070, %v2162, -inf
        %2171 = vmax.xlane.f32.xlu0 %v2170
        %v2172 = vpop.xlane.xlu0 %2171
        %v2173 = vsel %vm1070, %v2163, -inf
        %2174 = vmax.xlane.f32.xlu0 %v2173
        %v2175 = vpop.xlane.xlu0 %2174
        %v2176 = vsel %vm1070, %v2164, -inf
        %2177 = vmax.xlane.f32.xlu0 %v2176
        %v2178 = vpop.xlane.xlu0 %2177
        %v2179 = vsel %vm1070, %v2165, -inf
        %2180 = vmax.xlane.f32.xlu0 %v2179
        %v2181 = vpop.xlane.xlu0 %2180
        %v2182 = vsel %vm1070, %v2166, -inf
        %2183 = vmax.xlane.f32.xlu0 %v2182
        %v2184 = vpop.xlane.xlu0 %2183
        %v2185 = vsel %vm1070, %v2167, -inf
        %2186 = vmax.xlane.f32.xlu0 %v2185
        %v2187 = vpop.xlane.xlu0 %2186
        %v2188 = vsel %vm1070, %v2168, -inf
        %2189 = vmax.xlane.f32.xlu0 %v2188
        %v2190 = vpop.xlane.xlu0 %2189
        %v2191 = vsel %vm1070, %v2169, -inf
        %2192 = vmax.xlane.f32.xlu0 %v2191
        %v2193 = vpop.xlane.xlu0 %2192
        %v2194 = vsub.f32 %v2162, %v2172
        %v2195 = vsub.f32 %v2163, %v2175
        %v2196 = vsub.f32 %v2164, %v2178
        %v2197 = vsub.f32 %v2165, %v2181
        %v2198 = vsub.f32 %v2166, %v2184
        %v2199 = vsub.f32 %v2167, %v2187
        %v2200 = vsub.f32 %v2168, %v2190
        %v2201 = vsub.f32 %v2169, %v2193
        %v2202 = vmul.f32 %v2194, 1.442695
        %v2203 = vpow.pop %v2202
        %v2204 = vmul.f32 %v2195, 1.442695
        %v2205 = vpow.pop %v2204
        %v2206 = vmul.f32 %v2196, 1.442695
        %v2207 = vpow.pop %v2206
        %v2208 = vmul.f32 %v2197, 1.442695
        %v2209 = vpow.pop %v2208
        %v2210 = vmul.f32 %v2198, 1.442695
        %v2211 = vpow.pop %v2210
        %v2212 = vmul.f32 %v2199, 1.442695
        %v2213 = vpow.pop %v2212
        %v2214 = vmul.f32 %v2200, 1.442695
        %v2215 = vpow.pop %v2214
        %v2216 = vmul.f32 %v2201, 1.442695
        %v2217 = vpow.pop %v2216
        %v2218 = vsel %vm1070, %v2203, 0.0
        %2219 = vadd.xlane.f32.xlu0 %v2218
        %v2220 = vpop.xlane.xlu0 %2219
        %v2221 = vsel %vm1070, %v2205, 0.0
        %2222 = vadd.xlane.f32.xlu0 %v2221
        %v2223 = vpop.xlane.xlu0 %2222
        %v2224 = vsel %vm1070, %v2207, 0.0
        %2225 = vadd.xlane.f32.xlu0 %v2224
        %v2226 = vpop.xlane.xlu0 %2225
        %v2227 = vsel %vm1070, %v2209, 0.0
        %2228 = vadd.xlane.f32.xlu0 %v2227
        %v2229 = vpop.xlane.xlu0 %2228
        %v2230 = vsel %vm1070, %v2211, 0.0
        %2231 = vadd.xlane.f32.xlu0 %v2230
        %v2232 = vpop.xlane.xlu0 %2231
        %v2233 = vsel %vm1070, %v2213, 0.0
        %2234 = vadd.xlane.f32.xlu0 %v2233
        %v2235 = vpop.xlane.xlu0 %2234
        %v2236 = vsel %vm1070, %v2215, 0.0
        %2237 = vadd.xlane.f32.xlu0 %v2236
        %v2238 = vpop.xlane.xlu0 %2237
        %v2239 = vsel %vm1070, %v2217, 0.0
        %2240 = vadd.xlane.f32.xlu0 %v2239
        %v2241 = vpop.xlane.xlu0 %2240
        %v2242 = vpack.c.bf16 %v2205, %v2203
        %v2243 = vpack.c.bf16 %v2209, %v2207
        %v2244 = vpack.c.bf16 %v2213, %v2211
        %v2245 = vpack.c.bf16 %v2217, %v2215
        %2246 = vrot.lane.b32.xlu0 %v1494, 32
        %v2247 = vpop.permute.xlu0 %2246
        %2248 = vrot.lane.b32.xlu0 %v1495, 32
        %v2249 = vpop.permute.xlu0 %2248
        %2250 = vrot.lane.b32.xlu0 %v1496, 32
        %v2251 = vpop.permute.xlu0 %2250
        %2252 = vrot.lane.b32.xlu0 %v1497, 32
        %v2253 = vpop.permute.xlu0 %2252
        %v2259 = vsel %vm1070, %v2242, 0
        %v2262 = vsel %vm1070, %v2243, 0
        %v2265 = vsel %vm1070, %v2244, 0
        %v2268 = vsel %vm1070, %v2245, 0
        %2270 = vmatpush.bf16.msra.mxu0 0
        %2271 = vmatpush.bf16.msra.mxu0 0
        %2272 = vmatpush.bf16.msra.mxu0 0
        %2273 = vmatpush.bf16.msra.mxu0 0
        %2274 = vmatpush.bf16.msra.mxu0 %v2253
        %2275 = vmatpush.bf16.msra.mxu0 %v2251
        %2276 = vmatpush.bf16.msra.mxu0 %v2249
        %2277 = vmatpush.bf16.msra.mxu0 %v2247
        %2278 = vmatmul.bf16.gmra.mxu0 %v2259
        %v2279 = vpop.f32.mrf.mxu0
        %v2280 = vadd.f32 0.0, %v2279
        %v2281 = vpop.f32.mrf.mxu0
        %v2282 = vadd.f32 0.0, %v2281
        %2283 = vmatmul.bf16.gmra.mxu0 %v2262
        %v2284 = vpop.f32.mrf.mxu0
        %v2285 = vadd.f32 0.0, %v2284
        %v2286 = vpop.f32.mrf.mxu0
        %v2287 = vadd.f32 0.0, %v2286
        %2288 = vmatmul.bf16.gmra.mxu0 %v2265
        %v2289 = vpop.f32.mrf.mxu0
        %v2290 = vadd.f32 0.0, %v2289
        %v2291 = vpop.f32.mrf.mxu0
        %v2292 = vadd.f32 0.0, %v2291
        %2293 = vmatmul.bf16.gmra.mxu0 %v2268
        %v2294 = vpop.f32.mrf.mxu0
        %v2295 = vadd.f32 0.0, %v2294
        %v2296 = vpop.f32.mrf.mxu0
        %v2297 = vadd.f32 0.0, %v2296
        %2298 = vdwg.mxu0
        %v2299 = vrcp.pop %v2220
        %v2300 = vrcp.pop %v2223
        %v2301 = vrcp.pop %v2226
        %v2302 = vrcp.pop %v2229
        %v2303 = vrcp.pop %v2232
        %v2304 = vrcp.pop %v2235
        %v2305 = vrcp.pop %v2238
        %v2306 = vrcp.pop %v2241
        %v2307 = vmul.f32 %v2280, %v2299
        %v2308 = vmul.f32 %v2282, %v2300
        %v2309 = vmul.f32 %v2285, %v2301
        %v2310 = vmul.f32 %v2287, %v2302
        %v2311 = vmul.f32 %v2290, %v2303
        %v2312 = vmul.f32 %v2292, %v2304
        %v2313 = vmul.f32 %v2295, %v2305
        %v2314 = vmul.f32 %v2297, %v2306
        %2323 = vrot.lane.b32.xlu0 %v2307, 96
        %v2324 = vpop.permute.xlu0 %2323
        %2325 = vrot.lane.b32.xlu0 %v2308, 96
        %v2326 = vpop.permute.xlu0 %2325
        %2327 = vrot.lane.b32.xlu0 %v2309, 96
        %v2328 = vpop.permute.xlu0 %2327
        %2329 = vrot.lane.b32.xlu0 %v2310, 96
        %v2330 = vpop.permute.xlu0 %2329
        %2331 = vrot.lane.b32.xlu0 %v2311, 96
        %v2332 = vpop.permute.xlu0 %2331
        %2333 = vrot.lane.b32.xlu0 %v2312, 96
        %v2334 = vpop.permute.xlu0 %2333
        %2335 = vrot.lane.b32.xlu0 %v2313, 96
        %v2336 = vpop.permute.xlu0 %2335
        %2337 = vrot.lane.b32.xlu0 %v2314, 96
        %v2338 = vpop.permute.xlu0 %2337
        %vm2347 = vcmask 1048320
        %2348 = vst.msk [vmem:[#allocation2] sm:$0xff] %vm2347, %v2324
        %2349 = vst.msk [vmem:[#allocation2 + $0x8] sm:$0xff] %vm2347, %v2326
        %2350 = vst.msk [vmem:[#allocation2 + $0x10] sm:$0xff] %vm2347, %v2328
        %2351 = vst.msk [vmem:[#allocation2 + $0x18] sm:$0xff] %vm2347, %v2330
        %2352 = vst.msk [vmem:[#allocation2 + $0x20] sm:$0xff] %vm2347, %v2332
        %2353 = vst.msk [vmem:[#allocation2 + $0x28] sm:$0xff] %vm2347, %v2334
        %2354 = vst.msk [vmem:[#allocation2 + $0x30] sm:$0xff] %vm2347, %v2336
        %2355 = vst.msk [vmem:[#allocation2 + $0x38] sm:$0xff] %vm2347, %v2338
        %v2356 = vld [vmem:[#allocation2] sm:$0xff]
        %v2357 = vld [vmem:[#allocation2 + $0x8] sm:$0xff]
        %v2358 = vld [vmem:[#allocation2 + $0x10] sm:$0xff]
        %v2359 = vld [vmem:[#allocation2 + $0x18] sm:$0xff]
        %v2360 = vld [vmem:[#allocation2 + $0x20] sm:$0xff]
        %v2361 = vld [vmem:[#allocation2 + $0x28] sm:$0xff]
        %v2362 = vld [vmem:[#allocation2 + $0x30] sm:$0xff]
        %v2363 = vld [vmem:[#allocation2 + $0x38] sm:$0xff]
        %v2364 = vpack.c.bf16 %v2357, %v2356
        %v2365 = vpack.c.bf16 %v2359, %v2358
        %v2366 = vpack.c.bf16 %v2361, %v2360
        %v2367 = vpack.c.bf16 %v2363, %v2362
        %v2368 = vld [vmem:[#allocation8] sm:$0xf]
        %v2369 = vld [vmem:[#allocation8 + $0x4] sm:$0xf]
        %v2370 = vld [vmem:[#allocation8 + $0x8] sm:$0xf]
        %v2371 = vld [vmem:[#allocation8 + $0xc] sm:$0xf]
        %v2372 = vld [vmem:[#allocation8 + $0x10] sm:$0xf]
        %v2373 = vld [vmem:[#allocation8 + $0x14] sm:$0xf]
        %v2374 = vld [vmem:[#allocation8 + $0x18] sm:$0xf]
        %v2375 = vld [vmem:[#allocation8 + $0x1c] sm:$0xf]
        %v2376 = vld [vmem:[#allocation8 + $0x20] sm:$0xf]
        %v2377 = vld [vmem:[#allocation8 + $0x24] sm:$0xf]
        %v2378 = vld [vmem:[#allocation8 + $0x28] sm:$0xf]
        %v2379 = vld [vmem:[#allocation8 + $0x2c] sm:$0xf]
        %v2380 = vld [vmem:[#allocation8 + $0x30] sm:$0xf]
        %v2381 = vld [vmem:[#allocation8 + $0x34] sm:$0xf]
        %v2382 = vld [vmem:[#allocation8 + $0x38] sm:$0xf]
        %v2383 = vld [vmem:[#allocation8 + $0x3c] sm:$0xf]
        %v2400 = vunpack.c.l.b16 %v2368
        %v2401 = vunpack.c.l.b16 %v2369
        %v2402 = vunpack.c.l.b16 %v2370
        %v2403 = vunpack.c.l.b16 %v2371
        %v2404 = vunpack.c.l.b16 %v2372
        %v2405 = vunpack.c.l.b16 %v2373
        %v2406 = vunpack.c.l.b16 %v2374
        %v2407 = vunpack.c.l.b16 %v2375
        %v2408 = vunpack.c.l.b16 %v2376
        %v2409 = vunpack.c.l.b16 %v2377
        %v2410 = vunpack.c.l.b16 %v2378
        %v2411 = vunpack.c.l.b16 %v2379
        %v2412 = vunpack.c.l.b16 %v2380
        %v2413 = vunpack.c.l.b16 %v2381
        %v2414 = vunpack.c.l.b16 %v2382
        %v2415 = vunpack.c.l.b16 %v2383
        %v2416 = vpack.c.b16 %v2401, %v2400
        %v2417 = vpack.c.b16 %v2403, %v2402
        %v2418 = vpack.c.b16 %v2405, %v2404
        %v2419 = vpack.c.b16 %v2407, %v2406
        %v2420 = vpack.c.b16 %v2409, %v2408
        %v2421 = vpack.c.b16 %v2411, %v2410
        %v2422 = vpack.c.b16 %v2413, %v2412
        %v2423 = vpack.c.b16 %v2415, %v2414
        %2432 = vmatpush.bf16.msra.mxu0 %v2423
        %2433 = vmatpush.bf16.msra.mxu0 %v2422
        %2434 = vmatpush.bf16.msra.mxu0 %v2421
        %2435 = vmatpush.bf16.msra.mxu0 %v2420
        %2436 = vmatpush.bf16.msra.mxu0 %v2419
        %2437 = vmatpush.bf16.msra.mxu0 %v2418
        %2438 = vmatpush.bf16.msra.mxu0 %v2417
        %2439 = vmatpush.bf16.msra.mxu0 %v2416
        %2440 = vmatmul.bf16.gmra.mxu0 %v2364
        %v2441 = vpop.f32.mrf.mxu0
        %v2442 = vadd.f32 0.0, %v2441
        %v2443 = vpop.f32.mrf.mxu0
        %v2444 = vadd.f32 0.0, %v2443
        %2445 = vmatmul.bf16.gmra.mxu0 %v2365
        %v2446 = vpop.f32.mrf.mxu0
        %v2447 = vadd.f32 0.0, %v2446
        %v2448 = vpop.f32.mrf.mxu0
        %v2449 = vadd.f32 0.0, %v2448
        %2450 = vmatmul.bf16.gmra.mxu0 %v2366
        %v2451 = vpop.f32.mrf.mxu0
        %v2452 = vadd.f32 0.0, %v2451
        %v2453 = vpop.f32.mrf.mxu0
        %v2454 = vadd.f32 0.0, %v2453
        %2455 = vmatmul.bf16.gmra.mxu0 %v2367
        %v2456 = vpop.f32.mrf.mxu0
        %v2457 = vadd.f32 0.0, %v2456
        %v2458 = vpop.f32.mrf.mxu0
        %v2459 = vadd.f32 0.0, %v2458
        %2460 = vdwg.mxu0
        %v2461 = vadd.f32 %v525, %v2442
        %v2462 = vadd.f32 %v526, %v2444
        %v2463 = vadd.f32 %v527, %v2447
        %v2464 = vadd.f32 %v528, %v2449
        %v2465 = vadd.f32 %v529, %v2452
        %v2466 = vadd.f32 %v530, %v2454
        %v2467 = vadd.f32 %v531, %v2457
        %v2468 = vadd.f32 %v532, %v2459
        %v2469 = vmul.f32 %v2461, %v2461
        %v2470 = vmul.f32 %v2462, %v2462
        %v2471 = vmul.f32 %v2463, %v2463
        %v2472 = vmul.f32 %v2464, %v2464
        %v2473 = vmul.f32 %v2465, %v2465
        %v2474 = vmul.f32 %v2466, %v2466
        %v2475 = vmul.f32 %v2467, %v2467
        %v2476 = vmul.f32 %v2468, %v2468
        %2477 = vadd.xlane.f32.xlu0 %v2469
        %v2478 = vpop.xlane.xlu0 %2477
        %2479 = vadd.xlane.f32.xlu0 %v2470
        %v2480 = vpop.xlane.xlu0 %2479
        %2481 = vadd.xlane.f32.xlu0 %v2471
        %v2482 = vpop.xlane.xlu0 %2481
        %2483 = vadd.xlane.f32.xlu0 %v2472
        %v2484 = vpop.xlane.xlu0 %2483
        %2485 = vadd.xlane.f32.xlu0 %v2473
        %v2486 = vpop.xlane.xlu0 %2485
        %2487 = vadd.xlane.f32.xlu0 %v2474
        %v2488 = vpop.xlane.xlu0 %2487
        %2489 = vadd.xlane.f32.xlu0 %v2475
        %v2490 = vpop.xlane.xlu0 %2489
        %2491 = vadd.xlane.f32.xlu0 %v2476
        %v2492 = vpop.xlane.xlu0 %2491
        %v2493 = vmul.f32 %v2478, %v563
        %v2494 = vmul.f32 %v2480, %v563
        %v2495 = vmul.f32 %v2482, %v563
        %v2496 = vmul.f32 %v2484, %v563
        %v2497 = vmul.f32 %v2486, %v563
        %v2498 = vmul.f32 %v2488, %v563
        %v2499 = vmul.f32 %v2490, %v563
        %v2500 = vmul.f32 %v2492, %v563
        %v2501 = vadd.f32 %v2493, 1e-05
        %v2502 = vadd.f32 %v2494, 1e-05
        %v2503 = vadd.f32 %v2495, 1e-05
        %v2504 = vadd.f32 %v2496, 1e-05
        %v2505 = vadd.f32 %v2497, 1e-05
        %v2506 = vadd.f32 %v2498, 1e-05
        %v2507 = vadd.f32 %v2499, 1e-05
        %v2508 = vadd.f32 %v2500, 1e-05
        %v2509 = vrsqrt.pop %v2501
        %v2510 = vmul.f32 %v2509, %v2501
        %v2511 = vmul.f32 %v2510, %v2509
        %v2512 = vmul.f32 0.5, %v2511
        %v2513 = vsub.f32 1.5, %v2512
        %v2514 = vmul.f32 %v2509, %v2513
        %vm2515 = vweird.f32 %v2501
        %vm2516 = vweird.f32 %v2509
        %vm2517 = vmor %vm2515, %vm2516
        %v2518 = vsel %vm2517, %v2509, %v2514
        %v2519 = vrsqrt.pop %v2502
        %v2520 = vmul.f32 %v2519, %v2502
        %v2521 = vmul.f32 %v2520, %v2519
        %v2522 = vmul.f32 0.5, %v2521
        %v2523 = vsub.f32 1.5, %v2522
        %v2524 = vmul.f32 %v2519, %v2523
        %vm2525 = vweird.f32 %v2502
        %vm2526 = vweird.f32 %v2519
        %vm2527 = vmor %vm2525, %vm2526
        %v2528 = vsel %vm2527, %v2519, %v2524
        %v2529 = vrsqrt.pop %v2503
        %v2530 = vmul.f32 %v2529, %v2503
        %v2531 = vmul.f32 %v2530, %v2529
        %v2532 = vmul.f32 0.5, %v2531
        %v2533 = vsub.f32 1.5, %v2532
        %v2534 = vmul.f32 %v2529, %v2533
        %vm2535 = vweird.f32 %v2503
        %vm2536 = vweird.f32 %v2529
        %vm2537 = vmor %vm2535, %vm2536
        %v2538 = vsel %vm2537, %v2529, %v2534
        %v2539 = vrsqrt.pop %v2504
        %v2540 = vmul.f32 %v2539, %v2504
        %v2541 = vmul.f32 %v2540, %v2539
        %v2542 = vmul.f32 0.5, %v2541
        %v2543 = vsub.f32 1.5, %v2542
        %v2544 = vmul.f32 %v2539, %v2543
        %vm2545 = vweird.f32 %v2504
        %vm2546 = vweird.f32 %v2539
        %vm2547 = vmor %vm2545, %vm2546
        %v2548 = vsel %vm2547, %v2539, %v2544
        %v2549 = vrsqrt.pop %v2505
        %v2550 = vmul.f32 %v2549, %v2505
        %v2551 = vmul.f32 %v2550, %v2549
        %v2552 = vmul.f32 0.5, %v2551
        %v2553 = vsub.f32 1.5, %v2552
        %v2554 = vmul.f32 %v2549, %v2553
        %vm2555 = vweird.f32 %v2505
        %vm2556 = vweird.f32 %v2549
        %vm2557 = vmor %vm2555, %vm2556
        %v2558 = vsel %vm2557, %v2549, %v2554
        %v2559 = vrsqrt.pop %v2506
        %v2560 = vmul.f32 %v2559, %v2506
        %v2561 = vmul.f32 %v2560, %v2559
        %v2562 = vmul.f32 0.5, %v2561
        %v2563 = vsub.f32 1.5, %v2562
        %v2564 = vmul.f32 %v2559, %v2563
        %vm2565 = vweird.f32 %v2506
        %vm2566 = vweird.f32 %v2559
        %vm2567 = vmor %vm2565, %vm2566
        %v2568 = vsel %vm2567, %v2559, %v2564
        %v2569 = vrsqrt.pop %v2507
        %v2570 = vmul.f32 %v2569, %v2507
        %v2571 = vmul.f32 %v2570, %v2569
        %v2572 = vmul.f32 0.5, %v2571
        %v2573 = vsub.f32 1.5, %v2572
        %v2574 = vmul.f32 %v2569, %v2573
        %vm2575 = vweird.f32 %v2507
        %vm2576 = vweird.f32 %v2569
        %vm2577 = vmor %vm2575, %vm2576
        %v2578 = vsel %vm2577, %v2569, %v2574
        %v2579 = vrsqrt.pop %v2508
        %v2580 = vmul.f32 %v2579, %v2508
        %v2581 = vmul.f32 %v2580, %v2579
        %v2582 = vmul.f32 0.5, %v2581
        %v2583 = vsub.f32 1.5, %v2582
        %v2584 = vmul.f32 %v2579, %v2583
        %vm2585 = vweird.f32 %v2508
        %vm2586 = vweird.f32 %v2579
        %vm2587 = vmor %vm2585, %vm2586
        %v2588 = vsel %vm2587, %v2579, %v2584
        %v2589 = vmul.f32 %v2461, %v2518
        %v2590 = vmul.f32 %v2462, %v2528
        %v2591 = vmul.f32 %v2463, %v2538
        %v2592 = vmul.f32 %v2464, %v2548
        %v2593 = vmul.f32 %v2465, %v2558
        %v2594 = vmul.f32 %v2466, %v2568
        %v2595 = vmul.f32 %v2467, %v2578
        %v2596 = vmul.f32 %v2468, %v2588
        %v2597 = vld [vmem:[%s6] sm:$0x1]
        %v2599 = vperm.slane %v2597, 0
        %v2601 = vmul.f32 %v2589, %v2599
        %v2602 = vmul.f32 %v2590, %v2599
        %v2603 = vmul.f32 %v2591, %v2599
        %v2604 = vmul.f32 %v2592, %v2599
        %v2605 = vmul.f32 %v2593, %v2599
        %v2606 = vmul.f32 %v2594, %v2599
        %v2607 = vmul.f32 %v2595, %v2599
        %v2608 = vmul.f32 %v2596, %v2599
        %v2609 = vpack.c.bf16 %v2602, %v2601
        %v2610 = vpack.c.bf16 %v2604, %v2603
        %v2611 = vpack.c.bf16 %v2606, %v2605
        %v2612 = vpack.c.bf16 %v2608, %v2607
        %v2613 = vld [vmem:[#allocation9] sm:$0xff]
        %v2614 = vld [vmem:[#allocation9 + $0x8] sm:$0xff]
        %v2615 = vld [vmem:[#allocation9 + $0x10] sm:$0xff]
        %v2616 = vld [vmem:[#allocation9 + $0x18] sm:$0xff]
        %v2617 = vld [vmem:[#allocation9 + $0x20] sm:$0xff]
        %v2618 = vld [vmem:[#allocation9 + $0x28] sm:$0xff]
        %v2619 = vld [vmem:[#allocation9 + $0x30] sm:$0xff]
        %v2620 = vld [vmem:[#allocation9 + $0x38] sm:$0xff]
        %v2621 = vld [vmem:[#allocation9 + $0x40] sm:$0xff]
        %v2622 = vld [vmem:[#allocation9 + $0x48] sm:$0xff]
        %v2623 = vld [vmem:[#allocation9 + $0x50] sm:$0xff]
        %v2624 = vld [vmem:[#allocation9 + $0x58] sm:$0xff]
        %v2625 = vld [vmem:[#allocation9 + $0x60] sm:$0xff]
        %v2626 = vld [vmem:[#allocation9 + $0x68] sm:$0xff]
        %v2627 = vld [vmem:[#allocation9 + $0x70] sm:$0xff]
        %v2628 = vld [vmem:[#allocation9 + $0x78] sm:$0xff]
        %v2629 = vld [vmem:[#allocation9 + $0x80] sm:$0xff]
        %v2630 = vld [vmem:[#allocation9 + $0x88] sm:$0xff]
        %v2631 = vld [vmem:[#allocation9 + $0x90] sm:$0xff]
        %v2632 = vld [vmem:[#allocation9 + $0x98] sm:$0xff]
        %v2633 = vld [vmem:[#allocation9 + $0xa0] sm:$0xff]
        %v2634 = vld [vmem:[#allocation9 + $0xa8] sm:$0xff]
        %v2635 = vld [vmem:[#allocation9 + $0xb0] sm:$0xff]
        %v2636 = vld [vmem:[#allocation9 + $0xb8] sm:$0xff]
        %v2637 = vld [vmem:[#allocation9 + $0xc0] sm:$0xff]
        %v2638 = vld [vmem:[#allocation9 + $0xc8] sm:$0xff]
        %v2639 = vld [vmem:[#allocation9 + $0xd0] sm:$0xff]
        %v2640 = vld [vmem:[#allocation9 + $0xd8] sm:$0xff]
        %v2641 = vld [vmem:[#allocation9 + $0xe0] sm:$0xff]
        %v2642 = vld [vmem:[#allocation9 + $0xe8] sm:$0xff]
        %v2643 = vld [vmem:[#allocation9 + $0xf0] sm:$0xff]
        %v2644 = vld [vmem:[#allocation9 + $0xf8] sm:$0xff]
        %v2645 = vld [vmem:[#allocation9 + $0x100] sm:$0xff]
        %v2646 = vld [vmem:[#allocation9 + $0x108] sm:$0xff]
        %v2647 = vld [vmem:[#allocation9 + $0x110] sm:$0xff]
        %v2648 = vld [vmem:[#allocation9 + $0x118] sm:$0xff]
        %v2649 = vld [vmem:[#allocation9 + $0x120] sm:$0xff]
        %v2650 = vld [vmem:[#allocation9 + $0x128] sm:$0xff]
        %v2651 = vld [vmem:[#allocation9 + $0x130] sm:$0xff]
        %v2652 = vld [vmem:[#allocation9 + $0x138] sm:$0xff]
        %v2653 = vld [vmem:[#allocation9 + $0x140] sm:$0xff]
        %v2654 = vld [vmem:[#allocation9 + $0x148] sm:$0xff]
        %v2655 = vld [vmem:[#allocation9 + $0x150] sm:$0xff]
        %v2656 = vld [vmem:[#allocation9 + $0x158] sm:$0xff]
        %v2657 = vld [vmem:[#allocation9 + $0x160] sm:$0xff]
        %v2658 = vld [vmem:[#allocation9 + $0x168] sm:$0xff]
        %v2659 = vld [vmem:[#allocation9 + $0x170] sm:$0xff]
        %v2660 = vld [vmem:[#allocation9 + $0x178] sm:$0xff]
        %v2709 = vunpack.c.l.b16 %v2613
        %v2710 = vunpack.c.h.b16 %v2613
        %v2711 = vunpack.c.l.b16 %v2614
        %v2712 = vunpack.c.h.b16 %v2614
        %v2713 = vunpack.c.l.b16 %v2615
        %v2714 = vunpack.c.h.b16 %v2615
        %v2715 = vunpack.c.l.b16 %v2616
        %v2716 = vunpack.c.h.b16 %v2616
        %v2717 = vunpack.c.l.b16 %v2617
        %v2718 = vunpack.c.h.b16 %v2617
        %v2719 = vunpack.c.l.b16 %v2618
        %v2720 = vunpack.c.h.b16 %v2618
        %v2721 = vunpack.c.l.b16 %v2619
        %v2722 = vunpack.c.h.b16 %v2619
        %v2723 = vunpack.c.l.b16 %v2620
        %v2724 = vunpack.c.h.b16 %v2620
        %v2725 = vunpack.c.l.b16 %v2621
        %v2726 = vunpack.c.h.b16 %v2621
        %v2727 = vunpack.c.l.b16 %v2622
        %v2728 = vunpack.c.h.b16 %v2622
        %v2729 = vunpack.c.l.b16 %v2623
        %v2730 = vunpack.c.h.b16 %v2623
        %v2731 = vunpack.c.l.b16 %v2624
        %v2732 = vunpack.c.h.b16 %v2624
        %v2733 = vunpack.c.l.b16 %v2625
        %v2734 = vunpack.c.h.b16 %v2625
        %v2735 = vunpack.c.l.b16 %v2626
        %v2736 = vunpack.c.h.b16 %v2626
        %v2737 = vunpack.c.l.b16 %v2627
        %v2738 = vunpack.c.h.b16 %v2627
        %v2739 = vunpack.c.l.b16 %v2628
        %v2740 = vunpack.c.h.b16 %v2628
        %v2741 = vunpack.c.l.b16 %v2629
        %v2742 = vunpack.c.h.b16 %v2629
        %v2743 = vunpack.c.l.b16 %v2630
        %v2744 = vunpack.c.h.b16 %v2630
        %v2745 = vunpack.c.l.b16 %v2631
        %v2746 = vunpack.c.h.b16 %v2631
        %v2747 = vunpack.c.l.b16 %v2632
        %v2748 = vunpack.c.h.b16 %v2632
        %v2749 = vunpack.c.l.b16 %v2633
        %v2750 = vunpack.c.h.b16 %v2633
        %v2751 = vunpack.c.l.b16 %v2634
        %v2752 = vunpack.c.h.b16 %v2634
        %v2753 = vunpack.c.l.b16 %v2635
        %v2754 = vunpack.c.h.b16 %v2635
        %v2755 = vunpack.c.l.b16 %v2636
        %v2756 = vunpack.c.h.b16 %v2636
        %v2757 = vunpack.c.l.b16 %v2637
        %v2758 = vunpack.c.h.b16 %v2637
        %v2759 = vunpack.c.l.b16 %v2638
        %v2760 = vunpack.c.h.b16 %v2638
        %v2761 = vunpack.c.l.b16 %v2639
        %v2762 = vunpack.c.h.b16 %v2639
        %v2763 = vunpack.c.l.b16 %v2640
        %v2764 = vunpack.c.h.b16 %v2640
        %v2765 = vunpack.c.l.b16 %v2641
        %v2766 = vunpack.c.h.b16 %v2641
        %v2767 = vunpack.c.l.b16 %v2642
        %v2768 = vunpack.c.h.b16 %v2642
        %v2769 = vunpack.c.l.b16 %v2643
        %v2770 = vunpack.c.h.b16 %v2643
        %v2771 = vunpack.c.l.b16 %v2644
        %v2772 = vunpack.c.h.b16 %v2644
        %v2773 = vunpack.c.l.b16 %v2645
        %v2774 = vunpack.c.h.b16 %v2645
        %v2775 = vunpack.c.l.b16 %v2646
        %v2776 = vunpack.c.h.b16 %v2646
        %v2777 = vunpack.c.l.b16 %v2647
        %v2778 = vunpack.c.h.b16 %v2647
        %v2779 = vunpack.c.l.b16 %v2648
        %v2780 = vunpack.c.h.b16 %v2648
        %v2781 = vunpack.c.l.b16 %v2649
        %v2782 = vunpack.c.h.b16 %v2649
        %v2783 = vunpack.c.l.b16 %v2650
        %v2784 = vunpack.c.h.b16 %v2650
        %v2785 = vunpack.c.l.b16 %v2651
        %v2786 = vunpack.c.h.b16 %v2651
        %v2787 = vunpack.c.l.b16 %v2652
        %v2788 = vunpack.c.h.b16 %v2652
        %v2789 = vunpack.c.l.b16 %v2653
        %v2790 = vunpack.c.h.b16 %v2653
        %v2791 = vunpack.c.l.b16 %v2654
        %v2792 = vunpack.c.h.b16 %v2654
        %v2793 = vunpack.c.l.b16 %v2655
        %v2794 = vunpack.c.h.b16 %v2655
        %v2795 = vunpack.c.l.b16 %v2656
        %v2796 = vunpack.c.h.b16 %v2656
        %v2797 = vunpack.c.l.b16 %v2657
        %v2798 = vunpack.c.h.b16 %v2657
        %v2799 = vunpack.c.l.b16 %v2658
        %v2800 = vunpack.c.h.b16 %v2658
        %v2801 = vunpack.c.l.b16 %v2659
        %v2802 = vunpack.c.h.b16 %v2659
        %v2803 = vunpack.c.l.b16 %v2660
        %v2804 = vunpack.c.h.b16 %v2660
        %v2805 = vpack.c.b16 %v2715, %v2709
        %v2806 = vpack.c.b16 %v2716, %v2710
        %v2807 = vpack.c.b16 %v2717, %v2711
        %v2808 = vpack.c.b16 %v2718, %v2712
        %v2809 = vpack.c.b16 %v2719, %v2713
        %v2810 = vpack.c.b16 %v2720, %v2714
        %v2811 = vpack.c.b16 %v2727, %v2721
        %v2812 = vpack.c.b16 %v2728, %v2722
        %v2813 = vpack.c.b16 %v2729, %v2723
        %v2814 = vpack.c.b16 %v2730, %v2724
        %v2815 = vpack.c.b16 %v2731, %v2725
        %v2816 = vpack.c.b16 %v2732, %v2726
        %v2817 = vpack.c.b16 %v2739, %v2733
        %v2818 = vpack.c.b16 %v2740, %v2734
        %v2819 = vpack.c.b16 %v2741, %v2735
        %v2820 = vpack.c.b16 %v2742, %v2736
        %v2821 = vpack.c.b16 %v2743, %v2737
        %v2822 = vpack.c.b16 %v2744, %v2738
        %v2823 = vpack.c.b16 %v2751, %v2745
        %v2824 = vpack.c.b16 %v2752, %v2746
        %v2825 = vpack.c.b16 %v2753, %v2747
        %v2826 = vpack.c.b16 %v2754, %v2748
        %v2827 = vpack.c.b16 %v2755, %v2749
        %v2828 = vpack.c.b16 %v2756, %v2750
        %v2829 = vpack.c.b16 %v2763, %v2757
        %v2830 = vpack.c.b16 %v2764, %v2758
        %v2831 = vpack.c.b16 %v2765, %v2759
        %v2832 = vpack.c.b16 %v2766, %v2760
        %v2833 = vpack.c.b16 %v2767, %v2761
        %v2834 = vpack.c.b16 %v2768, %v2762
        %v2835 = vpack.c.b16 %v2775, %v2769
        %v2836 = vpack.c.b16 %v2776, %v2770
        %v2837 = vpack.c.b16 %v2777, %v2771
        %v2838 = vpack.c.b16 %v2778, %v2772
        %v2839 = vpack.c.b16 %v2779, %v2773
        %v2840 = vpack.c.b16 %v2780, %v2774
        %v2841 = vpack.c.b16 %v2787, %v2781
        %v2842 = vpack.c.b16 %v2788, %v2782
        %v2843 = vpack.c.b16 %v2789, %v2783
        %v2844 = vpack.c.b16 %v2790, %v2784
        %v2845 = vpack.c.b16 %v2791, %v2785
        %v2846 = vpack.c.b16 %v2792, %v2786
        %v2847 = vpack.c.b16 %v2799, %v2793
        %v2848 = vpack.c.b16 %v2800, %v2794
        %v2849 = vpack.c.b16 %v2801, %v2795
        %v2850 = vpack.c.b16 %v2802, %v2796
        %v2851 = vpack.c.b16 %v2803, %v2797
        %v2852 = vpack.c.b16 %v2804, %v2798
        %2901 = vmatpush.bf16.msra.mxu0 %v2847
        %2902 = vmatpush.bf16.msra.mxu0 %v2841
        %2903 = vmatpush.bf16.msra.mxu0 %v2835
        %2904 = vmatpush.bf16.msra.mxu0 %v2829
        %2905 = vmatpush.bf16.msra.mxu0 %v2823
        %2906 = vmatpush.bf16.msra.mxu0 %v2817
        %2907 = vmatpush.bf16.msra.mxu0 %v2811
        %2908 = vmatpush.bf16.msra.mxu0 %v2805
        %2909 = vmatmul.bf16.gmra.mxu0 %v2609
        %v2910 = vpop.f32.mrf.mxu0
        %v2911 = vadd.f32 0.0, %v2910
        %v2912 = vpop.f32.mrf.mxu0
        %v2913 = vadd.f32 0.0, %v2912
        %2914 = vmatmul.bf16.gmra.mxu0 %v2610
        %v2915 = vpop.f32.mrf.mxu0
        %v2916 = vadd.f32 0.0, %v2915
        %v2917 = vpop.f32.mrf.mxu0
        %v2918 = vadd.f32 0.0, %v2917
        %2919 = vmatmul.bf16.gmra.mxu0 %v2611
        %v2920 = vpop.f32.mrf.mxu0
        %v2921 = vadd.f32 0.0, %v2920
        %v2922 = vpop.f32.mrf.mxu0
        %v2923 = vadd.f32 0.0, %v2922
        %2924 = vmatmul.bf16.gmra.mxu0 %v2612
        %v2925 = vpop.f32.mrf.mxu0
        %v2926 = vadd.f32 0.0, %v2925
        %v2927 = vpop.f32.mrf.mxu0
        %v2928 = vadd.f32 0.0, %v2927
        %2929 = vdwg.mxu0
        %2930 = vmatpush.bf16.msra.mxu0 %v2848
        %2931 = vmatpush.bf16.msra.mxu0 %v2842
        %2932 = vmatpush.bf16.msra.mxu0 %v2836
        %2933 = vmatpush.bf16.msra.mxu0 %v2830
        %2934 = vmatpush.bf16.msra.mxu0 %v2824
        %2935 = vmatpush.bf16.msra.mxu0 %v2818
        %2936 = vmatpush.bf16.msra.mxu0 %v2812
        %2937 = vmatpush.bf16.msra.mxu0 %v2806
        %2938 = vmatmul.bf16.gmra.mxu0 %v2609
        %v2939 = vpop.f32.mrf.mxu0
        %v2940 = vadd.f32 0.0, %v2939
        %v2941 = vpop.f32.mrf.mxu0
        %v2942 = vadd.f32 0.0, %v2941
        %2943 = vmatmul.bf16.gmra.mxu0 %v2610
        %v2944 = vpop.f32.mrf.mxu0
        %v2945 = vadd.f32 0.0, %v2944
        %v2946 = vpop.f32.mrf.mxu0
        %v2947 = vadd.f32 0.0, %v2946
        %2948 = vmatmul.bf16.gmra.mxu0 %v2611
        %v2949 = vpop.f32.mrf.mxu0
        %v2950 = vadd.f32 0.0, %v2949
        %v2951 = vpop.f32.mrf.mxu0
        %v2952 = vadd.f32 0.0, %v2951
        %2953 = vmatmul.bf16.gmra.mxu0 %v2612
        %v2954 = vpop.f32.mrf.mxu0
        %v2955 = vadd.f32 0.0, %v2954
        %v2956 = vpop.f32.mrf.mxu0
        %v2957 = vadd.f32 0.0, %v2956
        %2958 = vdwg.mxu0
        %2959 = vmatpush.bf16.msra.mxu0 %v2849
        %2960 = vmatpush.bf16.msra.mxu0 %v2843
        %2961 = vmatpush.bf16.msra.mxu0 %v2837
        %2962 = vmatpush.bf16.msra.mxu0 %v2831
        %2963 = vmatpush.bf16.msra.mxu0 %v2825
        %2964 = vmatpush.bf16.msra.mxu0 %v2819
        %2965 = vmatpush.bf16.msra.mxu0 %v2813
        %2966 = vmatpush.bf16.msra.mxu0 %v2807
        %2967 = vmatmul.bf16.gmra.mxu0 %v2609
        %v2968 = vpop.f32.mrf.mxu0
        %v2969 = vadd.f32 0.0, %v2968
        %v2970 = vpop.f32.mrf.mxu0
        %v2971 = vadd.f32 0.0, %v2970
        %2972 = vmatmul.bf16.gmra.mxu0 %v2610
        %v2973 = vpop.f32.mrf.mxu0
        %v2974 = vadd.f32 0.0, %v2973
        %v2975 = vpop.f32.mrf.mxu0
        %v2976 = vadd.f32 0.0, %v2975
        %2977 = vmatmul.bf16.gmra.mxu0 %v2611
        %v2978 = vpop.f32.mrf.mxu0
        %v2979 = vadd.f32 0.0, %v2978
        %v2980 = vpop.f32.mrf.mxu0
        %v2981 = vadd.f32 0.0, %v2980
        %2982 = vmatmul.bf16.gmra.mxu0 %v2612
        %v2983 = vpop.f32.mrf.mxu0
        %v2984 = vadd.f32 0.0, %v2983
        %v2985 = vpop.f32.mrf.mxu0
        %v2986 = vadd.f32 0.0, %v2985
        %2987 = vdwg.mxu0
        %2988 = vmatpush.bf16.msra.mxu0 %v2850
        %2989 = vmatpush.bf16.msra.mxu0 %v2844
        %2990 = vmatpush.bf16.msra.mxu0 %v2838
        %2991 = vmatpush.bf16.msra.mxu0 %v2832
        %2992 = vmatpush.bf16.msra.mxu0 %v2826
        %2993 = vmatpush.bf16.msra.mxu0 %v2820
        %2994 = vmatpush.bf16.msra.mxu0 %v2814
        %2995 = vmatpush.bf16.msra.mxu0 %v2808
        %2996 = vmatmul.bf16.gmra.mxu0 %v2609
        %v2997 = vpop.f32.mrf.mxu0
        %v2998 = vadd.f32 0.0, %v2997
        %v2999 = vpop.f32.mrf.mxu0
        %v3000 = vadd.f32 0.0, %v2999
        %3001 = vmatmul.bf16.gmra.mxu0 %v2610
        %v3002 = vpop.f32.mrf.mxu0
        %v3003 = vadd.f32 0.0, %v3002
        %v3004 = vpop.f32.mrf.mxu0
        %v3005 = vadd.f32 0.0, %v3004
        %3006 = vmatmul.bf16.gmra.mxu0 %v2611
        %v3007 = vpop.f32.mrf.mxu0
        %v3008 = vadd.f32 0.0, %v3007
        %v3009 = vpop.f32.mrf.mxu0
        %v3010 = vadd.f32 0.0, %v3009
        %3011 = vmatmul.bf16.gmra.mxu0 %v2612
        %v3012 = vpop.f32.mrf.mxu0
        %v3013 = vadd.f32 0.0, %v3012
        %v3014 = vpop.f32.mrf.mxu0
        %v3015 = vadd.f32 0.0, %v3014
        %3016 = vdwg.mxu0
        %3017 = vmatpush.bf16.msra.mxu0 %v2851
        %3018 = vmatpush.bf16.msra.mxu0 %v2845
        %3019 = vmatpush.bf16.msra.mxu0 %v2839
        %3020 = vmatpush.bf16.msra.mxu0 %v2833
        %3021 = vmatpush.bf16.msra.mxu0 %v2827
        %3022 = vmatpush.bf16.msra.mxu0 %v2821
        %3023 = vmatpush.bf16.msra.mxu0 %v2815
        %3024 = vmatpush.bf16.msra.mxu0 %v2809
        %3025 = vmatmul.bf16.gmra.mxu0 %v2609
        %v3026 = vpop.f32.mrf.mxu0
        %v3027 = vadd.f32 0.0, %v3026
        %v3028 = vpop.f32.mrf.mxu0
        %v3029 = vadd.f32 0.0, %v3028
        %3030 = vmatmul.bf16.gmra.mxu0 %v2610
        %v3031 = vpop.f32.mrf.mxu0
        %v3032 = vadd.f32 0.0, %v3031
        %v3033 = vpop.f32.mrf.mxu0
        %v3034 = vadd.f32 0.0, %v3033
        %3035 = vmatmul.bf16.gmra.mxu0 %v2611
        %v3036 = vpop.f32.mrf.mxu0
        %v3037 = vadd.f32 0.0, %v3036
        %v3038 = vpop.f32.mrf.mxu0
        %v3039 = vadd.f32 0.0, %v3038
        %3040 = vmatmul.bf16.gmra.mxu0 %v2612
        %v3041 = vpop.f32.mrf.mxu0
        %v3042 = vadd.f32 0.0, %v3041
        %v3043 = vpop.f32.mrf.mxu0
        %v3044 = vadd.f32 0.0, %v3043
        %3045 = vdwg.mxu0
        %3046 = vmatpush.bf16.msra.mxu0 %v2852
        %3047 = vmatpush.bf16.msra.mxu0 %v2846
        %3048 = vmatpush.bf16.msra.mxu0 %v2840
        %3049 = vmatpush.bf16.msra.mxu0 %v2834
        %3050 = vmatpush.bf16.msra.mxu0 %v2828
        %3051 = vmatpush.bf16.msra.mxu0 %v2822
        %3052 = vmatpush.bf16.msra.mxu0 %v2816
        %3053 = vmatpush.bf16.msra.mxu0 %v2810
        %3054 = vmatmul.bf16.gmra.mxu0 %v2609
        %v3055 = vpop.f32.mrf.mxu0
        %v3056 = vadd.f32 0.0, %v3055
        %v3057 = vpop.f32.mrf.mxu0
        %v3058 = vadd.f32 0.0, %v3057
        %3059 = vmatmul.bf16.gmra.mxu0 %v2610
        %v3060 = vpop.f32.mrf.mxu0
        %v3061 = vadd.f32 0.0, %v3060
        %v3062 = vpop.f32.mrf.mxu0
        %v3063 = vadd.f32 0.0, %v3062
        %3064 = vmatmul.bf16.gmra.mxu0 %v2611
        %v3065 = vpop.f32.mrf.mxu0
        %v3066 = vadd.f32 0.0, %v3065
        %v3067 = vpop.f32.mrf.mxu0
        %v3068 = vadd.f32 0.0, %v3067
        %3069 = vmatmul.bf16.gmra.mxu0 %v2612
        %v3070 = vpop.f32.mrf.mxu0
        %v3071 = vadd.f32 0.0, %v3070
        %v3072 = vpop.f32.mrf.mxu0
        %v3073 = vadd.f32 0.0, %v3072
        %3074 = vdwg.mxu0
        %v3075 = vxor.u32 %v2911, 2147483648
        %v3076 = vxor.u32 %v2940, 2147483648
        %v3077 = vxor.u32 %v2969, 2147483648
        %v3078 = vxor.u32 %v2913, 2147483648
        %v3079 = vxor.u32 %v2942, 2147483648
        %v3080 = vxor.u32 %v2971, 2147483648
        %v3081 = vxor.u32 %v2916, 2147483648
        %v3082 = vxor.u32 %v2945, 2147483648
        %v3083 = vxor.u32 %v2974, 2147483648
        %v3084 = vxor.u32 %v2918, 2147483648
        %v3085 = vxor.u32 %v2947, 2147483648
        %v3086 = vxor.u32 %v2976, 2147483648
        %v3087 = vxor.u32 %v2921, 2147483648
        %v3088 = vxor.u32 %v2950, 2147483648
        %v3089 = vxor.u32 %v2979, 2147483648
        %v3090 = vxor.u32 %v2923, 2147483648
        %v3091 = vxor.u32 %v2952, 2147483648
        %v3092 = vxor.u32 %v2981, 2147483648
        %v3093 = vxor.u32 %v2926, 2147483648
        %v3094 = vxor.u32 %v2955, 2147483648
        %v3095 = vxor.u32 %v2984, 2147483648
        %v3096 = vxor.u32 %v2928, 2147483648
        %v3097 = vxor.u32 %v2957, 2147483648
        %v3098 = vxor.u32 %v2986, 2147483648
        %v3099 = vmul.f32 %v3075, 1.442695
        %v3100 = vpow.pop %v3099
        %v3101 = vmul.f32 %v3076, 1.442695
        %v3102 = vpow.pop %v3101
        %v3103 = vmul.f32 %v3077, 1.442695
        %v3104 = vpow.pop %v3103
        %v3105 = vmul.f32 %v3078, 1.442695
        %v3106 = vpow.pop %v3105
        %v3107 = vmul.f32 %v3079, 1.442695
        %v3108 = vpow.pop %v3107
        %v3109 = vmul.f32 %v3080, 1.442695
        %v3110 = vpow.pop %v3109
        %v3111 = vmul.f32 %v3081, 1.442695
        %v3112 = vpow.pop %v3111
        %v3113 = vmul.f32 %v3082, 1.442695
        %v3114 = vpow.pop %v3113
        %v3115 = vmul.f32 %v3083, 1.442695
        %v3116 = vpow.pop %v3115
        %v3117 = vmul.f32 %v3084, 1.442695
        %v3118 = vpow.pop %v3117
        %v3119 = vmul.f32 %v3085, 1.442695
        %v3120 = vpow.pop %v3119
        %v3121 = vmul.f32 %v3086, 1.442695
        %v3122 = vpow.pop %v3121
        %v3123 = vmul.f32 %v3087, 1.442695
        %v3124 = vpow.pop %v3123
        %v3125 = vmul.f32 %v3088, 1.442695
        %v3126 = vpow.pop %v3125
        %v3127 = vmul.f32 %v3089, 1.442695
        %v3128 = vpow.pop %v3127
        %v3129 = vmul.f32 %v3090, 1.442695
        %v3130 = vpow.pop %v3129
        %v3131 = vmul.f32 %v3091, 1.442695
        %v3132 = vpow.pop %v3131
        %v3133 = vmul.f32 %v3092, 1.442695
        %v3134 = vpow.pop %v3133
        %v3135 = vmul.f32 %v3093, 1.442695
        %v3136 = vpow.pop %v3135
        %v3137 = vmul.f32 %v3094, 1.442695
        %v3138 = vpow.pop %v3137
        %v3139 = vmul.f32 %v3095, 1.442695
        %v3140 = vpow.pop %v3139
        %v3141 = vmul.f32 %v3096, 1.442695
        %v3142 = vpow.pop %v3141
        %v3143 = vmul.f32 %v3097, 1.442695
        %v3144 = vpow.pop %v3143
        %v3145 = vmul.f32 %v3098, 1.442695
        %v3146 = vpow.pop %v3145
        %v3147 = vadd.f32 %v3100, 1.0
        %v3148 = vadd.f32 %v3102, 1.0
        %v3149 = vadd.f32 %v3104, 1.0
        %v3150 = vadd.f32 %v3106, 1.0
        %v3151 = vadd.f32 %v3108, 1.0
        %v3152 = vadd.f32 %v3110, 1.0
        %v3153 = vadd.f32 %v3112, 1.0
        %v3154 = vadd.f32 %v3114, 1.0
        %v3155 = vadd.f32 %v3116, 1.0
        %v3156 = vadd.f32 %v3118, 1.0
        %v3157 = vadd.f32 %v3120, 1.0
        %v3158 = vadd.f32 %v3122, 1.0
        %v3159 = vadd.f32 %v3124, 1.0
        %v3160 = vadd.f32 %v3126, 1.0
        %v3161 = vadd.f32 %v3128, 1.0
        %v3162 = vadd.f32 %v3130, 1.0
        %v3163 = vadd.f32 %v3132, 1.0
        %v3164 = vadd.f32 %v3134, 1.0
        %v3165 = vadd.f32 %v3136, 1.0
        %v3166 = vadd.f32 %v3138, 1.0
        %v3167 = vadd.f32 %v3140, 1.0
        %v3168 = vadd.f32 %v3142, 1.0
        %v3169 = vadd.f32 %v3144, 1.0
        %v3170 = vadd.f32 %v3146, 1.0
        %v3171 = vrcp.pop %v3147
        %v3172 = vmul.f32 %v3147, %v3171
        %v3173 = vsub.f32 1.0, %v3172
        %v3174 = vmul.f32 %v3171, %v3173
        %v3175 = vadd.f32 %v3171, %v3174
        %vm3176 = vweird.f32 %v3147
        %vm3177 = vweird.f32 %v3171
        %vm3178 = vmor %vm3176, %vm3177
        %v3179 = vsel %vm3178, %v3171, %v3175
        %v3180 = vand.u32 2147483647, %v3147
        %vm3181 = vcmp.eq.f32.partialorder %v3180, 8.507059e+37
        %v3182 = vand.u32 %v3147, 2147483648
        %v3183 = vor.u32 1.1754944e-38, %v3182
        %v3184 = vsel %vm3181, %v3183, %v3179
        %v3185 = vmul.f32 1.0, %v3184
        %v3186 = vrcp.pop %v3148
        %v3187 = vmul.f32 %v3148, %v3186
        %v3188 = vsub.f32 1.0, %v3187
        %v3189 = vmul.f32 %v3186, %v3188
        %v3190 = vadd.f32 %v3186, %v3189
        %vm3191 = vweird.f32 %v3148
        %vm3192 = vweird.f32 %v3186
        %vm3193 = vmor %vm3191, %vm3192
        %v3194 = vsel %vm3193, %v3186, %v3190
        %v3195 = vand.u32 2147483647, %v3148
        %vm3196 = vcmp.eq.f32.partialorder %v3195, 8.507059e+37
        %v3197 = vand.u32 %v3148, 2147483648
        %v3198 = vor.u32 1.1754944e-38, %v3197
        %v3199 = vsel %vm3196, %v3198, %v3194
        %v3200 = vmul.f32 1.0, %v3199
        %v3201 = vrcp.pop %v3149
        %v3202 = vmul.f32 %v3149, %v3201
        %v3203 = vsub.f32 1.0, %v3202
        %v3204 = vmul.f32 %v3201, %v3203
        %v3205 = vadd.f32 %v3201, %v3204
        %vm3206 = vweird.f32 %v3149
        %vm3207 = vweird.f32 %v3201
        %vm3208 = vmor %vm3206, %vm3207
        %v3209 = vsel %vm3208, %v3201, %v3205
        %v3210 = vand.u32 2147483647, %v3149
        %vm3211 = vcmp.eq.f32.partialorder %v3210, 8.507059e+37
        %v3212 = vand.u32 %v3149, 2147483648
        %v3213 = vor.u32 1.1754944e-38, %v3212
        %v3214 = vsel %vm3211, %v3213, %v3209
        %v3215 = vmul.f32 1.0, %v3214
        %v3216 = vrcp.pop %v3150
        %v3217 = vmul.f32 %v3150, %v3216
        %v3218 = vsub.f32 1.0, %v3217
        %v3219 = vmul.f32 %v3216, %v3218
        %v3220 = vadd.f32 %v3216, %v3219
        %vm3221 = vweird.f32 %v3150
        %vm3222 = vweird.f32 %v3216
        %vm3223 = vmor %vm3221, %vm3222
        %v3224 = vsel %vm3223, %v3216, %v3220
        %v3225 = vand.u32 2147483647, %v3150
        %vm3226 = vcmp.eq.f32.partialorder %v3225, 8.507059e+37
        %v3227 = vand.u32 %v3150, 2147483648
        %v3228 = vor.u32 1.1754944e-38, %v3227
        %v3229 = vsel %vm3226, %v3228, %v3224
        %v3230 = vmul.f32 1.0, %v3229
        %v3231 = vrcp.pop %v3151
        %v3232 = vmul.f32 %v3151, %v3231
        %v3233 = vsub.f32 1.0, %v3232
        %v3234 = vmul.f32 %v3231, %v3233
        %v3235 = vadd.f32 %v3231, %v3234
        %vm3236 = vweird.f32 %v3151
        %vm3237 = vweird.f32 %v3231
        %vm3238 = vmor %vm3236, %vm3237
        %v3239 = vsel %vm3238, %v3231, %v3235
        %v3240 = vand.u32 2147483647, %v3151
        %vm3241 = vcmp.eq.f32.partialorder %v3240, 8.507059e+37
        %v3242 = vand.u32 %v3151, 2147483648
        %v3243 = vor.u32 1.1754944e-38, %v3242
        %v3244 = vsel %vm3241, %v3243, %v3239
        %v3245 = vmul.f32 1.0, %v3244
        %v3246 = vrcp.pop %v3152
        %v3247 = vmul.f32 %v3152, %v3246
        %v3248 = vsub.f32 1.0, %v3247
        %v3249 = vmul.f32 %v3246, %v3248
        %v3250 = vadd.f32 %v3246, %v3249
        %vm3251 = vweird.f32 %v3152
        %vm3252 = vweird.f32 %v3246
        %vm3253 = vmor %vm3251, %vm3252
        %v3254 = vsel %vm3253, %v3246, %v3250
        %v3255 = vand.u32 2147483647, %v3152
        %vm3256 = vcmp.eq.f32.partialorder %v3255, 8.507059e+37
        %v3257 = vand.u32 %v3152, 2147483648
        %v3258 = vor.u32 1.1754944e-38, %v3257
        %v3259 = vsel %vm3256, %v3258, %v3254
        %v3260 = vmul.f32 1.0, %v3259
        %v3261 = vrcp.pop %v3153
        %v3262 = vmul.f32 %v3153, %v3261
        %v3263 = vsub.f32 1.0, %v3262
        %v3264 = vmul.f32 %v3261, %v3263
        %v3265 = vadd.f32 %v3261, %v3264
        %vm3266 = vweird.f32 %v3153
        %vm3267 = vweird.f32 %v3261
        %vm3268 = vmor %vm3266, %vm3267
        %v3269 = vsel %vm3268, %v3261, %v3265
        %v3270 = vand.u32 2147483647, %v3153
        %vm3271 = vcmp.eq.f32.partialorder %v3270, 8.507059e+37
        %v3272 = vand.u32 %v3153, 2147483648
        %v3273 = vor.u32 1.1754944e-38, %v3272
        %v3274 = vsel %vm3271, %v3273, %v3269
        %v3275 = vmul.f32 1.0, %v3274
        %v3276 = vrcp.pop %v3154
        %v3277 = vmul.f32 %v3154, %v3276
        %v3278 = vsub.f32 1.0, %v3277
        %v3279 = vmul.f32 %v3276, %v3278
        %v3280 = vadd.f32 %v3276, %v3279
        %vm3281 = vweird.f32 %v3154
        %vm3282 = vweird.f32 %v3276
        %vm3283 = vmor %vm3281, %vm3282
        %v3284 = vsel %vm3283, %v3276, %v3280
        %v3285 = vand.u32 2147483647, %v3154
        %vm3286 = vcmp.eq.f32.partialorder %v3285, 8.507059e+37
        %v3287 = vand.u32 %v3154, 2147483648
        %v3288 = vor.u32 1.1754944e-38, %v3287
        %v3289 = vsel %vm3286, %v3288, %v3284
        %v3290 = vmul.f32 1.0, %v3289
        %v3291 = vrcp.pop %v3155
        %v3292 = vmul.f32 %v3155, %v3291
        %v3293 = vsub.f32 1.0, %v3292
        %v3294 = vmul.f32 %v3291, %v3293
        %v3295 = vadd.f32 %v3291, %v3294
        %vm3296 = vweird.f32 %v3155
        %vm3297 = vweird.f32 %v3291
        %vm3298 = vmor %vm3296, %vm3297
        %v3299 = vsel %vm3298, %v3291, %v3295
        %v3300 = vand.u32 2147483647, %v3155
        %vm3301 = vcmp.eq.f32.partialorder %v3300, 8.507059e+37
        %v3302 = vand.u32 %v3155, 2147483648
        %v3303 = vor.u32 1.1754944e-38, %v3302
        %v3304 = vsel %vm3301, %v3303, %v3299
        %v3305 = vmul.f32 1.0, %v3304
        %v3306 = vrcp.pop %v3156
        %v3307 = vmul.f32 %v3156, %v3306
        %v3308 = vsub.f32 1.0, %v3307
        %v3309 = vmul.f32 %v3306, %v3308
        %v3310 = vadd.f32 %v3306, %v3309
        %vm3311 = vweird.f32 %v3156
        %vm3312 = vweird.f32 %v3306
        %vm3313 = vmor %vm3311, %vm3312
        %v3314 = vsel %vm3313, %v3306, %v3310
        %v3315 = vand.u32 2147483647, %v3156
        %vm3316 = vcmp.eq.f32.partialorder %v3315, 8.507059e+37
        %v3317 = vand.u32 %v3156, 2147483648
        %v3318 = vor.u32 1.1754944e-38, %v3317
        %v3319 = vsel %vm3316, %v3318, %v3314
        %v3320 = vmul.f32 1.0, %v3319
        %v3321 = vrcp.pop %v3157
        %v3322 = vmul.f32 %v3157, %v3321
        %v3323 = vsub.f32 1.0, %v3322
        %v3324 = vmul.f32 %v3321, %v3323
        %v3325 = vadd.f32 %v3321, %v3324
        %vm3326 = vweird.f32 %v3157
        %vm3327 = vweird.f32 %v3321
        %vm3328 = vmor %vm3326, %vm3327
        %v3329 = vsel %vm3328, %v3321, %v3325
        %v3330 = vand.u32 2147483647, %v3157
        %vm3331 = vcmp.eq.f32.partialorder %v3330, 8.507059e+37
        %v3332 = vand.u32 %v3157, 2147483648
        %v3333 = vor.u32 1.1754944e-38, %v3332
        %v3334 = vsel %vm3331, %v3333, %v3329
        %v3335 = vmul.f32 1.0, %v3334
        %v3336 = vrcp.pop %v3158
        %v3337 = vmul.f32 %v3158, %v3336
        %v3338 = vsub.f32 1.0, %v3337
        %v3339 = vmul.f32 %v3336, %v3338
        %v3340 = vadd.f32 %v3336, %v3339
        %vm3341 = vweird.f32 %v3158
        %vm3342 = vweird.f32 %v3336
        %vm3343 = vmor %vm3341, %vm3342
        %v3344 = vsel %vm3343, %v3336, %v3340
        %v3345 = vand.u32 2147483647, %v3158
        %vm3346 = vcmp.eq.f32.partialorder %v3345, 8.507059e+37
        %v3347 = vand.u32 %v3158, 2147483648
        %v3348 = vor.u32 1.1754944e-38, %v3347
        %v3349 = vsel %vm3346, %v3348, %v3344
        %v3350 = vmul.f32 1.0, %v3349
        %v3351 = vrcp.pop %v3159
        %v3352 = vmul.f32 %v3159, %v3351
        %v3353 = vsub.f32 1.0, %v3352
        %v3354 = vmul.f32 %v3351, %v3353
        %v3355 = vadd.f32 %v3351, %v3354
        %vm3356 = vweird.f32 %v3159
        %vm3357 = vweird.f32 %v3351
        %vm3358 = vmor %vm3356, %vm3357
        %v3359 = vsel %vm3358, %v3351, %v3355
        %v3360 = vand.u32 2147483647, %v3159
        %vm3361 = vcmp.eq.f32.partialorder %v3360, 8.507059e+37
        %v3362 = vand.u32 %v3159, 2147483648
        %v3363 = vor.u32 1.1754944e-38, %v3362
        %v3364 = vsel %vm3361, %v3363, %v3359
        %v3365 = vmul.f32 1.0, %v3364
        %v3366 = vrcp.pop %v3160
        %v3367 = vmul.f32 %v3160, %v3366
        %v3368 = vsub.f32 1.0, %v3367
        %v3369 = vmul.f32 %v3366, %v3368
        %v3370 = vadd.f32 %v3366, %v3369
        %vm3371 = vweird.f32 %v3160
        %vm3372 = vweird.f32 %v3366
        %vm3373 = vmor %vm3371, %vm3372
        %v3374 = vsel %vm3373, %v3366, %v3370
        %v3375 = vand.u32 2147483647, %v3160
        %vm3376 = vcmp.eq.f32.partialorder %v3375, 8.507059e+37
        %v3377 = vand.u32 %v3160, 2147483648
        %v3378 = vor.u32 1.1754944e-38, %v3377
        %v3379 = vsel %vm3376, %v3378, %v3374
        %v3380 = vmul.f32 1.0, %v3379
        %v3381 = vrcp.pop %v3161
        %v3382 = vmul.f32 %v3161, %v3381
        %v3383 = vsub.f32 1.0, %v3382
        %v3384 = vmul.f32 %v3381, %v3383
        %v3385 = vadd.f32 %v3381, %v3384
        %vm3386 = vweird.f32 %v3161
        %vm3387 = vweird.f32 %v3381
        %vm3388 = vmor %vm3386, %vm3387
        %v3389 = vsel %vm3388, %v3381, %v3385
        %v3390 = vand.u32 2147483647, %v3161
        %vm3391 = vcmp.eq.f32.partialorder %v3390, 8.507059e+37
        %v3392 = vand.u32 %v3161, 2147483648
        %v3393 = vor.u32 1.1754944e-38, %v3392
        %v3394 = vsel %vm3391, %v3393, %v3389
        %v3395 = vmul.f32 1.0, %v3394
        %v3396 = vrcp.pop %v3162
        %v3397 = vmul.f32 %v3162, %v3396
        %v3398 = vsub.f32 1.0, %v3397
        %v3399 = vmul.f32 %v3396, %v3398
        %v3400 = vadd.f32 %v3396, %v3399
        %vm3401 = vweird.f32 %v3162
        %vm3402 = vweird.f32 %v3396
        %vm3403 = vmor %vm3401, %vm3402
        %v3404 = vsel %vm3403, %v3396, %v3400
        %v3405 = vand.u32 2147483647, %v3162
        %vm3406 = vcmp.eq.f32.partialorder %v3405, 8.507059e+37
        %v3407 = vand.u32 %v3162, 2147483648
        %v3408 = vor.u32 1.1754944e-38, %v3407
        %v3409 = vsel %vm3406, %v3408, %v3404
        %v3410 = vmul.f32 1.0, %v3409
        %v3411 = vrcp.pop %v3163
        %v3412 = vmul.f32 %v3163, %v3411
        %v3413 = vsub.f32 1.0, %v3412
        %v3414 = vmul.f32 %v3411, %v3413
        %v3415 = vadd.f32 %v3411, %v3414
        %vm3416 = vweird.f32 %v3163
        %vm3417 = vweird.f32 %v3411
        %vm3418 = vmor %vm3416, %vm3417
        %v3419 = vsel %vm3418, %v3411, %v3415
        %v3420 = vand.u32 2147483647, %v3163
        %vm3421 = vcmp.eq.f32.partialorder %v3420, 8.507059e+37
        %v3422 = vand.u32 %v3163, 2147483648
        %v3423 = vor.u32 1.1754944e-38, %v3422
        %v3424 = vsel %vm3421, %v3423, %v3419
        %v3425 = vmul.f32 1.0, %v3424
        %v3426 = vrcp.pop %v3164
        %v3427 = vmul.f32 %v3164, %v3426
        %v3428 = vsub.f32 1.0, %v3427
        %v3429 = vmul.f32 %v3426, %v3428
        %v3430 = vadd.f32 %v3426, %v3429
        %vm3431 = vweird.f32 %v3164
        %vm3432 = vweird.f32 %v3426
        %vm3433 = vmor %vm3431, %vm3432
        %v3434 = vsel %vm3433, %v3426, %v3430
        %v3435 = vand.u32 2147483647, %v3164
        %vm3436 = vcmp.eq.f32.partialorder %v3435, 8.507059e+37
        %v3437 = vand.u32 %v3164, 2147483648
        %v3438 = vor.u32 1.1754944e-38, %v3437
        %v3439 = vsel %vm3436, %v3438, %v3434
        %v3440 = vmul.f32 1.0, %v3439
        %v3441 = vrcp.pop %v3165
        %v3442 = vmul.f32 %v3165, %v3441
        %v3443 = vsub.f32 1.0, %v3442
        %v3444 = vmul.f32 %v3441, %v3443
        %v3445 = vadd.f32 %v3441, %v3444
        %vm3446 = vweird.f32 %v3165
        %vm3447 = vweird.f32 %v3441
        %vm3448 = vmor %vm3446, %vm3447
        %v3449 = vsel %vm3448, %v3441, %v3445
        %v3450 = vand.u32 2147483647, %v3165
        %vm3451 = vcmp.eq.f32.partialorder %v3450, 8.507059e+37
        %v3452 = vand.u32 %v3165, 2147483648
        %v3453 = vor.u32 1.1754944e-38, %v3452
        %v3454 = vsel %vm3451, %v3453, %v3449
        %v3455 = vmul.f32 1.0, %v3454
        %v3456 = vrcp.pop %v3166
        %v3457 = vmul.f32 %v3166, %v3456
        %v3458 = vsub.f32 1.0, %v3457
        %v3459 = vmul.f32 %v3456, %v3458
        %v3460 = vadd.f32 %v3456, %v3459
        %vm3461 = vweird.f32 %v3166
        %vm3462 = vweird.f32 %v3456
        %vm3463 = vmor %vm3461, %vm3462
        %v3464 = vsel %vm3463, %v3456, %v3460
        %v3465 = vand.u32 2147483647, %v3166
        %vm3466 = vcmp.eq.f32.partialorder %v3465, 8.507059e+37
        %v3467 = vand.u32 %v3166, 2147483648
        %v3468 = vor.u32 1.1754944e-38, %v3467
        %v3469 = vsel %vm3466, %v3468, %v3464
        %v3470 = vmul.f32 1.0, %v3469
        %v3471 = vrcp.pop %v3167
        %v3472 = vmul.f32 %v3167, %v3471
        %v3473 = vsub.f32 1.0, %v3472
        %v3474 = vmul.f32 %v3471, %v3473
        %v3475 = vadd.f32 %v3471, %v3474
        %vm3476 = vweird.f32 %v3167
        %vm3477 = vweird.f32 %v3471
        %vm3478 = vmor %vm3476, %vm3477
        %v3479 = vsel %vm3478, %v3471, %v3475
        %v3480 = vand.u32 2147483647, %v3167
        %vm3481 = vcmp.eq.f32.partialorder %v3480, 8.507059e+37
        %v3482 = vand.u32 %v3167, 2147483648
        %v3483 = vor.u32 1.1754944e-38, %v3482
        %v3484 = vsel %vm3481, %v3483, %v3479
        %v3485 = vmul.f32 1.0, %v3484
        %v3486 = vrcp.pop %v3168
        %v3487 = vmul.f32 %v3168, %v3486
        %v3488 = vsub.f32 1.0, %v3487
        %v3489 = vmul.f32 %v3486, %v3488
        %v3490 = vadd.f32 %v3486, %v3489
        %vm3491 = vweird.f32 %v3168
        %vm3492 = vweird.f32 %v3486
        %vm3493 = vmor %vm3491, %vm3492
        %v3494 = vsel %vm3493, %v3486, %v3490
        %v3495 = vand.u32 2147483647, %v3168
        %vm3496 = vcmp.eq.f32.partialorder %v3495, 8.507059e+37
        %v3497 = vand.u32 %v3168, 2147483648
        %v3498 = vor.u32 1.1754944e-38, %v3497
        %v3499 = vsel %vm3496, %v3498, %v3494
        %v3500 = vmul.f32 1.0, %v3499
        %v3501 = vrcp.pop %v3169
        %v3502 = vmul.f32 %v3169, %v3501
        %v3503 = vsub.f32 1.0, %v3502
        %v3504 = vmul.f32 %v3501, %v3503
        %v3505 = vadd.f32 %v3501, %v3504
        %vm3506 = vweird.f32 %v3169
        %vm3507 = vweird.f32 %v3501
        %vm3508 = vmor %vm3506, %vm3507
        %v3509 = vsel %vm3508, %v3501, %v3505
        %v3510 = vand.u32 2147483647, %v3169
        %vm3511 = vcmp.eq.f32.partialorder %v3510, 8.507059e+37
        %v3512 = vand.u32 %v3169, 2147483648
        %v3513 = vor.u32 1.1754944e-38, %v3512
        %v3514 = vsel %vm3511, %v3513, %v3509
        %v3515 = vmul.f32 1.0, %v3514
        %v3516 = vrcp.pop %v3170
        %v3517 = vmul.f32 %v3170, %v3516
        %v3518 = vsub.f32 1.0, %v3517
        %v3519 = vmul.f32 %v3516, %v3518
        %v3520 = vadd.f32 %v3516, %v3519
        %vm3521 = vweird.f32 %v3170
        %vm3522 = vweird.f32 %v3516
        %vm3523 = vmor %vm3521, %vm3522
        %v3524 = vsel %vm3523, %v3516, %v3520
        %v3525 = vand.u32 2147483647, %v3170
        %vm3526 = vcmp.eq.f32.partialorder %v3525, 8.507059e+37
        %v3527 = vand.u32 %v3170, 2147483648
        %v3528 = vor.u32 1.1754944e-38, %v3527
        %v3529 = vsel %vm3526, %v3528, %v3524
        %v3530 = vmul.f32 1.0, %v3529
        %v3531 = vmul.f32 %v2911, %v3185
        %v3532 = vmul.f32 %v2940, %v3200
        %v3533 = vmul.f32 %v2969, %v3215
        %v3534 = vmul.f32 %v2913, %v3230
        %v3535 = vmul.f32 %v2942, %v3245
        %v3536 = vmul.f32 %v2971, %v3260
        %v3537 = vmul.f32 %v2916, %v3275
        %v3538 = vmul.f32 %v2945, %v3290
        %v3539 = vmul.f32 %v2974, %v3305
        %v3540 = vmul.f32 %v2918, %v3320
        %v3541 = vmul.f32 %v2947, %v3335
        %v3542 = vmul.f32 %v2976, %v3350
        %v3543 = vmul.f32 %v2921, %v3365
        %v3544 = vmul.f32 %v2950, %v3380
        %v3545 = vmul.f32 %v2979, %v3395
        %v3546 = vmul.f32 %v2923, %v3410
        %v3547 = vmul.f32 %v2952, %v3425
        %v3548 = vmul.f32 %v2981, %v3440
        %v3549 = vmul.f32 %v2926, %v3455
        %v3550 = vmul.f32 %v2955, %v3470
        %v3551 = vmul.f32 %v2984, %v3485
        %v3552 = vmul.f32 %v2928, %v3500
        %v3553 = vmul.f32 %v2957, %v3515
        %v3554 = vmul.f32 %v2986, %v3530
        %v3555 = vmul.f32 %v3531, %v2998
        %v3556 = vmul.f32 %v3532, %v3027
        %v3557 = vmul.f32 %v3533, %v3056
        %v3558 = vmul.f32 %v3534, %v3000
        %v3559 = vmul.f32 %v3535, %v3029
        %v3560 = vmul.f32 %v3536, %v3058
        %v3561 = vmul.f32 %v3537, %v3003
        %v3562 = vmul.f32 %v3538, %v3032
        %v3563 = vmul.f32 %v3539, %v3061
        %v3564 = vmul.f32 %v3540, %v3005
        %v3565 = vmul.f32 %v3541, %v3034
        %v3566 = vmul.f32 %v3542, %v3063
        %v3567 = vmul.f32 %v3543, %v3008
        %v3568 = vmul.f32 %v3544, %v3037
        %v3569 = vmul.f32 %v3545, %v3066
        %v3570 = vmul.f32 %v3546, %v3010
        %v3571 = vmul.f32 %v3547, %v3039
        %v3572 = vmul.f32 %v3548, %v3068
        %v3573 = vmul.f32 %v3549, %v3013
        %v3574 = vmul.f32 %v3550, %v3042
        %v3575 = vmul.f32 %v3551, %v3071
        %v3576 = vmul.f32 %v3552, %v3015
        %v3577 = vmul.f32 %v3553, %v3044
        %v3578 = vmul.f32 %v3554, %v3073
        %v3579 = vpack.c.bf16 %v3558, %v3555
        %v3580 = vpack.c.bf16 %v3559, %v3556
        %v3581 = vpack.c.bf16 %v3560, %v3557
        %v3582 = vpack.c.bf16 %v3564, %v3561
        %v3583 = vpack.c.bf16 %v3565, %v3562
        %v3584 = vpack.c.bf16 %v3566, %v3563
        %v3585 = vpack.c.bf16 %v3570, %v3567
        %v3586 = vpack.c.bf16 %v3571, %v3568
        %v3587 = vpack.c.bf16 %v3572, %v3569
        %v3588 = vpack.c.bf16 %v3576, %v3573
        %v3589 = vpack.c.bf16 %v3577, %v3574
        %v3590 = vpack.c.bf16 %v3578, %v3575
        %v3591 = vld [vmem:[#allocation11] sm:$0xf]
        %v3592 = vld [vmem:[#allocation11 + $0x4] sm:$0xf]
        %v3593 = vld [vmem:[#allocation11 + $0x8] sm:$0xf]
        %v3594 = vld [vmem:[#allocation11 + $0xc] sm:$0xf]
        %v3595 = vld [vmem:[#allocation11 + $0x10] sm:$0xf]
        %v3596 = vld [vmem:[#allocation11 + $0x14] sm:$0xf]
        %v3597 = vld [vmem:[#allocation11 + $0x18] sm:$0xf]
        %v3598 = vld [vmem:[#allocation11 + $0x1c] sm:$0xf]
        %v3599 = vld [vmem:[#allocation11 + $0x20] sm:$0xf]
        %v3600 = vld [vmem:[#allocation11 + $0x24] sm:$0xf]
        %v3601 = vld [vmem:[#allocation11 + $0x28] sm:$0xf]
        %v3602 = vld [vmem:[#allocation11 + $0x2c] sm:$0xf]
        %v3603 = vld [vmem:[#allocation11 + $0x30] sm:$0xf]
        %v3604 = vld [vmem:[#allocation11 + $0x34] sm:$0xf]
        %v3605 = vld [vmem:[#allocation11 + $0x38] sm:$0xf]
        %v3606 = vld [vmem:[#allocation11 + $0x3c] sm:$0xf]
        %v3607 = vld [vmem:[#allocation11 + $0x40] sm:$0xf]
        %v3608 = vld [vmem:[#allocation11 + $0x44] sm:$0xf]
        %v3609 = vld [vmem:[#allocation11 + $0x48] sm:$0xf]
        %v3610 = vld [vmem:[#allocation11 + $0x4c] sm:$0xf]
        %v3611 = vld [vmem:[#allocation11 + $0x50] sm:$0xf]
        %v3612 = vld [vmem:[#allocation11 + $0x54] sm:$0xf]
        %v3613 = vld [vmem:[#allocation11 + $0x58] sm:$0xf]
        %v3614 = vld [vmem:[#allocation11 + $0x5c] sm:$0xf]
        %v3615 = vld [vmem:[#allocation11 + $0x60] sm:$0xf]
        %v3616 = vld [vmem:[#allocation11 + $0x64] sm:$0xf]
        %v3617 = vld [vmem:[#allocation11 + $0x68] sm:$0xf]
        %v3618 = vld [vmem:[#allocation11 + $0x6c] sm:$0xf]
        %v3619 = vld [vmem:[#allocation11 + $0x70] sm:$0xf]
        %v3620 = vld [vmem:[#allocation11 + $0x74] sm:$0xf]
        %v3621 = vld [vmem:[#allocation11 + $0x78] sm:$0xf]
        %v3622 = vld [vmem:[#allocation11 + $0x7c] sm:$0xf]
        %v3623 = vld [vmem:[#allocation11 + $0x80] sm:$0xf]
        %v3624 = vld [vmem:[#allocation11 + $0x84] sm:$0xf]
        %v3625 = vld [vmem:[#allocation11 + $0x88] sm:$0xf]
        %v3626 = vld [vmem:[#allocation11 + $0x8c] sm:$0xf]
        %v3627 = vld [vmem:[#allocation11 + $0x90] sm:$0xf]
        %v3628 = vld [vmem:[#allocation11 + $0x94] sm:$0xf]
        %v3629 = vld [vmem:[#allocation11 + $0x98] sm:$0xf]
        %v3630 = vld [vmem:[#allocation11 + $0x9c] sm:$0xf]
        %v3631 = vld [vmem:[#allocation11 + $0xa0] sm:$0xf]
        %v3632 = vld [vmem:[#allocation11 + $0xa4] sm:$0xf]
        %v3633 = vld [vmem:[#allocation11 + $0xa8] sm:$0xf]
        %v3634 = vld [vmem:[#allocation11 + $0xac] sm:$0xf]
        %v3635 = vld [vmem:[#allocation11 + $0xb0] sm:$0xf]
        %v3636 = vld [vmem:[#allocation11 + $0xb4] sm:$0xf]
        %v3637 = vld [vmem:[#allocation11 + $0xb8] sm:$0xf]
        %v3638 = vld [vmem:[#allocation11 + $0xbc] sm:$0xf]
        %v3687 = vunpack.c.l.b16 %v3591
        %v3688 = vunpack.c.l.b16 %v3592
        %v3689 = vunpack.c.l.b16 %v3593
        %v3690 = vunpack.c.l.b16 %v3594
        %v3691 = vunpack.c.l.b16 %v3595
        %v3692 = vunpack.c.l.b16 %v3596
        %v3693 = vunpack.c.l.b16 %v3597
        %v3694 = vunpack.c.l.b16 %v3598
        %v3695 = vunpack.c.l.b16 %v3599
        %v3696 = vunpack.c.l.b16 %v3600
        %v3697 = vunpack.c.l.b16 %v3601
        %v3698 = vunpack.c.l.b16 %v3602
        %v3699 = vunpack.c.l.b16 %v3603
        %v3700 = vunpack.c.l.b16 %v3604
        %v3701 = vunpack.c.l.b16 %v3605
        %v3702 = vunpack.c.l.b16 %v3606
        %v3703 = vunpack.c.l.b16 %v3607
        %v3704 = vunpack.c.l.b16 %v3608
        %v3705 = vunpack.c.l.b16 %v3609
        %v3706 = vunpack.c.l.b16 %v3610
        %v3707 = vunpack.c.l.b16 %v3611
        %v3708 = vunpack.c.l.b16 %v3612
        %v3709 = vunpack.c.l.b16 %v3613
        %v3710 = vunpack.c.l.b16 %v3614
        %v3711 = vunpack.c.l.b16 %v3615
        %v3712 = vunpack.c.l.b16 %v3616
        %v3713 = vunpack.c.l.b16 %v3617
        %v3714 = vunpack.c.l.b16 %v3618
        %v3715 = vunpack.c.l.b16 %v3619
        %v3716 = vunpack.c.l.b16 %v3620
        %v3717 = vunpack.c.l.b16 %v3621
        %v3718 = vunpack.c.l.b16 %v3622
        %v3719 = vunpack.c.l.b16 %v3623
        %v3720 = vunpack.c.l.b16 %v3624
        %v3721 = vunpack.c.l.b16 %v3625
        %v3722 = vunpack.c.l.b16 %v3626
        %v3723 = vunpack.c.l.b16 %v3627
        %v3724 = vunpack.c.l.b16 %v3628
        %v3725 = vunpack.c.l.b16 %v3629
        %v3726 = vunpack.c.l.b16 %v3630
        %v3727 = vunpack.c.l.b16 %v3631
        %v3728 = vunpack.c.l.b16 %v3632
        %v3729 = vunpack.c.l.b16 %v3633
        %v3730 = vunpack.c.l.b16 %v3634
        %v3731 = vunpack.c.l.b16 %v3635
        %v3732 = vunpack.c.l.b16 %v3636
        %v3733 = vunpack.c.l.b16 %v3637
        %v3734 = vunpack.c.l.b16 %v3638
        %v3735 = vpack.c.b16 %v3688, %v3687
        %v3736 = vpack.c.b16 %v3690, %v3689
        %v3737 = vpack.c.b16 %v3692, %v3691
        %v3738 = vpack.c.b16 %v3694, %v3693
        %v3739 = vpack.c.b16 %v3696, %v3695
        %v3740 = vpack.c.b16 %v3698, %v3697
        %v3741 = vpack.c.b16 %v3700, %v3699
        %v3742 = vpack.c.b16 %v3702, %v3701
        %v3743 = vpack.c.b16 %v3704, %v3703
        %v3744 = vpack.c.b16 %v3706, %v3705
        %v3745 = vpack.c.b16 %v3708, %v3707
        %v3746 = vpack.c.b16 %v3710, %v3709
        %v3747 = vpack.c.b16 %v3712, %v3711
        %v3748 = vpack.c.b16 %v3714, %v3713
        %v3749 = vpack.c.b16 %v3716, %v3715
        %v3750 = vpack.c.b16 %v3718, %v3717
        %v3751 = vpack.c.b16 %v3720, %v3719
        %v3752 = vpack.c.b16 %v3722, %v3721
        %v3753 = vpack.c.b16 %v3724, %v3723
        %v3754 = vpack.c.b16 %v3726, %v3725
        %v3755 = vpack.c.b16 %v3728, %v3727
        %v3756 = vpack.c.b16 %v3730, %v3729
        %v3757 = vpack.c.b16 %v3732, %v3731
        %v3758 = vpack.c.b16 %v3734, %v3733
        %3783 = vmatpush.bf16.msra.mxu0 %v3742
        %3784 = vmatpush.bf16.msra.mxu0 %v3741
        %3785 = vmatpush.bf16.msra.mxu0 %v3740
        %3786 = vmatpush.bf16.msra.mxu0 %v3739
        %3787 = vmatpush.bf16.msra.mxu0 %v3738
        %3788 = vmatpush.bf16.msra.mxu0 %v3737
        %3789 = vmatpush.bf16.msra.mxu0 %v3736
        %3790 = vmatpush.bf16.msra.mxu0 %v3735
        %3791 = vmatmul.bf16.gmra.mxu0 %v3579
        %v3792 = vpop.f32.mrf.mxu0
        %v3793 = vadd.f32 0.0, %v3792
        %v3794 = vpop.f32.mrf.mxu0
        %v3795 = vadd.f32 0.0, %v3794
        %3796 = vmatmul.bf16.gmra.mxu0 %v3582
        %v3797 = vpop.f32.mrf.mxu0
        %v3798 = vadd.f32 0.0, %v3797
        %v3799 = vpop.f32.mrf.mxu0
        %v3800 = vadd.f32 0.0, %v3799
        %3801 = vmatmul.bf16.gmra.mxu0 %v3585
        %v3802 = vpop.f32.mrf.mxu0
        %v3803 = vadd.f32 0.0, %v3802
        %v3804 = vpop.f32.mrf.mxu0
        %v3805 = vadd.f32 0.0, %v3804
        %3806 = vmatmul.bf16.gmra.mxu0 %v3588
        %v3807 = vpop.f32.mrf.mxu0
        %v3808 = vadd.f32 0.0, %v3807
        %v3809 = vpop.f32.mrf.mxu0
        %v3810 = vadd.f32 0.0, %v3809
        %3811 = vdwg.mxu0
        %3812 = vmatpush.bf16.msra.mxu0 %v3750
        %3813 = vmatpush.bf16.msra.mxu0 %v3749
        %3814 = vmatpush.bf16.msra.mxu0 %v3748
        %3815 = vmatpush.bf16.msra.mxu0 %v3747
        %3816 = vmatpush.bf16.msra.mxu0 %v3746
        %3817 = vmatpush.bf16.msra.mxu0 %v3745
        %3818 = vmatpush.bf16.msra.mxu0 %v3744
        %3819 = vmatpush.bf16.msra.mxu0 %v3743
        %3820 = vmatmul.bf16.gmra.mxu0 %v3580
        %v3821 = vpop.f32.mrf.mxu0
        %v3822 = vadd.f32 %v3793, %v3821
        %v3823 = vpop.f32.mrf.mxu0
        %v3824 = vadd.f32 %v3795, %v3823
        %3825 = vmatmul.bf16.gmra.mxu0 %v3583
        %v3826 = vpop.f32.mrf.mxu0
        %v3827 = vadd.f32 %v3798, %v3826
        %v3828 = vpop.f32.mrf.mxu0
        %v3829 = vadd.f32 %v3800, %v3828
        %3830 = vmatmul.bf16.gmra.mxu0 %v3586
        %v3831 = vpop.f32.mrf.mxu0
        %v3832 = vadd.f32 %v3803, %v3831
        %v3833 = vpop.f32.mrf.mxu0
        %v3834 = vadd.f32 %v3805, %v3833
        %3835 = vmatmul.bf16.gmra.mxu0 %v3589
        %v3836 = vpop.f32.mrf.mxu0
        %v3837 = vadd.f32 %v3808, %v3836
        %v3838 = vpop.f32.mrf.mxu0
        %v3839 = vadd.f32 %v3810, %v3838
        %3840 = vdwg.mxu0
        %3841 = vmatpush.bf16.msra.mxu0 %v3758
        %3842 = vmatpush.bf16.msra.mxu0 %v3757
        %3843 = vmatpush.bf16.msra.mxu0 %v3756
        %3844 = vmatpush.bf16.msra.mxu0 %v3755
        %3845 = vmatpush.bf16.msra.mxu0 %v3754
        %3846 = vmatpush.bf16.msra.mxu0 %v3753
        %3847 = vmatpush.bf16.msra.mxu0 %v3752
        %3848 = vmatpush.bf16.msra.mxu0 %v3751
        %3849 = vmatmul.bf16.gmra.mxu0 %v3581
        %v3850 = vpop.f32.mrf.mxu0
        %v3851 = vadd.f32 %v3822, %v3850
        %v3852 = vpop.f32.mrf.mxu0
        %v3853 = vadd.f32 %v3824, %v3852
        %3854 = vmatmul.bf16.gmra.mxu0 %v3584
        %v3855 = vpop.f32.mrf.mxu0
        %v3856 = vadd.f32 %v3827, %v3855
        %v3857 = vpop.f32.mrf.mxu0
        %v3858 = vadd.f32 %v3829, %v3857
        %3859 = vmatmul.bf16.gmra.mxu0 %v3587
        %v3860 = vpop.f32.mrf.mxu0
        %v3861 = vadd.f32 %v3832, %v3860
        %v3862 = vpop.f32.mrf.mxu0
        %v3863 = vadd.f32 %v3834, %v3862
        %3864 = vmatmul.bf16.gmra.mxu0 %v3590
        %v3865 = vpop.f32.mrf.mxu0
        %v3866 = vadd.f32 %v3837, %v3865
        %v3867 = vpop.f32.mrf.mxu0
        %v3868 = vadd.f32 %v3839, %v3867
        %3869 = vdwg.mxu0
        %v3870 = vadd.f32 %v2461, %v3851
        %v3871 = vadd.f32 %v2462, %v3853
        %v3872 = vadd.f32 %v2463, %v3856
        %v3873 = vadd.f32 %v2464, %v3858
        %v3874 = vadd.f32 %v2465, %v3861
        %v3875 = vadd.f32 %v2466, %v3863
        %v3876 = vadd.f32 %v2467, %v3866
        %v3877 = vadd.f32 %v2468, %v3868
        %3878 = vst [vmem:[%s509] sm:$0xff] %v3870
        %3879 = vst [vmem:[%s509 + $0x8] sm:$0xff] %v3871
        %3880 = vst [vmem:[%s509 + $0x10] sm:$0xff] %v3872
        %3881 = vst [vmem:[%s509 + $0x18] sm:$0xff] %v3873
        %3882 = vst [vmem:[%s509 + $0x20] sm:$0xff] %v3874
        %3883 = vst [vmem:[%s509 + $0x28] sm:$0xff] %v3875
        %3884 = vst [vmem:[%s509 + $0x30] sm:$0xff] %v3876
        %3885 = vst [vmem:[%s509 + $0x38] sm:$0xff] %v3877
        %s3886 = sand.u32 %s237, 1
        %s3887 = scalar_lea.sflag [#allocation5], %s3886
        %s3888 = sand.u32 %s237, 1
        %s3889 = smul.addr %s3888, 64
        %s3890 = scalar_lea.vmem [#allocation15], %s3889
        %s3891 = sand.u32 %s35, 1
        %s3892 = scalar_lea.sflag [#allocation17], %s3891
        %s3893 = sand.u32 %s263, 1
        %s3894 = smul.addr %s3893, 64
        %s3895 = scalar_lea.vmem [#allocation16], %s3894
        %s3896 = sand.u32 %s35, 1
        %s3897 = scalar_lea.sflag [#allocation17], %s3896
        %s3898 = sand.u32 %s289, 1
        %s3899 = smul.addr %s3898, 64
        %s3900 = scalar_lea.vmem [#allocation18], %s3899
        // Predicated region
        $region85: #{tpu_custom_call.1} parent=55 // pred_check
          %p3901 = pneg %p247
        $region86: #{tpu_custom_call.1} parent=55 // pred_check_branch
          %3903 = sbr.rel (%p3901) target = $region88
        $region87: #{tpu_custom_call.1} parent=55 // pred_region
          %3905 = vsyncadd %s3887, 0
          %s3906 = smul.addr %s35, 8
          %s3907 = smul.addr %s3906, 8
          %s3908 = scalar_lea.hbm %s9, %s3907
          %s3909 = sshll.u32 %s3890, 4
          %s3910 = int_to_ptr.vmem [resolvable:$true] %s3909
          %s3911 = sshll.u32 %s3908, 4
          %s3912 = int_to_ptr.hbm [resolvable:$true] %s3911
          %3917 = dma.vmem_to_hbm [thread:$0]  %s3910, 1024, %s3912, %s3887, 128, 128, 8
        $region88: #{tpu_custom_call.1} parent=55 // pred_fallthru
          _
        // Predicated region
        $region89: #{tpu_custom_call.1} parent=55 // pred_check
          %p3918 = pneg %p273
        $region90: #{tpu_custom_call.1} parent=55 // pred_check_branch
          %3920 = sbr.rel (%p3918) target = $region92
        $region91: #{tpu_custom_call.1} parent=55 // pred_region
          %3922 = vsyncadd %s3892, 0
          %s3923 = smul.addr %s35, 8
          %s3924 = smul.addr %s3923, 8
          %s3925 = scalar_lea.hbm %s10, %s3924
          %s3926 = sshll.u32 %s3895, 4
          %s3927 = int_to_ptr.vmem [resolvable:$true] %s3926
          %s3928 = sshll.u32 %s3925, 4
          %s3929 = int_to_ptr.hbm [resolvable:$true] %s3928
          %3934 = dma.vmem_to_hbm [thread:$0]  %s3927, 1024, %s3929, %s3892, 128, 128, 8
        $region92: #{tpu_custom_call.1} parent=55 // pred_fallthru
          _
        // Predicated region
        $region93: #{tpu_custom_call.1} parent=55 // pred_check
          %p3935 = pneg %p299
        $region94: #{tpu_custom_call.1} parent=55 // pred_check_branch
          %3937 = sbr.rel (%p3935) target = $region96
        $region95: #{tpu_custom_call.1} parent=55 // pred_region
          %3939 = vsyncadd %s3897, 0
          %s3940 = smul.addr %s35, 8
          %s3941 = smul.addr %s3940, 8
          %s3942 = scalar_lea.hbm %s11, %s3941
          %s3943 = sshll.u32 %s3900, 4
          %s3944 = int_to_ptr.vmem [resolvable:$true] %s3943
          %s3945 = sshll.u32 %s3942, 4
          %s3946 = int_to_ptr.hbm [resolvable:$true] %s3945
          %3951 = dma.vmem_to_hbm [thread:$0]  %s3944, 1024, %s3946, %s3897, 128, 128, 8
        $region96: #{tpu_custom_call.1} parent=55 // pred_fallthru
          _
      $region56: #{tpu_custom_call.1} parent=5 // pred_fallthru
        _
      %p3952 = scmp.le.s32.totalorder 2, %s30
      // Predicated region
      $region97: #{tpu_custom_call.1} parent=5 // pred_check
        %p3953 = pneg %p3952
      $region98: #{tpu_custom_call.1} parent=5 // pred_check_branch
        %3955 = sbr.rel (%p3953) target = $region100
      $region99: #{tpu_custom_call.1} parent=5 // pred_region
        %s3956 = ssub.s32 %s30, 2
        // Predicated region
        $region101: #{tpu_custom_call.1} parent=99 // pred_check
          %p3957 = pneg %p253
        $region102: #{tpu_custom_call.1} parent=99 // pred_check_branch
          %3959 = sbr.rel (%p3957) target = $region104
        $region103: #{tpu_custom_call.1} parent=99 // pred_region
          %s3960 = sand.u32 %s238, 1
          %s3961 = scalar_lea.sflag [#allocation5], %s3960
          %s3962 = sand.u32 %s238, 1
          %s3963 = smul.addr %s3962, 64
          %s3964 = scalar_lea.vmem [#allocation15], %s3963
          %3966 = dma.done %s3961, 1024
        $region104: #{tpu_custom_call.1} parent=99 // pred_fallthru
          _
        // Predicated region
        $region105: #{tpu_custom_call.1} parent=99 // pred_check
          %p3967 = pneg %p279
        $region106: #{tpu_custom_call.1} parent=99 // pred_check_branch
          %3969 = sbr.rel (%p3967) target = $region108
        $region107: #{tpu_custom_call.1} parent=99 // pred_region
          %s3970 = sand.u32 %s36, 1
          %s3971 = scalar_lea.sflag [#allocation17], %s3970
          %s3972 = sand.u32 %s264, 1
          %s3973 = smul.addr %s3972, 64
          %s3974 = scalar_lea.vmem [#allocation16], %s3973
          %3976 = dma.done %s3971, 1024
        $region108: #{tpu_custom_call.1} parent=99 // pred_fallthru
          _
        // Predicated region
        $region109: #{tpu_custom_call.1} parent=99 // pred_check
          %p3977 = pneg %p305
        $region110: #{tpu_custom_call.1} parent=99 // pred_check_branch
          %3979 = sbr.rel (%p3977) target = $region112
        $region111: #{tpu_custom_call.1} parent=99 // pred_region
          %s3980 = sand.u32 %s36, 1
          %s3981 = scalar_lea.sflag [#allocation17], %s3980
          %s3982 = sand.u32 %s290, 1
          %s3983 = smul.addr %s3982, 64
          %s3984 = scalar_lea.vmem [#allocation18], %s3983
          %3986 = dma.done %s3981, 1024
        $region112: #{tpu_custom_call.1} parent=99 // pred_fallthru
          _
      $region100: #{tpu_custom_call.1} parent=5 // pred_fallthru
        _
    $region6: #{tpu_custom_call.1} parent=1 // loop_footer
      %s34 = sadd.s32 1, %s30
    $region7: #{tpu_custom_call.1} parent=1 // loop_footer_branch
      %29 = sbr.rel target = $region3
    $region8: #{tpu_custom_call.1} parent=1 // loop_exit
      _
    %3987 = vsyncpa [#allocation4], 1
    %s3988 = scalar_lea.sflag [#allocation4], 1
    %3989 = vsyncpa %s3988, 1
    %3990 = vsyncpa [#allocation7], 1
    %3991 = vsyncpa [#allocation10], 1
    %3992 = vsyncpa [#allocation13], 1
    %3993 = vsyncpa [#allocation5], 1
    %s3994 = scalar_lea.sflag [#allocation5], 1
    %3995 = vsyncpa %s3994, 1
    %3996 = vsyncpa [#allocation17], 1
    %s3997 = scalar_lea.sflag [#allocation17], 1
    %3998 = vsyncpa %s3997, 1

</llo_original>
